<compile_context>
chip_gen: v7x
topology: tpu7x:2x2x1
jax: 0.10.0
libtpu: 0.0.40
codegen_flags: <defaults>
</compile_context>

<pallas_src>
import functools

import jax
import jax.numpy as jnp
from jax.experimental import pallas as pl
from jax.experimental.pallas import tpu as pltpu


def _make_spiking_mlp_kernel(num_layers, tt, beta, threshold):
    """Kernel body for a fixed layer count and time-block size."""

    def kernel(*refs):
        # refs = (cur0_ref, W_1..W_{L-1},
        #         mem_rec_ref, spks_0..spks_{L-1},
        #         mem_scratch_0..mem_scratch_{L-1})
        cur0_ref = refs[0]
        w_refs = refs[1:num_layers]
        mem_rec_ref = refs[num_layers]
        spks_refs = refs[num_layers + 1:2 * num_layers + 1]
        mem_scr = refs[2 * num_layers + 1:3 * num_layers + 1]

        # init_leaky(): zero membranes at the first time block of each batch
        # block (time is the innermost grid axis, so program_id(1) == 0 fires
        # once per batch block).
        @pl.when(pl.program_id(1) == 0)
        def _():
            for m in mem_scr:
                m[...] = jnp.zeros_like(m)

        # Carry membrane state in registers across the TT unrolled steps;
        # read/write the VMEM scratch only once per grid step.
        mems = [m[...] for m in mem_scr]

        spk = None
        for t in range(tt):                      # static unroll over TT steps
            cur = cur0_ref[:, t, :]              # layer-0 current, precomputed
            for i in range(num_layers):
                if i > 0:
                    w = w_refs[i - 1][...]
                    cur = jnp.dot(spk.astype(w.dtype), w,
                                  preferred_element_type=jnp.float32)
                # reset-to-zero LIF update (== beta*(1-reset)*mem + cur)
                mems[i] = jnp.where(mems[i] > threshold, cur,
                                    beta * mems[i] + cur)
                spk = (mems[i] > threshold).astype(jnp.float32)
                spks_refs[i][:, t, :] = spk      # self.spks[i][:, step] = spk
            mem_rec_ref[t] = mems[num_layers - 1]  # mem_rec.append(mems[-1])

        for i in range(num_layers):
            mem_scr[i][...] = mems[i]

    return kernel


def spiking_mlp_forward(x, Ws, *, beta=0.95, threshold=1.0, time_block=8,
                        matmul_dtype=jnp.float32):
    """Pallas forward.

    x:  (batch, num_steps, in_features)   -- same layout as the PyTorch module
    Ws: list of (size_pre, size_post) weight matrices
    returns ((spk_rec, mem_rec), spks) with
      spk_rec, mem_rec : (num_steps, batch, out_features)
      spks[i]          : (batch, num_steps, layer_sizes[i+1])
    matmul_dtype=jnp.bfloat16 can be used on v6e/v7x for 2x MXU throughput.
    """
    B, T, D0 = x.shape
    L = len(Ws)
    in_sizes = [int(W.shape[0]) for W in Ws]
    out_sizes = [int(W.shape[1]) for W in Ws]
    assert in_sizes[0] == D0

    def rup(n, m):
        return ((n + m - 1) // m) * m

    # ---- Padded, hardware-friendly shapes ------------------------------
    P = [rup(s, 128) for s in out_sizes]          # lane-dense feature dims
    B_pad = rup(max(B, 8), 8)
    TB = B_pad if B_pad <= 128 else 128           # batch block (megacore axis)
    B_pad = rup(B_pad, TB)
    TT = rup(max(1, time_block), 8)               # time steps per grid step
    T_pad = rup(T, TT)

    # ---- Zero-pad inputs / weights (exact: padded terms contribute 0.0) ---
    x_pad = jnp.zeros((B_pad, T_pad, D0), jnp.float32)
    x_pad = x_pad.at[:B, :T, :].set(x.astype(jnp.float32))

    Wp = []
    for i, W in enumerate(Ws):
        k_pad = D0 if i == 0 else P[i - 1]
        w = jnp.zeros((k_pad, P[i]), jnp.float32)
        w = w.at[:in_sizes[i], :out_sizes[i]].set(W.astype(jnp.float32))
        Wp.append(w.astype(matmul_dtype))

    # ---- Hoist the non-recurrent layer-0 matmul out of the time loop ------
    # One big (B*T, D0) x (D0, P0) MXU matmul instead of T skinny ones.
    cur0 = jax.lax.dot_general(
        x_pad.astype(matmul_dtype), Wp[0],
        dimension_numbers=(((2,), (0,)), ((), ())),
        preferred_element_type=jnp.float32)        # (B_pad, T_pad, P0), f32

    n_b = B_pad // TB
    n_t = T_pad // TT

    in_specs = [pl.BlockSpec((TB, TT, P[0]), lambda b, t: (b, t, 0))]
    for _ in range(1, L):
        # Weights: whole array resident in VMEM, single-buffered.
        in_specs.append(pl.BlockSpec(memory_space=pltpu.MemorySpace.VMEM))

    out_shapes = [jax.ShapeDtypeStruct((T_pad, B_pad, P[-1]), jnp.float32)]
    out_specs = [pl.BlockSpec((TT, TB, P[-1]), lambda b, t: (t, b, 0))]
    for i in range(L):
        out_shapes.append(jax.ShapeDtypeStruct((B_pad, T_pad, P[i]),
                                               jnp.float32))
        out_specs.append(pl.BlockSpec((TB, TT, P[i]), lambda b, t: (b, t, 0)))

    scratch = [pltpu.VMEM((TB, P[i]), jnp.float32) for i in range(L)]

    kernel = _make_spiking_mlp_kernel(L, TT, float(beta), float(threshold))

    outs = pl.pallas_call(
        kernel,
        out_shape=tuple(out_shapes),
        grid_spec=pltpu.PrefetchScalarGridSpec(
            num_scalar_prefetch=0,
            grid=(n_b, n_t),
            in_specs=in_specs,
            out_specs=tuple(out_specs),
            scratch_shapes=scratch,
        ),
        compiler_params=pltpu.CompilerParams(
            # batch blocks are independent (megacore), time carries state
            dimension_semantics=("parallel", "arbitrary"),
            vmem_limit_bytes=32 * 1024 * 1024,
        ),
    )(cur0, *Wp[1:])

    mem_rec = outs[0][:T, :B, :out_sizes[-1]]
    spks = [outs[1 + i][:B, :T, :out_sizes[i]] for i in range(L)]
    # spk_rec duplicates threshold(mem_rec) exactly -> derive it here instead
    # of writing a second (T, B, D) array from the kernel.
    spk_rec = (mem_rec > threshold).astype(jnp.float32)
    return (spk_rec, mem_rec), spks


def spiking_mlp_reference(x, Ws, *, beta=0.95, threshold=1.0):
    """Pure-JAX reference mirroring the PyTorch forward loop."""
    B, T, _ = x.shape
    mems = [jnp.zeros((B, W.shape[1]), jnp.float32) for W in Ws]
    spk_rec, mem_rec = [], []
    spks = [[] for _ in Ws]
    for t in range(T):
        spk = x[:, t].astype(jnp.float32)
        for i, W in enumerate(Ws):
            cur = spk @ W
            reset = (mems[i] > threshold).astype(jnp.float32)
            mem = beta * (1.0 - reset) * mems[i] + cur
            spk = (mem > threshold).astype(jnp.float32)
            mems[i] = mem
            spks[i].append(spk)
        spk_rec.append(spk)
        mem_rec.append(mems[-1])
    return (jnp.stack(spk_rec, 0), jnp.stack(mem_rec, 0)), \
           [jnp.stack(s, 1) for s in spks]


def init_weights(key, layer_sizes):
    """kaiming_normal_-style init matching the torch shapes (bias row dropped,
    since bias=False): std = sqrt(2 / (size_pre + 1))."""
    Ws = []
    for size_pre, size_post in zip(layer_sizes[:-1], layer_sizes[1:]):
        key, sub = jax.random.split(key)
        std = (2.0 / (size_pre + 1)) ** 0.5
        Ws.append(std * jax.random.normal(sub, (size_pre, size_post),
                                          dtype=jnp.float32))
    return Ws


if __name__ == "__main__":
    layer_sizes = [16, 32, 8]
    num_steps = 16
    batch = 4
    beta = 0.95

    key = jax.random.PRNGKey(0)
    k_x, k_w = jax.random.split(key)

    # Input spike trains: (batch, num_steps, in_features), values in {0, 1}.
    x = (jax.random.uniform(k_x, (batch, num_steps, layer_sizes[0]))
         < 0.5).astype(jnp.float32)
    Ws = init_weights(k_w, layer_sizes)

    fwd = jax.jit(functools.partial(spiking_mlp_forward, beta=beta))
    (spk_rec, mem_rec), spks = fwd(x, Ws)
    jax.block_until_ready(spk_rec)
    jax.block_until_ready(mem_rec)
    for s in spks:
        jax.block_until_ready(s)

    # Verify against the pure-JAX reference of the PyTorch forward.
    (spk_ref, mem_ref), spks_ref = spiking_mlp_reference(x, Ws, beta=beta)
    assert spk_rec.shape == (num_steps, batch, layer_sizes[-1])
    assert mem_rec.shape == (num_steps, batch, layer_sizes[-1])
    assert jnp.allclose(mem_rec, mem_ref, atol=1e-4, rtol=1e-4)
    assert jnp.allclose(spk_rec, spk_ref)
    for a, b, sz in zip(spks, spks_ref, layer_sizes[1:]):
        assert a.shape == (batch, num_steps, sz)
        assert jnp.allclose(a, b)

    print("KERNEL_OK")
</pallas_src>

<mosaic_0001>
module attributes {stable_mosaic.version = 11 : i64} {
  func.func @kernel(%arg0: i32, %arg1: i32, %arg2: memref<8x8x128xf32, #tpu.memory_space<vmem>>, %arg3: memref<128x128xf32, #tpu.memory_space<vmem>>, %arg4: memref<8x8x128xf32, #tpu.memory_space<vmem>>, %arg5: memref<8x8x128xf32, #tpu.memory_space<vmem>>, %arg6: memref<8x8x128xf32, #tpu.memory_space<vmem>>, %arg7: memref<8x128xf32, #tpu.memory_space<vmem>>, %arg8: memref<8x128xf32, #tpu.memory_space<vmem>>) attributes {dimension_semantics = [#tpu.dimension_semantics<parallel>, #tpu.dimension_semantics<arbitrary>], iteration_bounds = array<i64: 1, 2>, scalar_prefetch = 0 : i64, scratch_operands = 2 : i64, tpu.core_type = #tpu.core_type<tc>, window_params = [{transform_indices = @transform_0, window_bounds = array<i64: 8, 8, 128>}, {pipeline_mode = #tpu.pipeline_mode<synchronous>, transform_indices = @transform_1, window_bounds = array<i64: 128, 128>}, {transform_indices = @transform_2, window_bounds = array<i64: 8, 8, 128>}, {transform_indices = @transform_3, window_bounds = array<i64: 8, 8, 128>}, {transform_indices = @transform_4, window_bounds = array<i64: 8, 8, 128>}]} {
    %c0_i32 = arith.constant 0 : i32
    %0 = arith.cmpi eq, %arg1, %c0_i32 : i32
    %1 = arith.extui %0 : i1 to i32
    %c0_i32_0 = arith.constant 0 : i32
    %2 = arith.cmpi ne, %1, %c0_i32_0 : i32
    scf.if %2 {
      %cst_168 = arith.constant 0.000000e+00 : f32
      %271 = vector.broadcast %cst_168 : f32 to vector<8x128xf32>
      %c0_169 = arith.constant 0 : index
      %c0_170 = arith.constant 0 : index
      %272 = vector.load %arg7[%c0_169, %c0_170] : memref<8x128xf32, #tpu.memory_space<vmem>>, vector<8x128xf32>
      tpu.vector_store %arg7[%c0_169, %c0_170], %271 {strides = array<i32>} : memref<8x128xf32, #tpu.memory_space<vmem>>, vector<8x128xf32>,
      %cst_171 = arith.constant 0.000000e+00 : f32
      %273 = vector.broadcast %cst_171 : f32 to vector<8x128xf32>
      %c0_172 = arith.constant 0 : index
      %c0_173 = arith.constant 0 : index
      %274 = vector.load %arg8[%c0_172, %c0_173] : memref<8x128xf32, #tpu.memory_space<vmem>>, vector<8x128xf32>
      tpu.vector_store %arg8[%c0_172, %c0_173], %273 {strides = array<i32>} : memref<8x128xf32, #tpu.memory_space<vmem>>, vector<8x128xf32>,
    } else {
    }
    %c0 = arith.constant 0 : index
    %c0_1 = arith.constant 0 : index
    %3 = vector.load %arg7[%c0, %c0_1] : memref<8x128xf32, #tpu.memory_space<vmem>>, vector<8x128xf32>
    %c0_2 = arith.constant 0 : index
    %c0_3 = arith.constant 0 : index
    %4 = vector.load %arg8[%c0_2, %c0_3] : memref<8x128xf32, #tpu.memory_space<vmem>>, vector<8x128xf32>
    %c0_4 = arith.constant 0 : index
    %c0_5 = arith.constant 0 : index
    %c0_6 = arith.constant 0 : index
    %5 = vector.load %arg2[%c0_4, %c0_5, %c0_6] : memref<8x8x128xf32, #tpu.memory_space<vmem>>, vector<8x1x128xf32>
    %6 = vector.shape_cast %5 : vector<8x1x128xf32> to vector<8x128xf32>
    %cst = arith.constant 1.000000e+00 : f32
    %7 = vector.broadcast %cst : f32 to vector<8x128xf32>
    %8 = arith.cmpf ogt, %3, %7 : vector<8x128xf32>
    %cst_7 = arith.constant 0.949999988 : f32
    %9 = vector.broadcast %cst_7 : f32 to vector<8x128xf32>
    %10 = arith.mulf %9, %3 : vector<8x128xf32>
    %11 = arith.addf %10, %6 : vector<8x128xf32>
    %12 = arith.select %8, %6, %11 : vector<8x128xi1>, vector<8x128xf32>
    %cst_8 = arith.constant 1.000000e+00 : f32
    %13 = vector.broadcast %cst_8 : f32 to vector<8x128xf32>
    %14 = arith.cmpf ogt, %12, %13 : vector<8x128xf32>
    %15 = arith.extui %14 : vector<8x128xi1> to vector<8x128xi32>
    %16 = arith.sitofp %15 : vector<8x128xi32> to vector<8x128xf32>
    %c0_9 = arith.constant 0 : index
    %c0_10 = arith.constant 0 : index
    %c0_11 = arith.constant 0 : index
    %17 = vector.load %arg5[%c0_9, %c0_10, %c0_11] : memref<8x8x128xf32, #tpu.memory_space<vmem>>, vector<8x1x128xf32>
    %18 = vector.shape_cast %17 : vector<8x1x128xf32> to vector<8x128xf32>
    %19 = vector.shape_cast %16 : vector<8x128xf32> to vector<8x1x128xf32>
    tpu.vector_store %arg5[%c0_9, %c0_10, %c0_11], %19 {strides = array<i32>} : memref<8x8x128xf32, #tpu.memory_space<vmem>>, vector<8x1x128xf32>,
    %c0_12 = arith.constant 0 : index
    %c0_13 = arith.constant 0 : index
    %20 = vector.load %arg3[%c0_12, %c0_13] : memref<128x128xf32, #tpu.memory_space<vmem>>, vector<128x128xf32>
    %cst_14 = arith.constant dense<0.000000e+00> : vector<8x128xf32>
    %21 = tpu.matmul %16, %20, %cst_14 {dimension_numbers = #tpu.dot_dimension_numbers<[1], [0], [0], [1], [0, 0, 1, 1], [], []>} : vector<8x128xf32>, vector<128x128xf32>, vector<8x128xf32> -> vector<8x128xf32>
    %cst_15 = arith.constant 1.000000e+00 : f32
    %22 = vector.broadcast %cst_15 : f32 to vector<8x128xf32>
    %23 = arith.cmpf ogt, %4, %22 : vector<8x128xf32>
    %cst_16 = arith.constant 0.949999988 : f32
    %24 = vector.broadcast %cst_16 : f32 to vector<8x128xf32>
    %25 = arith.mulf %24, %4 : vector<8x128xf32>
    %26 = arith.addf %25, %21 : vector<8x128xf32>
    %27 = arith.select %23, %21, %26 : vector<8x128xi1>, vector<8x128xf32>
    %cst_17 = arith.constant 1.000000e+00 : f32
    %28 = vector.broadcast %cst_17 : f32 to vector<8x128xf32>
    %29 = arith.cmpf ogt, %27, %28 : vector<8x128xf32>
    %30 = arith.extui %29 : vector<8x128xi1> to vector<8x128xi32>
    %31 = arith.sitofp %30 : vector<8x128xi32> to vector<8x128xf32>
    %c0_18 = arith.constant 0 : index
    %c0_19 = arith.constant 0 : index
    %c0_20 = arith.constant 0 : index
    %32 = vector.load %arg6[%c0_18, %c0_19, %c0_20] : memref<8x8x128xf32, #tpu.memory_space<vmem>>, vector<8x1x128xf32>
    %33 = vector.shape_cast %32 : vector<8x1x128xf32> to vector<8x128xf32>
    %34 = vector.shape_cast %31 : vector<8x128xf32> to vector<8x1x128xf32>
    tpu.vector_store %arg6[%c0_18, %c0_19, %c0_20], %34 {strides = array<i32>} : memref<8x8x128xf32, #tpu.memory_space<vmem>>, vector<8x1x128xf32>,
    %c0_21 = arith.constant 0 : index
    %c0_22 = arith.constant 0 : index
    %c0_23 = arith.constant 0 : index
    %35 = vector.load %arg4[%c0_21, %c0_22, %c0_23] : memref<8x8x128xf32, #tpu.memory_space<vmem>>, vector<1x8x128xf32>
    %36 = vector.shape_cast %35 : vector<1x8x128xf32> to vector<8x128xf32>
    %37 = vector.shape_cast %27 : vector<8x128xf32> to vector<1x8x128xf32>
    tpu.vector_store %arg4[%c0_21, %c0_22, %c0_23], %37 {strides = array<i32>} : memref<8x8x128xf32, #tpu.memory_space<vmem>>, vector<1x8x128xf32>,
    %c0_24 = arith.constant 0 : index
    %c1 = arith.constant 1 : index
    %c0_25 = arith.constant 0 : index
    %38 = vector.load %arg2[%c0_24, %c1, %c0_25] : memref<8x8x128xf32, #tpu.memory_space<vmem>>, vector<8x1x128xf32>
    %39 = vector.shape_cast %38 : vector<8x1x128xf32> to vector<8x128xf32>
    %cst_26 = arith.constant 1.000000e+00 : f32
    %40 = vector.broadcast %cst_26 : f32 to vector<8x128xf32>
    %41 = arith.cmpf ogt, %12, %40 : vector<8x128xf32>
    %cst_27 = arith.constant 0.949999988 : f32
    %42 = vector.broadcast %cst_27 : f32 to vector<8x128xf32>
    %43 = arith.mulf %42, %12 : vector<8x128xf32>
    %44 = arith.addf %43, %39 : vector<8x128xf32>
    %45 = arith.select %41, %39, %44 : vector<8x128xi1>, vector<8x128xf32>
    %cst_28 = arith.constant 1.000000e+00 : f32
    %46 = vector.broadcast %cst_28 : f32 to vector<8x128xf32>
    %47 = arith.cmpf ogt, %45, %46 : vector<8x128xf32>
    %48 = arith.extui %47 : vector<8x128xi1> to vector<8x128xi32>
    %49 = arith.sitofp %48 : vector<8x128xi32> to vector<8x128xf32>
    %c0_29 = arith.constant 0 : index
    %c1_30 = arith.constant 1 : index
    %c0_31 = arith.constant 0 : index
    %50 = vector.load %arg5[%c0_29, %c1_30, %c0_31] : memref<8x8x128xf32, #tpu.memory_space<vmem>>, vector<8x1x128xf32>
    %51 = vector.shape_cast %50 : vector<8x1x128xf32> to vector<8x128xf32>
    %52 = vector.shape_cast %49 : vector<8x128xf32> to vector<8x1x128xf32>
    tpu.vector_store %arg5[%c0_29, %c1_30, %c0_31], %52 {strides = array<i32>} : memref<8x8x128xf32, #tpu.memory_space<vmem>>, vector<8x1x128xf32>,
    %c0_32 = arith.constant 0 : index
    %c0_33 = arith.constant 0 : index
    %53 = vector.load %arg3[%c0_32, %c0_33] : memref<128x128xf32, #tpu.memory_space<vmem>>, vector<128x128xf32>
    %cst_34 = arith.constant dense<0.000000e+00> : vector<8x128xf32>
    %54 = tpu.matmul %49, %53, %cst_34 {dimension_numbers = #tpu.dot_dimension_numbers<[1], [0], [0], [1], [0, 0, 1, 1], [], []>} : vector<8x128xf32>, vector<128x128xf32>, vector<8x128xf32> -> vector<8x128xf32>
    %cst_35 = arith.constant 1.000000e+00 : f32
    %55 = vector.broadcast %cst_35 : f32 to vector<8x128xf32>
    %56 = arith.cmpf ogt, %27, %55 : vector<8x128xf32>
    %cst_36 = arith.constant 0.949999988 : f32
    %57 = vector.broadcast %cst_36 : f32 to vector<8x128xf32>
    %58 = arith.mulf %57, %27 : vector<8x128xf32>
    %59 = arith.addf %58, %54 : vector<8x128xf32>
    %60 = arith.select %56, %54, %59 : vector<8x128xi1>, vector<8x128xf32>
    %cst_37 = arith.constant 1.000000e+00 : f32
    %61 = vector.broadcast %cst_37 : f32 to vector<8x128xf32>
    %62 = arith.cmpf ogt, %60, %61 : vector<8x128xf32>
    %63 = arith.extui %62 : vector<8x128xi1> to vector<8x128xi32>
    %64 = arith.sitofp %63 : vector<8x128xi32> to vector<8x128xf32>
    %c0_38 = arith.constant 0 : index
    %c1_39 = arith.constant 1 : index
    %c0_40 = arith.constant 0 : index
    %65 = vector.load %arg6[%c0_38, %c1_39, %c0_40] : memref<8x8x128xf32, #tpu.memory_space<vmem>>, vector<8x1x128xf32>
    %66 = vector.shape_cast %65 : vector<8x1x128xf32> to vector<8x128xf32>
    %67 = vector.shape_cast %64 : vector<8x128xf32> to vector<8x1x128xf32>
    tpu.vector_store %arg6[%c0_38, %c1_39, %c0_40], %67 {strides = array<i32>} : memref<8x8x128xf32, #tpu.memory_space<vmem>>, vector<8x1x128xf32>,
    %c1_41 = arith.constant 1 : index
    %c0_42 = arith.constant 0 : index
    %c0_43 = arith.constant 0 : index
    %68 = vector.load %arg4[%c1_41, %c0_42, %c0_43] : memref<8x8x128xf32, #tpu.memory_space<vmem>>, vector<1x8x128xf32>
    %69 = vector.shape_cast %68 : vector<1x8x128xf32> to vector<8x128xf32>
    %70 = vector.shape_cast %60 : vector<8x128xf32> to vector<1x8x128xf32>
    tpu.vector_store %arg4[%c1_41, %c0_42, %c0_43], %70 {strides = array<i32>} : memref<8x8x128xf32, #tpu.memory_space<vmem>>, vector<1x8x128xf32>,
    %c0_44 = arith.constant 0 : index
    %c2 = arith.constant 2 : index
    %c0_45 = arith.constant 0 : index
    %71 = vector.load %arg2[%c0_44, %c2, %c0_45] : memref<8x8x128xf32, #tpu.memory_space<vmem>>, vector<8x1x128xf32>
    %72 = vector.shape_cast %71 : vector<8x1x128xf32> to vector<8x128xf32>
    %cst_46 = arith.constant 1.000000e+00 : f32
    %73 = vector.broadcast %cst_46 : f32 to vector<8x128xf32>
    %74 = arith.cmpf ogt, %45, %73 : vector<8x128xf32>
    %cst_47 = arith.constant 0.949999988 : f32
    %75 = vector.broadcast %cst_47 : f32 to vector<8x128xf32>
    %76 = arith.mulf %75, %45 : vector<8x128xf32>
    %77 = arith.addf %76, %72 : vector<8x128xf32>
    %78 = arith.select %74, %72, %77 : vector<8x128xi1>, vector<8x128xf32>
    %cst_48 = arith.constant 1.000000e+00 : f32
    %79 = vector.broadcast %cst_48 : f32 to vector<8x128xf32>
    %80 = arith.cmpf ogt, %78, %79 : vector<8x128xf32>
    %81 = arith.extui %80 : vector<8x128xi1> to vector<8x128xi32>
    %82 = arith.sitofp %81 : vector<8x128xi32> to vector<8x128xf32>
    %c0_49 = arith.constant 0 : index
    %c2_50 = arith.constant 2 : index
    %c0_51 = arith.constant 0 : index
    %83 = vector.load %arg5[%c0_49, %c2_50, %c0_51] : memref<8x8x128xf32, #tpu.memory_space<vmem>>, vector<8x1x128xf32>
    %84 = vector.shape_cast %83 : vector<8x1x128xf32> to vector<8x128xf32>
    %85 = vector.shape_cast %82 : vector<8x128xf32> to vector<8x1x128xf32>
    tpu.vector_store %arg5[%c0_49, %c2_50, %c0_51], %85 {strides = array<i32>} : memref<8x8x128xf32, #tpu.memory_space<vmem>>, vector<8x1x128xf32>,
    %c0_52 = arith.constant 0 : index
    %c0_53 = arith.constant 0 : index
    %86 = vector.load %arg3[%c0_52, %c0_53] : memref<128x128xf32, #tpu.memory_space<vmem>>, vector<128x128xf32>
    %cst_54 = arith.constant dense<0.000000e+00> : vector<8x128xf32>
    %87 = tpu.matmul %82, %86, %cst_54 {dimension_numbers = #tpu.dot_dimension_numbers<[1], [0], [0], [1], [0, 0, 1, 1], [], []>} : vector<8x128xf32>, vector<128x128xf32>, vector<8x128xf32> -> vector<8x128xf32>
    %cst_55 = arith.constant 1.000000e+00 : f32
    %88 = vector.broadcast %cst_55 : f32 to vector<8x128xf32>
    %89 = arith.cmpf ogt, %60, %88 : vector<8x128xf32>
    %cst_56 = arith.constant 0.949999988 : f32
    %90 = vector.broadcast %cst_56 : f32 to vector<8x128xf32>
    %91 = arith.mulf %90, %60 : vector<8x128xf32>
    %92 = arith.addf %91, %87 : vector<8x128xf32>
    %93 = arith.select %89, %87, %92 : vector<8x128xi1>, vector<8x128xf32>
    %cst_57 = arith.constant 1.000000e+00 : f32
    %94 = vector.broadcast %cst_57 : f32 to vector<8x128xf32>
    %95 = arith.cmpf ogt, %93, %94 : vector<8x128xf32>
    %96 = arith.extui %95 : vector<8x128xi1> to vector<8x128xi32>
    %97 = arith.sitofp %96 : vector<8x128xi32> to vector<8x128xf32>
    %c0_58 = arith.constant 0 : index
    %c2_59 = arith.constant 2 : index
    %c0_60 = arith.constant 0 : index
    %98 = vector.load %arg6[%c0_58, %c2_59, %c0_60] : memref<8x8x128xf32, #tpu.memory_space<vmem>>, vector<8x1x128xf32>
    %99 = vector.shape_cast %98 : vector<8x1x128xf32> to vector<8x128xf32>
    %100 = vector.shape_cast %97 : vector<8x128xf32> to vector<8x1x128xf32>
    tpu.vector_store %arg6[%c0_58, %c2_59, %c0_60], %100 {strides = array<i32>} : memref<8x8x128xf32, #tpu.memory_space<vmem>>, vector<8x1x128xf32>,
    %c2_61 = arith.constant 2 : index
    %c0_62 = arith.constant 0 : index
    %c0_63 = arith.constant 0 : index
    %101 = vector.load %arg4[%c2_61, %c0_62, %c0_63] : memref<8x8x128xf32, #tpu.memory_space<vmem>>, vector<1x8x128xf32>
    %102 = vector.shape_cast %101 : vector<1x8x128xf32> to vector<8x128xf32>
    %103 = vector.shape_cast %93 : vector<8x128xf32> to vector<1x8x128xf32>
    tpu.vector_store %arg4[%c2_61, %c0_62, %c0_63], %103 {strides = array<i32>} : memref<8x8x128xf32, #tpu.memory_space<vmem>>, vector<1x8x128xf32>,
    %c0_64 = arith.constant 0 : index
    %c3 = arith.constant 3 : index
    %c0_65 = arith.constant 0 : index
    %104 = vector.load %arg2[%c0_64, %c3, %c0_65] : memref<8x8x128xf32, #tpu.memory_space<vmem>>, vector<8x1x128xf32>
    %105 = vector.shape_cast %104 : vector<8x1x128xf32> to vector<8x128xf32>
    %cst_66 = arith.constant 1.000000e+00 : f32
    %106 = vector.broadcast %cst_66 : f32 to vector<8x128xf32>
    %107 = arith.cmpf ogt, %78, %106 : vector<8x128xf32>
    %cst_67 = arith.constant 0.949999988 : f32
    %108 = vector.broadcast %cst_67 : f32 to vector<8x128xf32>
    %109 = arith.mulf %108, %78 : vector<8x128xf32>
    %110 = arith.addf %109, %105 : vector<8x128xf32>
    %111 = arith.select %107, %105, %110 : vector<8x128xi1>, vector<8x128xf32>
    %cst_68 = arith.constant 1.000000e+00 : f32
    %112 = vector.broadcast %cst_68 : f32 to vector<8x128xf32>
    %113 = arith.cmpf ogt, %111, %112 : vector<8x128xf32>
    %114 = arith.extui %113 : vector<8x128xi1> to vector<8x128xi32>
    %115 = arith.sitofp %114 : vector<8x128xi32> to vector<8x128xf32>
    %c0_69 = arith.constant 0 : index
    %c3_70 = arith.constant 3 : index
    %c0_71 = arith.constant 0 : index
    %116 = vector.load %arg5[%c0_69, %c3_70, %c0_71] : memref<8x8x128xf32, #tpu.memory_space<vmem>>, vector<8x1x128xf32>
    %117 = vector.shape_cast %116 : vector<8x1x128xf32> to vector<8x128xf32>
    %118 = vector.shape_cast %115 : vector<8x128xf32> to vector<8x1x128xf32>
    tpu.vector_store %arg5[%c0_69, %c3_70, %c0_71], %118 {strides = array<i32>} : memref<8x8x128xf32, #tpu.memory_space<vmem>>, vector<8x1x128xf32>,
    %c0_72 = arith.constant 0 : index
    %c0_73 = arith.constant 0 : index
    %119 = vector.load %arg3[%c0_72, %c0_73] : memref<128x128xf32, #tpu.memory_space<vmem>>, vector<128x128xf32>
    %cst_74 = arith.constant dense<0.000000e+00> : vector<8x128xf32>
    %120 = tpu.matmul %115, %119, %cst_74 {dimension_numbers = #tpu.dot_dimension_numbers<[1], [0], [0], [1], [0, 0, 1, 1], [], []>} : vector<8x128xf32>, vector<128x128xf32>, vector<8x128xf32> -> vector<8x128xf32>
    %cst_75 = arith.constant 1.000000e+00 : f32
    %121 = vector.broadcast %cst_75 : f32 to vector<8x128xf32>
    %122 = arith.cmpf ogt, %93, %121 : vector<8x128xf32>
    %cst_76 = arith.constant 0.949999988 : f32
    %123 = vector.broadcast %cst_76 : f32 to vector<8x128xf32>
    %124 = arith.mulf %123, %93 : vector<8x128xf32>
    %125 = arith.addf %124, %120 : vector<8x128xf32>
    %126 = arith.select %122, %120, %125 : vector<8x128xi1>, vector<8x128xf32>
    %cst_77 = arith.constant 1.000000e+00 : f32
    %127 = vector.broadcast %cst_77 : f32 to vector<8x128xf32>
    %128 = arith.cmpf ogt, %126, %127 : vector<8x128xf32>
    %129 = arith.extui %128 : vector<8x128xi1> to vector<8x128xi32>
    %130 = arith.sitofp %129 : vector<8x128xi32> to vector<8x128xf32>
    %c0_78 = arith.constant 0 : index
    %c3_79 = arith.constant 3 : index
    %c0_80 = arith.constant 0 : index
    %131 = vector.load %arg6[%c0_78, %c3_79, %c0_80] : memref<8x8x128xf32, #tpu.memory_space<vmem>>, vector<8x1x128xf32>
    %132 = vector.shape_cast %131 : vector<8x1x128xf32> to vector<8x128xf32>
    %133 = vector.shape_cast %130 : vector<8x128xf32> to vector<8x1x128xf32>
    tpu.vector_store %arg6[%c0_78, %c3_79, %c0_80], %133 {strides = array<i32>} : memref<8x8x128xf32, #tpu.memory_space<vmem>>, vector<8x1x128xf32>,
    %c3_81 = arith.constant 3 : index
    %c0_82 = arith.constant 0 : index
    %c0_83 = arith.constant 0 : index
    %134 = vector.load %arg4[%c3_81, %c0_82, %c0_83] : memref<8x8x128xf32, #tpu.memory_space<vmem>>, vector<1x8x128xf32>
    %135 = vector.shape_cast %134 : vector<1x8x128xf32> to vector<8x128xf32>
    %136 = vector.shape_cast %126 : vector<8x128xf32> to vector<1x8x128xf32>
    tpu.vector_store %arg4[%c3_81, %c0_82, %c0_83], %136 {strides = array<i32>} : memref<8x8x128xf32, #tpu.memory_space<vmem>>, vector<1x8x128xf32>,
    %c0_84 = arith.constant 0 : index
    %c4 = arith.constant 4 : index
    %c0_85 = arith.constant 0 : index
    %137 = vector.load %arg2[%c0_84, %c4, %c0_85] : memref<8x8x128xf32, #tpu.memory_space<vmem>>, vector<8x1x128xf32>
    %138 = vector.shape_cast %137 : vector<8x1x128xf32> to vector<8x128xf32>
    %cst_86 = arith.constant 1.000000e+00 : f32
    %139 = vector.broadcast %cst_86 : f32 to vector<8x128xf32>
    %140 = arith.cmpf ogt, %111, %139 : vector<8x128xf32>
    %cst_87 = arith.constant 0.949999988 : f32
    %141 = vector.broadcast %cst_87 : f32 to vector<8x128xf32>
    %142 = arith.mulf %141, %111 : vector<8x128xf32>
    %143 = arith.addf %142, %138 : vector<8x128xf32>
    %144 = arith.select %140, %138, %143 : vector<8x128xi1>, vector<8x128xf32>
    %cst_88 = arith.constant 1.000000e+00 : f32
    %145 = vector.broadcast %cst_88 : f32 to vector<8x128xf32>
    %146 = arith.cmpf ogt, %144, %145 : vector<8x128xf32>
    %147 = arith.extui %146 : vector<8x128xi1> to vector<8x128xi32>
    %148 = arith.sitofp %147 : vector<8x128xi32> to vector<8x128xf32>
    %c0_89 = arith.constant 0 : index
    %c4_90 = arith.constant 4 : index
    %c0_91 = arith.constant 0 : index
    %149 = vector.load %arg5[%c0_89, %c4_90, %c0_91] : memref<8x8x128xf32, #tpu.memory_space<vmem>>, vector<8x1x128xf32>
    %150 = vector.shape_cast %149 : vector<8x1x128xf32> to vector<8x128xf32>
    %151 = vector.shape_cast %148 : vector<8x128xf32> to vector<8x1x128xf32>
    tpu.vector_store %arg5[%c0_89, %c4_90, %c0_91], %151 {strides = array<i32>} : memref<8x8x128xf32, #tpu.memory_space<vmem>>, vector<8x1x128xf32>,
    %c0_92 = arith.constant 0 : index
    %c0_93 = arith.constant 0 : index
    %152 = vector.load %arg3[%c0_92, %c0_93] : memref<128x128xf32, #tpu.memory_space<vmem>>, vector<128x128xf32>
    %cst_94 = arith.constant dense<0.000000e+00> : vector<8x128xf32>
    %153 = tpu.matmul %148, %152, %cst_94 {dimension_numbers = #tpu.dot_dimension_numbers<[1], [0], [0], [1], [0, 0, 1, 1], [], []>} : vector<8x128xf32>, vector<128x128xf32>, vector<8x128xf32> -> vector<8x128xf32>
    %cst_95 = arith.constant 1.000000e+00 : f32
    %154 = vector.broadcast %cst_95 : f32 to vector<8x128xf32>
    %155 = arith.cmpf ogt, %126, %154 : vector<8x128xf32>
    %cst_96 = arith.constant 0.949999988 : f32
    %156 = vector.broadcast %cst_96 : f32 to vector<8x128xf32>
    %157 = arith.mulf %156, %126 : vector<8x128xf32>
    %158 = arith.addf %157, %153 : vector<8x128xf32>
    %159 = arith.select %155, %153, %158 : vector<8x128xi1>, vector<8x128xf32>
    %cst_97 = arith.constant 1.000000e+00 : f32
    %160 = vector.broadcast %cst_97 : f32 to vector<8x128xf32>
    %161 = arith.cmpf ogt, %159, %160 : vector<8x128xf32>
    %162 = arith.extui %161 : vector<8x128xi1> to vector<8x128xi32>
    %163 = arith.sitofp %162 : vector<8x128xi32> to vector<8x128xf32>
    %c0_98 = arith.constant 0 : index
    %c4_99 = arith.constant 4 : index
    %c0_100 = arith.constant 0 : index
    %164 = vector.load %arg6[%c0_98, %c4_99, %c0_100] : memref<8x8x128xf32, #tpu.memory_space<vmem>>, vector<8x1x128xf32>
    %165 = vector.shape_cast %164 : vector<8x1x128xf32> to vector<8x128xf32>
    %166 = vector.shape_cast %163 : vector<8x128xf32> to vector<8x1x128xf32>
    tpu.vector_store %arg6[%c0_98, %c4_99, %c0_100], %166 {strides = array<i32>} : memref<8x8x128xf32, #tpu.memory_space<vmem>>, vector<8x1x128xf32>,
    %c4_101 = arith.constant 4 : index
    %c0_102 = arith.constant 0 : index
    %c0_103 = arith.constant 0 : index
    %167 = vector.load %arg4[%c4_101, %c0_102, %c0_103] : memref<8x8x128xf32, #tpu.memory_space<vmem>>, vector<1x8x128xf32>
    %168 = vector.shape_cast %167 : vector<1x8x128xf32> to vector<8x128xf32>
    %169 = vector.shape_cast %159 : vector<8x128xf32> to vector<1x8x128xf32>
    tpu.vector_store %arg4[%c4_101, %c0_102, %c0_103], %169 {strides = array<i32>} : memref<8x8x128xf32, #tpu.memory_space<vmem>>, vector<1x8x128xf32>,
    %c0_104 = arith.constant 0 : index
    %c5 = arith.constant 5 : index
    %c0_105 = arith.constant 0 : index
    %170 = vector.load %arg2[%c0_104, %c5, %c0_105] : memref<8x8x128xf32, #tpu.memory_space<vmem>>, vector<8x1x128xf32>
    %171 = vector.shape_cast %170 : vector<8x1x128xf32> to vector<8x128xf32>
    %cst_106 = arith.constant 1.000000e+00 : f32
    %172 = vector.broadcast %cst_106 : f32 to vector<8x128xf32>
    %173 = arith.cmpf ogt, %144, %172 : vector<8x128xf32>
    %cst_107 = arith.constant 0.949999988 : f32
    %174 = vector.broadcast %cst_107 : f32 to vector<8x128xf32>
    %175 = arith.mulf %174, %144 : vector<8x128xf32>
    %176 = arith.addf %175, %171 : vector<8x128xf32>
    %177 = arith.select %173, %171, %176 : vector<8x128xi1>, vector<8x128xf32>
    %cst_108 = arith.constant 1.000000e+00 : f32
    %178 = vector.broadcast %cst_108 : f32 to vector<8x128xf32>
    %179 = arith.cmpf ogt, %177, %178 : vector<8x128xf32>
    %180 = arith.extui %179 : vector<8x128xi1> to vector<8x128xi32>
    %181 = arith.sitofp %180 : vector<8x128xi32> to vector<8x128xf32>
    %c0_109 = arith.constant 0 : index
    %c5_110 = arith.constant 5 : index
    %c0_111 = arith.constant 0 : index
    %182 = vector.load %arg5[%c0_109, %c5_110, %c0_111] : memref<8x8x128xf32, #tpu.memory_space<vmem>>, vector<8x1x128xf32>
    %183 = vector.shape_cast %182 : vector<8x1x128xf32> to vector<8x128xf32>
    %184 = vector.shape_cast %181 : vector<8x128xf32> to vector<8x1x128xf32>
    tpu.vector_store %arg5[%c0_109, %c5_110, %c0_111], %184 {strides = array<i32>} : memref<8x8x128xf32, #tpu.memory_space<vmem>>, vector<8x1x128xf32>,
    %c0_112 = arith.constant 0 : index
    %c0_113 = arith.constant 0 : index
    %185 = vector.load %arg3[%c0_112, %c0_113] : memref<128x128xf32, #tpu.memory_space<vmem>>, vector<128x128xf32>
    %cst_114 = arith.constant dense<0.000000e+00> : vector<8x128xf32>
    %186 = tpu.matmul %181, %185, %cst_114 {dimension_numbers = #tpu.dot_dimension_numbers<[1], [0], [0], [1], [0, 0, 1, 1], [], []>} : vector<8x128xf32>, vector<128x128xf32>, vector<8x128xf32> -> vector<8x128xf32>
    %cst_115 = arith.constant 1.000000e+00 : f32
    %187 = vector.broadcast %cst_115 : f32 to vector<8x128xf32>
    %188 = arith.cmpf ogt, %159, %187 : vector<8x128xf32>
    %cst_116 = arith.constant 0.949999988 : f32
    %189 = vector.broadcast %cst_116 : f32 to vector<8x128xf32>
    %190 = arith.mulf %189, %159 : vector<8x128xf32>
    %191 = arith.addf %190, %186 : vector<8x128xf32>
    %192 = arith.select %188, %186, %191 : vector<8x128xi1>, vector<8x128xf32>
    %cst_117 = arith.constant 1.000000e+00 : f32
    %193 = vector.broadcast %cst_117 : f32 to vector<8x128xf32>
    %194 = arith.cmpf ogt, %192, %193 : vector<8x128xf32>
    %195 = arith.extui %194 : vector<8x128xi1> to vector<8x128xi32>
    %196 = arith.sitofp %195 : vector<8x128xi32> to vector<8x128xf32>
    %c0_118 = arith.constant 0 : index
    %c5_119 = arith.constant 5 : index
    %c0_120 = arith.constant 0 : index
    %197 = vector.load %arg6[%c0_118, %c5_119, %c0_120] : memref<8x8x128xf32, #tpu.memory_space<vmem>>, vector<8x1x128xf32>
    %198 = vector.shape_cast %197 : vector<8x1x128xf32> to vector<8x128xf32>
    %199 = vector.shape_cast %196 : vector<8x128xf32> to vector<8x1x128xf32>
    tpu.vector_store %arg6[%c0_118, %c5_119, %c0_120], %199 {strides = array<i32>} : memref<8x8x128xf32, #tpu.memory_space<vmem>>, vector<8x1x128xf32>,
    %c5_121 = arith.constant 5 : index
    %c0_122 = arith.constant 0 : index
    %c0_123 = arith.constant 0 : index
    %200 = vector.load %arg4[%c5_121, %c0_122, %c0_123] : memref<8x8x128xf32, #tpu.memory_space<vmem>>, vector<1x8x128xf32>
    %201 = vector.shape_cast %200 : vector<1x8x128xf32> to vector<8x128xf32>
    %202 = vector.shape_cast %192 : vector<8x128xf32> to vector<1x8x128xf32>
    tpu.vector_store %arg4[%c5_121, %c0_122, %c0_123], %202 {strides = array<i32>} : memref<8x8x128xf32, #tpu.memory_space<vmem>>, vector<1x8x128xf32>,
    %c0_124 = arith.constant 0 : index
    %c6 = arith.constant 6 : index
    %c0_125 = arith.constant 0 : index
    %203 = vector.load %arg2[%c0_124, %c6, %c0_125] : memref<8x8x128xf32, #tpu.memory_space<vmem>>, vector<8x1x128xf32>
    %204 = vector.shape_cast %203 : vector<8x1x128xf32> to vector<8x128xf32>
    %cst_126 = arith.constant 1.000000e+00 : f32
    %205 = vector.broadcast %cst_126 : f32 to vector<8x128xf32>
    %206 = arith.cmpf ogt, %177, %205 : vector<8x128xf32>
    %cst_127 = arith.constant 0.949999988 : f32
    %207 = vector.broadcast %cst_127 : f32 to vector<8x128xf32>
    %208 = arith.mulf %207, %177 : vector<8x128xf32>
    %209 = arith.addf %208, %204 : vector<8x128xf32>
    %210 = arith.select %206, %204, %209 : vector<8x128xi1>, vector<8x128xf32>
    %cst_128 = arith.constant 1.000000e+00 : f32
    %211 = vector.broadcast %cst_128 : f32 to vector<8x128xf32>
    %212 = arith.cmpf ogt, %210, %211 : vector<8x128xf32>
    %213 = arith.extui %212 : vector<8x128xi1> to vector<8x128xi32>
    %214 = arith.sitofp %213 : vector<8x128xi32> to vector<8x128xf32>
    %c0_129 = arith.constant 0 : index
    %c6_130 = arith.constant 6 : index
    %c0_131 = arith.constant 0 : index
    %215 = vector.load %arg5[%c0_129, %c6_130, %c0_131] : memref<8x8x128xf32, #tpu.memory_space<vmem>>, vector<8x1x128xf32>
    %216 = vector.shape_cast %215 : vector<8x1x128xf32> to vector<8x128xf32>
    %217 = vector.shape_cast %214 : vector<8x128xf32> to vector<8x1x128xf32>
    tpu.vector_store %arg5[%c0_129, %c6_130, %c0_131], %217 {strides = array<i32>} : memref<8x8x128xf32, #tpu.memory_space<vmem>>, vector<8x1x128xf32>,
    %c0_132 = arith.constant 0 : index
    %c0_133 = arith.constant 0 : index
    %218 = vector.load %arg3[%c0_132, %c0_133] : memref<128x128xf32, #tpu.memory_space<vmem>>, vector<128x128xf32>
    %cst_134 = arith.constant dense<0.000000e+00> : vector<8x128xf32>
    %219 = tpu.matmul %214, %218, %cst_134 {dimension_numbers = #tpu.dot_dimension_numbers<[1], [0], [0], [1], [0, 0, 1, 1], [], []>} : vector<8x128xf32>, vector<128x128xf32>, vector<8x128xf32> -> vector<8x128xf32>
    %cst_135 = arith.constant 1.000000e+00 : f32
    %220 = vector.broadcast %cst_135 : f32 to vector<8x128xf32>
    %221 = arith.cmpf ogt, %192, %220 : vector<8x128xf32>
    %cst_136 = arith.constant 0.949999988 : f32
    %222 = vector.broadcast %cst_136 : f32 to vector<8x128xf32>
    %223 = arith.mulf %222, %192 : vector<8x128xf32>
    %224 = arith.addf %223, %219 : vector<8x128xf32>
    %225 = arith.select %221, %219, %224 : vector<8x128xi1>, vector<8x128xf32>
    %cst_137 = arith.constant 1.000000e+00 : f32
    %226 = vector.broadcast %cst_137 : f32 to vector<8x128xf32>
    %227 = arith.cmpf ogt, %225, %226 : vector<8x128xf32>
    %228 = arith.extui %227 : vector<8x128xi1> to vector<8x128xi32>
    %229 = arith.sitofp %228 : vector<8x128xi32> to vector<8x128xf32>
    %c0_138 = arith.constant 0 : index
    %c6_139 = arith.constant 6 : index
    %c0_140 = arith.constant 0 : index
    %230 = vector.load %arg6[%c0_138, %c6_139, %c0_140] : memref<8x8x128xf32, #tpu.memory_space<vmem>>, vector<8x1x128xf32>
    %231 = vector.shape_cast %230 : vector<8x1x128xf32> to vector<8x128xf32>
    %232 = vector.shape_cast %229 : vector<8x128xf32> to vector<8x1x128xf32>
    tpu.vector_store %arg6[%c0_138, %c6_139, %c0_140], %232 {strides = array<i32>} : memref<8x8x128xf32, #tpu.memory_space<vmem>>, vector<8x1x128xf32>,
    %c6_141 = arith.constant 6 : index
    %c0_142 = arith.constant 0 : index
    %c0_143 = arith.constant 0 : index
    %233 = vector.load %arg4[%c6_141, %c0_142, %c0_143] : memref<8x8x128xf32, #tpu.memory_space<vmem>>, vector<1x8x128xf32>
    %234 = vector.shape_cast %233 : vector<1x8x128xf32> to vector<8x128xf32>
    %235 = vector.shape_cast %225 : vector<8x128xf32> to vector<1x8x128xf32>
    tpu.vector_store %arg4[%c6_141, %c0_142, %c0_143], %235 {strides = array<i32>} : memref<8x8x128xf32, #tpu.memory_space<vmem>>, vector<1x8x128xf32>,
    %c0_144 = arith.constant 0 : index
    %c7 = arith.constant 7 : index
    %c0_145 = arith.constant 0 : index
    %236 = vector.load %arg2[%c0_144, %c7, %c0_145] : memref<8x8x128xf32, #tpu.memory_space<vmem>>, vector<8x1x128xf32>
    %237 = vector.shape_cast %236 : vector<8x1x128xf32> to vector<8x128xf32>
    %cst_146 = arith.constant 1.000000e+00 : f32
    %238 = vector.broadcast %cst_146 : f32 to vector<8x128xf32>
    %239 = arith.cmpf ogt, %210, %238 : vector<8x128xf32>
    %cst_147 = arith.constant 0.949999988 : f32
    %240 = vector.broadcast %cst_147 : f32 to vector<8x128xf32>
    %241 = arith.mulf %240, %210 : vector<8x128xf32>
    %242 = arith.addf %241, %237 : vector<8x128xf32>
    %243 = arith.select %239, %237, %242 : vector<8x128xi1>, vector<8x128xf32>
    %cst_148 = arith.constant 1.000000e+00 : f32
    %244 = vector.broadcast %cst_148 : f32 to vector<8x128xf32>
    %245 = arith.cmpf ogt, %243, %244 : vector<8x128xf32>
    %246 = arith.extui %245 : vector<8x128xi1> to vector<8x128xi32>
    %247 = arith.sitofp %246 : vector<8x128xi32> to vector<8x128xf32>
    %c0_149 = arith.constant 0 : index
    %c7_150 = arith.constant 7 : index
    %c0_151 = arith.constant 0 : index
    %248 = vector.load %arg5[%c0_149, %c7_150, %c0_151] : memref<8x8x128xf32, #tpu.memory_space<vmem>>, vector<8x1x128xf32>
    %249 = vector.shape_cast %248 : vector<8x1x128xf32> to vector<8x128xf32>
    %250 = vector.shape_cast %247 : vector<8x128xf32> to vector<8x1x128xf32>
    tpu.vector_store %arg5[%c0_149, %c7_150, %c0_151], %250 {strides = array<i32>} : memref<8x8x128xf32, #tpu.memory_space<vmem>>, vector<8x1x128xf32>,
    %c0_152 = arith.constant 0 : index
    %c0_153 = arith.constant 0 : index
    %251 = vector.load %arg3[%c0_152, %c0_153] : memref<128x128xf32, #tpu.memory_space<vmem>>, vector<128x128xf32>
    %cst_154 = arith.constant dense<0.000000e+00> : vector<8x128xf32>
    %252 = tpu.matmul %247, %251, %cst_154 {dimension_numbers = #tpu.dot_dimension_numbers<[1], [0], [0], [1], [0, 0, 1, 1], [], []>} : vector<8x128xf32>, vector<128x128xf32>, vector<8x128xf32> -> vector<8x128xf32>
    %cst_155 = arith.constant 1.000000e+00 : f32
    %253 = vector.broadcast %cst_155 : f32 to vector<8x128xf32>
    %254 = arith.cmpf ogt, %225, %253 : vector<8x128xf32>
    %cst_156 = arith.constant 0.949999988 : f32
    %255 = vector.broadcast %cst_156 : f32 to vector<8x128xf32>
    %256 = arith.mulf %255, %225 : vector<8x128xf32>
    %257 = arith.addf %256, %252 : vector<8x128xf32>
    %258 = arith.select %254, %252, %257 : vector<8x128xi1>, vector<8x128xf32>
    %cst_157 = arith.constant 1.000000e+00 : f32
    %259 = vector.broadcast %cst_157 : f32 to vector<8x128xf32>
    %260 = arith.cmpf ogt, %258, %259 : vector<8x128xf32>
    %261 = arith.extui %260 : vector<8x128xi1> to vector<8x128xi32>
    %262 = arith.sitofp %261 : vector<8x128xi32> to vector<8x128xf32>
    %c0_158 = arith.constant 0 : index
    %c7_159 = arith.constant 7 : index
    %c0_160 = arith.constant 0 : index
    %263 = vector.load %arg6[%c0_158, %c7_159, %c0_160] : memref<8x8x128xf32, #tpu.memory_space<vmem>>, vector<8x1x128xf32>
    %264 = vector.shape_cast %263 : vector<8x1x128xf32> to vector<8x128xf32>
    %265 = vector.shape_cast %262 : vector<8x128xf32> to vector<8x1x128xf32>
    tpu.vector_store %arg6[%c0_158, %c7_159, %c0_160], %265 {strides = array<i32>} : memref<8x8x128xf32, #tpu.memory_space<vmem>>, vector<8x1x128xf32>,
    %c7_161 = arith.constant 7 : index
    %c0_162 = arith.constant 0 : index
    %c0_163 = arith.constant 0 : index
    %266 = vector.load %arg4[%c7_161, %c0_162, %c0_163] : memref<8x8x128xf32, #tpu.memory_space<vmem>>, vector<1x8x128xf32>
    %267 = vector.shape_cast %266 : vector<1x8x128xf32> to vector<8x128xf32>
    %268 = vector.shape_cast %258 : vector<8x128xf32> to vector<1x8x128xf32>
    tpu.vector_store %arg4[%c7_161, %c0_162, %c0_163], %268 {strides = array<i32>} : memref<8x8x128xf32, #tpu.memory_space<vmem>>, vector<1x8x128xf32>,
    %c0_164 = arith.constant 0 : index
    %c0_165 = arith.constant 0 : index
    %269 = vector.load %arg7[%c0_164, %c0_165] : memref<8x128xf32, #tpu.memory_space<vmem>>, vector<8x128xf32>
    tpu.vector_store %arg7[%c0_164, %c0_165], %243 {strides = array<i32>} : memref<8x128xf32, #tpu.memory_space<vmem>>, vector<8x128xf32>,
    %c0_166 = arith.constant 0 : index
    %c0_167 = arith.constant 0 : index
    %270 = vector.load %arg8[%c0_166, %c0_167] : memref<8x128xf32, #tpu.memory_space<vmem>>, vector<8x128xf32>
    tpu.vector_store %arg8[%c0_166, %c0_167], %258 {strides = array<i32>} : memref<8x128xf32, #tpu.memory_space<vmem>>, vector<8x128xf32>,
    return
  }
  func.func @transform_0(%arg0: i32, %arg1: i32) -> (i32, i32, i32) {
    %c0_i32 = arith.constant 0 : i32
    %c0_i32_0 = arith.constant 0 : i32
    return %arg0, %arg1, %c0_i32 : i32, i32, i32
  }
  func.func @transform_1(%arg0: i32, %arg1: i32) -> (i32, i32) {
    %c0_i32 = arith.constant 0 : i32
    %c0_i32_0 = arith.constant 0 : i32
    %c0_i32_1 = arith.constant 0 : i32
    return %c0_i32, %c0_i32_0 : i32, i32
  }
  func.func @transform_2(%arg0: i32, %arg1: i32) -> (i32, i32, i32) {
    %c0_i32 = arith.constant 0 : i32
    %c0_i32_0 = arith.constant 0 : i32
    return %arg1, %arg0, %c0_i32 : i32, i32, i32
  }
  func.func @transform_3(%arg0: i32, %arg1: i32) -> (i32, i32, i32) {
    %c0_i32 = arith.constant 0 : i32
    %c0_i32_0 = arith.constant 0 : i32
    return %arg0, %arg1, %c0_i32 : i32, i32, i32
  }
  func.func @transform_4(%arg0: i32, %arg1: i32) -> (i32, i32, i32) {
    %c0_i32 = arith.constant 0 : i32
    %c0_i32_0 = arith.constant 0 : i32
    return %arg0, %arg1, %c0_i32 : i32, i32, i32
  }
}

</mosaic_0001>

<llo_original>
// kernel: spiking_mlp_forward.1
$region0: #{spiking_mlp_forward.1}
  #allocation0 [shape = 'u32[]', space=smem, size = 0x4, offset = 0x4, fixed_abs, tag = 'smem constant byte address 0x4 - core index']
  #allocation1 [shape = 'u32[144,128]{1,0:T(1,128)}', space=vmem, size = 0x12000, scoped, tag = 'internal scratch']
  #allocation2 [shape = 'f32[8,128]{1,0:T(8,128)}', space=vmem, size = 0x1000, scoped, tag = 'scratch operand']
  #allocation3 [shape = 'f32[8,128]{1,0:T(8,128)}', space=vmem, size = 0x1000, scoped, tag = 'scratch operand']
  %s0 = inlined_call_operand.vmem [shape: f32[8,16,128], index: 0, kind: input, shape index: {}]
  %s1 = inlined_call_operand.vmem [shape: f32[128,128], index: 1, kind: input, shape index: {}]
  %s2 = inlined_call_operand.vmem [shape: f32[16,8,128], index: 2, kind: output, shape index: {0}]
  %s3 = inlined_call_operand.vmem [shape: f32[8,16,128], index: 3, kind: output, shape index: {1}]
  %s4 = inlined_call_operand.vmem [shape: f32[8,16,128], index: 4, kind: output, shape index: {2}]
  %5 = xla_tuple %s2, %s3, %s4
  %s6 = sld [smem:[#allocation0]]
  $region167: #{spiking_mlp_forward.1} parent=0
    _
  %s8 = ssub.s32 1, %s6
  %s9 = scalar_select 0, %s8, %s6
  $region1: #{spiking_mlp_forward.1} parent=0
    #allocation4 [shape = 'u8[65536]{0}', space=vmem, size = 0x10000, scoped, tag = 'input window, operand 0']
    #allocation5 [shape = 'u8[65536]{0}', space=vmem, size = 0x10000, scoped, tag = 'output window, operand 1']
    #allocation6 [shape = 'u8[65536]{0}', space=vmem, size = 0x10000, scoped, tag = 'output window, operand 2']
    loop: start=0, step=1, limit=4
    $region2: #{spiking_mlp_forward.1} parent=1 // loop_pre_header
      _
    $region3: #{spiking_mlp_forward.1} parent=1 // loop_header
      %s11 = sphi 0, %s15
      %p12 = scmp.ge.s32.totalorder %s11, 4
      %s18 = sphi 0, %s30
      %s19 = sphi 0, %s26
      %s20 = sphi 0, %s18
      %s21 = sphi 0, %s19
      %s22 = sphi 0, %s20
      %s23 = sphi 0, %s21
      %s35 = sphi 0, %s37
      %s38 = sphi 0, %s35
      %s39 = sphi 0, %s38
      %s55 = sphi 0, %s39
      %s59 = sphi 0, %s59
      %s61 = sphi 0, %s59
      %s62 = sphi 0, %s61
      %s76 = sphi 0, %s62
      %s84 = sphi 0, %s86
      %s87 = sphi 0, %s84
      %s88 = sphi 0, %s87
      %s104 = sphi 0, %s88
      %s112 = sphi 0, %s114
      %s115 = sphi 0, %s112
      %s116 = sphi 0, %s115
      %s132 = sphi 0, %s116
      %s140 = sphi 0, %s142
      %s143 = sphi 0, %s140
      %s144 = sphi 0, %s143
      %s160 = sphi 0, %s144
    $region4: #{spiking_mlp_forward.1} parent=1 // loop_header_branch
      %14 = sbr.rel (%p12) target = $region8
    $region5: #{spiking_mlp_forward.1} parent=1 // loop_body
      %s16 = ssub.s32 %s11, 1
      %s17 = ssub.s32 %s11, 2
      %s24 = sadd.s32 1, %s19
      %p25 = scmp.ge.s32.totalorder %s24, 2
      %s26 = scalar_select %p25, 0, %s24
      %s27 = sadd.s32 1, %s18
      %s28 = scalar_select %p25, %s27, %s18
      %p29 = scmp.ge.s32.totalorder %s28, 1
      %s30 = scalar_select %p29, 0, %s28
      %s31 = ssub.s32 %s18, %s30
      %s32 = ssub.s32 %s19, %s26
      %s33 = sor.u32 %s31, %s32
      %p34 = scmp.eq.s32.totalorder %s33, 0
      %s36 = sadd.s32 %s35, 1
      %s37 = scalar_select %p34, %s35, %s36
      %p40 = pneg %p34
      %p41 = scmp.eq.s32.totalorder %s11, 1
      %p42 = por %p40, %p41
      %p43 = scmp.ne.s32.totalorder %s35, %s38
      %p44 = scmp.eq.s32.totalorder %s11, 0
      %p45 = por %p43, %p44
      %p46 = scmp.ne.s32.totalorder %s35, %s38
      %p47 = scmp.eq.s32.totalorder %s16, 1
      %p48 = por %p46, %p47
      %p49 = scmp.ne.s32.totalorder %s38, %s39
      %p50 = scmp.eq.s32.totalorder %s16, 0
      %p51 = por %p49, %p50
      %p52 = scmp.ne.s32.totalorder %s38, %s39
      %p53 = scmp.eq.s32.totalorder %s17, 1
      %p54 = por %p52, %p53
      %p56 = scmp.ne.s32.totalorder %s39, %s55
      %p57 = scmp.eq.s32.totalorder %s17, 0
      %p58 = por %p56, %p57
      %s60 = sadd.s32 %s59, 1
      %p63 = scmp.eq.s32.totalorder %s11, 1
      %p64 = scmp.ne.s32.totalorder %s59, %s61
      %p65 = scmp.eq.s32.totalorder %s11, 0
      %p66 = por %p64, %p65
      %p67 = scmp.ne.s32.totalorder %s59, %s61
      %p68 = scmp.eq.s32.totalorder %s16, 1
      %p69 = por %p67, %p68
      %p70 = scmp.ne.s32.totalorder %s61, %s62
      %p71 = scmp.eq.s32.totalorder %s16, 0
      %p72 = por %p70, %p71
      %p73 = scmp.ne.s32.totalorder %s61, %s62
      %p74 = scmp.eq.s32.totalorder %s17, 1
      %p75 = por %p73, %p74
      %p77 = scmp.ne.s32.totalorder %s62, %s76
      %p78 = scmp.eq.s32.totalorder %s17, 0
      %p79 = por %p77, %p78
      %s80 = ssub.s32 %s19, %s26
      %s81 = ssub.s32 %s18, %s30
      %s82 = sor.u32 %s80, %s81
      %p83 = scmp.eq.s32.totalorder %s82, 0
      %s85 = sadd.s32 %s84, 1
      %s86 = scalar_select %p83, %s84, %s85
      %p89 = pneg %p83
      %p90 = scmp.eq.s32.totalorder %s11, 1
      %p91 = por %p89, %p90
      %p92 = scmp.ne.s32.totalorder %s84, %s87
      %p93 = scmp.eq.s32.totalorder %s11, 0
      %p94 = por %p92, %p93
      %p95 = scmp.ne.s32.totalorder %s84, %s87
      %p96 = scmp.eq.s32.totalorder %s16, 1
      %p97 = por %p95, %p96
      %p98 = scmp.ne.s32.totalorder %s87, %s88
      %p99 = scmp.eq.s32.totalorder %s16, 0
      %p100 = por %p98, %p99
      %p101 = scmp.ne.s32.totalorder %s87, %s88
      %p102 = scmp.eq.s32.totalorder %s17, 1
      %p103 = por %p101, %p102
      %p105 = scmp.ne.s32.totalorder %s88, %s104
      %p106 = scmp.eq.s32.totalorder %s17, 0
      %p107 = por %p105, %p106
      %s108 = ssub.s32 %s18, %s30
      %s109 = ssub.s32 %s19, %s26
      %s110 = sor.u32 %s108, %s109
      %p111 = scmp.eq.s32.totalorder %s110, 0
      %s113 = sadd.s32 %s112, 1
      %s114 = scalar_select %p111, %s112, %s113
      %p117 = pneg %p111
      %p118 = scmp.eq.s32.totalorder %s11, 1
      %p119 = por %p117, %p118
      %p120 = scmp.ne.s32.totalorder %s112, %s115
      %p121 = scmp.eq.s32.totalorder %s11, 0
      %p122 = por %p120, %p121
      %p123 = scmp.ne.s32.totalorder %s112, %s115
      %p124 = scmp.eq.s32.totalorder %s16, 1
      %p125 = por %p123, %p124
      %p126 = scmp.ne.s32.totalorder %s115, %s116
      %p127 = scmp.eq.s32.totalorder %s16, 0
      %p128 = por %p126, %p127
      %p129 = scmp.ne.s32.totalorder %s115, %s116
      %p130 = scmp.eq.s32.totalorder %s17, 1
      %p131 = por %p129, %p130
      %p133 = scmp.ne.s32.totalorder %s116, %s132
      %p134 = scmp.eq.s32.totalorder %s17, 0
      %p135 = por %p133, %p134
      %s136 = ssub.s32 %s18, %s30
      %s137 = ssub.s32 %s19, %s26
      %s138 = sor.u32 %s136, %s137
      %p139 = scmp.eq.s32.totalorder %s138, 0
      %s141 = sadd.s32 %s140, 1
      %s142 = scalar_select %p139, %s140, %s141
      %p145 = pneg %p139
      %p146 = scmp.eq.s32.totalorder %s11, 1
      %p147 = por %p145, %p146
      %p148 = scmp.ne.s32.totalorder %s140, %s143
      %p149 = scmp.eq.s32.totalorder %s11, 0
      %p150 = por %p148, %p149
      %p151 = scmp.ne.s32.totalorder %s140, %s143
      %p152 = scmp.eq.s32.totalorder %s16, 1
      %p153 = por %p151, %p152
      %p154 = scmp.ne.s32.totalorder %s143, %s144
      %p155 = scmp.eq.s32.totalorder %s16, 0
      %p156 = por %p154, %p155
      %p157 = scmp.ne.s32.totalorder %s143, %s144
      %p158 = scmp.eq.s32.totalorder %s17, 1
      %p159 = por %p157, %p158
      %p161 = scmp.ne.s32.totalorder %s144, %s160
      %p162 = scmp.eq.s32.totalorder %s17, 0
      %p163 = por %p161, %p162
      %p164 = scmp.le.s32.totalorder 1, %s11
      %p165 = scmp.lt.s32.totalorder %s11, 3
      %p166 = pnand %p164, %p165
      %p167 = pneg %p166
      // Predicated region
      $region9: #{spiking_mlp_forward.1} parent=5 // pred_check
        _
      $region10: #{spiking_mlp_forward.1} parent=5 // pred_check_branch
        %169 = sbr.rel (%p166) target = $region12
      $region11: #{spiking_mlp_forward.1} parent=5 // pred_region
        %s170 = ssub.s32 %s11, 1
        // Predicated region
        $region13: #{spiking_mlp_forward.1} parent=11 // pred_check
          %p171 = pneg %p72
        $region14: #{spiking_mlp_forward.1} parent=11 // pred_check_branch
          %173 = sbr.rel (%p171) target = $region16
        $region15: #{spiking_mlp_forward.1} parent=11 // pred_region
          _
        $region16: #{spiking_mlp_forward.1} parent=11 // pred_fallthru
          _
      $region12: #{spiking_mlp_forward.1} parent=5 // pred_fallthru
        _
      %p174 = scmp.lt.s32.totalorder %s11, 2
      // Predicated region
      $region17: #{spiking_mlp_forward.1} parent=5 // pred_check
        %p175 = pneg %p174
      $region18: #{spiking_mlp_forward.1} parent=5 // pred_check_branch
        %177 = sbr.rel (%p175) target = $region20
      $region19: #{spiking_mlp_forward.1} parent=5 // pred_region
        // Predicated region
        $region21: #{spiking_mlp_forward.1} parent=19 // pred_check
          %p178 = pneg %p45
        $region22: #{spiking_mlp_forward.1} parent=19 // pred_check_branch
          %180 = sbr.rel (%p178) target = $region24
        $region23: #{spiking_mlp_forward.1} parent=19 // pred_region
          %s181 = sand.u32 %s35, 1
          %s182 = sand.u32 %s35, 1
          %s183 = smul.addr %s182, 64
          %s184 = scalar_lea.vmem [#allocation4], %s183
          %s185 = smul.u32 8, %s18
          %s186 = smul.addr %s185, 2
          %s187 = sadd.s32 %s19, %s186
          %s188 = smul.addr %s187, 8
          %s189 = scalar_lea.vmem %s0, %s188
          // Predicated region
          $region25: #{spiking_mlp_forward.1} parent=23 // pred_check
            _
          $region26: #{spiking_mlp_forward.1} parent=23 // pred_check_branch
            %191 = sbr.rel (0) target = $region28
          $region27: #{spiking_mlp_forward.1} parent=23 // pred_region
            // Predicated region
            $region29: #{spiking_mlp_forward.1} parent=27 // pred_check
              _
            $region30: #{spiking_mlp_forward.1} parent=27 // pred_check_branch
              %193 = sbr.rel (0) target = $region32
            $region31: #{spiking_mlp_forward.1} parent=27 // pred_region
              // Predicated region
              $region44: #{spiking_mlp_forward.1} parent=31 // pred_check
                _
              $region45: #{spiking_mlp_forward.1} parent=31 // pred_check_branch
                %222 = sbr.rel (0) target = $region47
              $region46: #{spiking_mlp_forward.1} parent=31 // pred_region
                loop: start=0, step=1, limit=1
                $region48: #{spiking_mlp_forward.1} parent=46 // loop_pre_header
                  _
                $region49: #{spiking_mlp_forward.1} parent=46 // loop_header
                  %s224 = sphi 0, %s228
                  %p225 = scmp.ge.s32.totalorder %s224, 1
                  %s229 = sphi %s189, %s189
                  %s230 = sphi %s184, %s184
                $region50: #{spiking_mlp_forward.1} parent=46 // loop_header_branch
                  %227 = sbr.rel (%p225) target = $region54
                $region51: #{spiking_mlp_forward.1} parent=46 // loop_body
                  %v231 = vld [vmem:[%s229] sm:$0xff]
                  %232 = vst [vmem:[%s230] sm:$0xff] %v231
                  %v233 = vld [vmem:[%s229 + $0x10] sm:$0xff]
                  %234 = vst [vmem:[%s230 + $0x8] sm:$0xff] %v233
                  %v235 = vld [vmem:[%s229 + $0x20] sm:$0xff]
                  %236 = vst [vmem:[%s230 + $0x10] sm:$0xff] %v235
                  %v237 = vld [vmem:[%s229 + $0x30] sm:$0xff]
                  %238 = vst [vmem:[%s230 + $0x18] sm:$0xff] %v237
                  %v239 = vld [vmem:[%s229 + $0x40] sm:$0xff]
                  %240 = vst [vmem:[%s230 + $0x20] sm:$0xff] %v239
                  %v241 = vld [vmem:[%s229 + $0x50] sm:$0xff]
                  %242 = vst [vmem:[%s230 + $0x28] sm:$0xff] %v241
                  %v243 = vld [vmem:[%s229 + $0x60] sm:$0xff]
                  %244 = vst [vmem:[%s230 + $0x30] sm:$0xff] %v243
                  %v245 = vld [vmem:[%s229 + $0x70] sm:$0xff]
                  %246 = vst [vmem:[%s230 + $0x38] sm:$0xff] %v245
                $region52: #{spiking_mlp_forward.1} parent=46 // loop_footer
                  %s228 = sadd.s32 1, %s224
                $region53: #{spiking_mlp_forward.1} parent=46 // loop_footer_branch
                  %223 = sbr.rel target = $region49
                $region54: #{spiking_mlp_forward.1} parent=46 // loop_exit
                  _
              $region47: #{spiking_mlp_forward.1} parent=31 // pred_fallthru
                _
              // Predicated region
              $region55: #{spiking_mlp_forward.1} parent=31 // pred_check
                _
              $region56: #{spiking_mlp_forward.1} parent=31 // pred_check_branch
                %248 = sbr.rel target = $region58
              $region57: #{spiking_mlp_forward.1} parent=31 // pred_region
                _
              $region58: #{spiking_mlp_forward.1} parent=31 // pred_fallthru
                _
            $region32: #{spiking_mlp_forward.1} parent=27 // pred_fallthru
              _
            // Predicated region
            $region33: #{spiking_mlp_forward.1} parent=27 // pred_check
              _
            $region34: #{spiking_mlp_forward.1} parent=27 // pred_check_branch
              %195 = sbr.rel target = $region36
            $region35: #{spiking_mlp_forward.1} parent=27 // pred_region
              loop: start=0, step=1, limit=1
              $region37: #{spiking_mlp_forward.1} parent=35 // loop_pre_header
                _
              $region38: #{spiking_mlp_forward.1} parent=35 // loop_header
                %s198 = sphi 0, %s202
                %p199 = scmp.ge.s32.totalorder %s198, 1
                %s203 = sphi %s189, %s189
                %s204 = sphi %s184, %s184
              $region39: #{spiking_mlp_forward.1} parent=35 // loop_header_branch
                %201 = sbr.rel (%p199) target = $region43
              $region40: #{spiking_mlp_forward.1} parent=35 // loop_body
                %v205 = vld [vmem:[%s203] sm:$0xff]
                %206 = vst [vmem:[%s204] sm:$0xff] %v205
                %v207 = vld [vmem:[%s203 + $0x10] sm:$0xff]
                %208 = vst [vmem:[%s204 + $0x8] sm:$0xff] %v207
                %v209 = vld [vmem:[%s203 + $0x20] sm:$0xff]
                %210 = vst [vmem:[%s204 + $0x10] sm:$0xff] %v209
                %v211 = vld [vmem:[%s203 + $0x30] sm:$0xff]
                %212 = vst [vmem:[%s204 + $0x18] sm:$0xff] %v211
                %v213 = vld [vmem:[%s203 + $0x40] sm:$0xff]
                %214 = vst [vmem:[%s204 + $0x20] sm:$0xff] %v213
                %v215 = vld [vmem:[%s203 + $0x50] sm:$0xff]
                %216 = vst [vmem:[%s204 + $0x28] sm:$0xff] %v215
                %v217 = vld [vmem:[%s203 + $0x60] sm:$0xff]
                %218 = vst [vmem:[%s204 + $0x30] sm:$0xff] %v217
                %v219 = vld [vmem:[%s203 + $0x70] sm:$0xff]
                %220 = vst [vmem:[%s204 + $0x38] sm:$0xff] %v219
              $region41: #{spiking_mlp_forward.1} parent=35 // loop_footer
                %s202 = sadd.s32 1, %s198
              $region42: #{spiking_mlp_forward.1} parent=35 // loop_footer_branch
                %197 = sbr.rel target = $region38
              $region43: #{spiking_mlp_forward.1} parent=35 // loop_exit
                _
            $region36: #{spiking_mlp_forward.1} parent=27 // pred_fallthru
              _
          $region28: #{spiking_mlp_forward.1} parent=23 // pred_fallthru
            _
          %249 = vnop
        $region24: #{spiking_mlp_forward.1} parent=19 // pred_fallthru
          _
      $region20: #{spiking_mlp_forward.1} parent=5 // pred_fallthru
        _
      %p250 = scmp.le.s32.totalorder 1, %s11
      %p251 = scmp.lt.s32.totalorder %s11, 3
      %p252 = pnand %p250, %p251
      %p253 = pneg %p252
      // Predicated region
      $region59: #{spiking_mlp_forward.1} parent=5 // pred_check
        _
      $region60: #{spiking_mlp_forward.1} parent=5 // pred_check_branch
        %255 = sbr.rel (%p252) target = $region62
      $region61: #{spiking_mlp_forward.1} parent=5 // pred_region
        %s256 = ssub.s32 %s11, 1
        %s257 = sand.u32 %s38, 1
        %s258 = sand.u32 %s38, 1
        %s259 = smul.addr %s258, 64
        %s260 = scalar_lea.vmem [#allocation4], %s259
        // Predicated region
        $region63: #{spiking_mlp_forward.1} parent=61 // pred_check
          %p261 = pneg %p51
        $region64: #{spiking_mlp_forward.1} parent=61 // pred_check_branch
          %263 = sbr.rel (%p261) target = $region66
        $region65: #{spiking_mlp_forward.1} parent=61 // pred_region
          _
        $region66: #{spiking_mlp_forward.1} parent=61 // pred_fallthru
          _
        %s264 = sand.u32 %s38, 1
        %s265 = sand.u32 %s38, 1
        %s266 = smul.addr %s265, 64
        %s267 = scalar_lea.vmem [#allocation4], %s266
        %p268 = pneg %p51
        %p269 = pneg %p48
        %p270 = pneg %p72
        %p271 = pneg %p69
        %p272 = pneg %p100
        %p273 = pneg %p97
        %s274 = smul.u32 8, %s21
        %p275 = scmp.lt.s32.totalorder %s274, 15
        %s276 = scalar_select %p275, %s274, 15
        %p277 = scmp.lt.s32.totalorder %s20, 0
        %s278 = scalar_select %p277, %s20, 0
        %s279 = sadd.s32 %s278, %s276
        %s280 = smul.addr %s279, 8
        %s281 = scalar_lea.vmem %s2, %s280
        %p282 = pneg %p128
        %p283 = pneg %p125
        %s284 = sand.u32 %s115, 1
        %s285 = sand.u32 %s115, 1
        %s286 = smul.addr %s285, 64
        %s287 = scalar_lea.vmem [#allocation5], %s286
        %p288 = pneg %p156
        %p289 = pneg %p153
        %s290 = sand.u32 %s143, 1
        %s291 = sand.u32 %s143, 1
        %s292 = smul.addr %s291, 64
        %s293 = scalar_lea.vmem [#allocation6], %s292
        %s294 = smul.u32 8, %s20
        %s295 = smul.u32 8, %s21
        %p296 = scmp.lt.s32.totalorder %s295, 15
        %s297 = scalar_select %p296, %s295, 15
        %p298 = scmp.lt.s32.totalorder %s20, 0
        %s299 = scalar_select %p298, %s20, 0
        %s300 = sadd.s32 %s299, %s297
        %s301 = smul.addr %s300, 8
        %s302 = scalar_lea.vmem %s2, %s301
        %s303 = smul.u32 8, %s21
        %s304 = smul.u32 8, %s20
        %s305 = smul.u32 8, %s20
        %p306 = scmp.eq.s32.totalorder %s21, 0
        // Predicated region
        $region67: #{spiking_mlp_forward.1} parent=61 // pred_check
          %p307 = pneg %p306
        $region68: #{spiking_mlp_forward.1} parent=61 // pred_check_branch
          %309 = sbr.rel (%p307) target = $region70
        $region69: #{spiking_mlp_forward.1} parent=61 // pred_region
          %310 = vst [vmem:[#allocation2] sm:$0xff] 0.0
          %311 = vst [vmem:[#allocation3] sm:$0xff] 0.0
        $region70: #{spiking_mlp_forward.1} parent=61 // pred_fallthru
          _
        %v312 = vld [vmem:[#allocation2] sm:$0xff]
        %v313 = vld [vmem:[#allocation3] sm:$0xff]
        %v314 = vld [vmem:[%s260] sm:$0x1]
        %v315 = vld [vmem:[%s260 + $0x8] sm:$0x1]
        %v316 = vld [vmem:[%s260 + $0x10] sm:$0x1]
        %v317 = vld [vmem:[%s260 + $0x18] sm:$0x1]
        %v318 = vld [vmem:[%s260 + $0x20] sm:$0x1]
        %v319 = vld [vmem:[%s260 + $0x28] sm:$0x1]
        %v320 = vld [vmem:[%s260 + $0x30] sm:$0x1]
        %v321 = vld [vmem:[%s260 + $0x38] sm:$0x1]
        %vm322 = vcmp.gt.f32.partialorder %v312, 1.0
        %v323 = vmul.f32 %v312, 0.95
        %v332 = vrot.slane %v315, 7
        %vm333 = vcmask 1041409
        %v334 = vsel %vm333, %v332, %v314
        %v335 = vrot.slane %v316, 6
        %vm336 = vcmask 1042434
        %v337 = vsel %vm336, %v335, %v334
        %v338 = vrot.slane %v317, 5
        %vm339 = vcmask 1043459
        %v340 = vsel %vm339, %v338, %v337
        %v341 = vrot.slane %v318, 4
        %vm342 = vcmask 1044484
        %v343 = vsel %vm342, %v341, %v340
        %v344 = vrot.slane %v319, 3
        %vm345 = vcmask 1045509
        %v346 = vsel %vm345, %v344, %v343
        %v347 = vrot.slane %v320, 2
        %vm348 = vcmask 1046534
        %v349 = vsel %vm348, %v347, %v346
        %v350 = vrot.slane %v321, 1
        %vm351 = vcmask 1047559
        %v352 = vsel %vm351, %v350, %v349
        %v354 = vadd.f32 %v323, %v352
        %v355 = vsel %vm322, %v352, %v354
        %vm356 = vcmp.gt.f32.partialorder %v355, 1.0
        %v357 = vsel %vm356, 1, 0
        %v358 = vcvt.s32.f32 %v357
        %v360 = vcombine.high %v358, %v358
        %v362 = vunpack.c.l.s4 1966171168
        %v363 = vunpack.c.0.s8 %v362
        %v364 = vlaneseq
        %v365 = vshrl.u32 %v364, 7
        %v366 = vsub.s32 %v363, %v365
        %v367 = vrot.slane %v358, %v366
        %v369 = vunpack.c.l.s4 1966171168
        %v370 = vunpack.c.0.s8 %v369
        %v371 = vlaneseq
        %v372 = vshrl.u32 %v371, 7
        %v373 = vsub.s32 %v370, %v372
        %v374 = vrot.slane %v360, %v373
        %v375 = vcombine.high %v367, %v367
        %v376 = vcombine.high %v374, %v374
        %v378 = vunpack.c.l.s4 1966171168
        %v379 = vunpack.c.0.s8 %v378
        %v380 = vlaneseq
        %v381 = vshrl.u32 %v380, 7
        %v382 = vsub.s32 %v379, %v381
        %v383 = vrot.slane %v367, %v382
        %v385 = vunpack.c.l.s4 1966171168
        %v386 = vunpack.c.0.s8 %v385
        %v387 = vlaneseq
        %v388 = vshrl.u32 %v387, 7
        %v389 = vsub.s32 %v386, %v388
        %v390 = vrot.slane %v374, %v389
        %v392 = vunpack.c.l.s4 1966171168
        %v393 = vunpack.c.0.s8 %v392
        %v394 = vlaneseq
        %v395 = vshrl.u32 %v394, 7
        %v396 = vsub.s32 %v393, %v395
        %v397 = vrot.slane %v375, %v396
        %v399 = vunpack.c.l.s4 1966171168
        %v400 = vunpack.c.0.s8 %v399
        %v401 = vlaneseq
        %v402 = vshrl.u32 %v401, 7
        %v403 = vsub.s32 %v400, %v402
        %v404 = vrot.slane %v376, %v403
        %v405 = vcombine.high %v383, %v383
        %v406 = vcombine.high %v390, %v390
        %v407 = vcombine.high %v397, %v397
        %v408 = vcombine.high %v404, %v404
        %417 = vst [vmem:[%s287] sm:$0x1] %v383
        %418 = vst [vmem:[%s287 + $0x8] sm:$0x1] %v397
        %419 = vst [vmem:[%s287 + $0x10] sm:$0x1] %v405
        %420 = vst [vmem:[%s287 + $0x18] sm:$0x1] %v407
        %421 = vst [vmem:[%s287 + $0x20] sm:$0x1] %v390
        %422 = vst [vmem:[%s287 + $0x28] sm:$0x1] %v404
        %423 = vst [vmem:[%s287 + $0x30] sm:$0x1] %v406
        %424 = vst [vmem:[%s287 + $0x38] sm:$0x1] %v408
        %v425 = vld [vmem:[%s1] sm:$0xff]
        %v426 = vld [vmem:[%s1 + $0x8] sm:$0xff]
        %v427 = vld [vmem:[%s1 + $0x10] sm:$0xff]
        %v428 = vld [vmem:[%s1 + $0x18] sm:$0xff]
        %v429 = vld [vmem:[%s1 + $0x20] sm:$0xff]
        %v430 = vld [vmem:[%s1 + $0x28] sm:$0xff]
        %v431 = vld [vmem:[%s1 + $0x30] sm:$0xff]
        %v432 = vld [vmem:[%s1 + $0x38] sm:$0xff]
        %v433 = vld [vmem:[%s1 + $0x40] sm:$0xff]
        %v434 = vld [vmem:[%s1 + $0x48] sm:$0xff]
        %v435 = vld [vmem:[%s1 + $0x50] sm:$0xff]
        %v436 = vld [vmem:[%s1 + $0x58] sm:$0xff]
        %v437 = vld [vmem:[%s1 + $0x60] sm:$0xff]
        %v438 = vld [vmem:[%s1 + $0x68] sm:$0xff]
        %v439 = vld [vmem:[%s1 + $0x70] sm:$0xff]
        %v440 = vld [vmem:[%s1 + $0x78] sm:$0xff]
        %441 = vmatprep.subr.mxu0 0.0
        %442 = vmatpush1.msra.mxu0 %v425
        %443 = vmatprep.subr.mxu0 0.0
        %444 = vmatpush1.msra.mxu0 %v426
        %445 = vmatprep.subr.mxu0 0.0
        %446 = vmatpush1.msra.mxu0 %v427
        %447 = vmatprep.subr.mxu0 0.0
        %448 = vmatpush1.msra.mxu0 %v428
        %449 = vmatprep.subr.mxu0 0.0
        %450 = vmatpush1.msra.mxu0 %v429
        %451 = vmatprep.subr.mxu0 0.0
        %452 = vmatpush1.msra.mxu0 %v430
        %453 = vmatprep.subr.mxu0 0.0
        %454 = vmatpush1.msra.mxu0 %v431
        %455 = vmatprep.subr.mxu0 0.0
        %456 = vmatpush1.msra.mxu0 %v432
        %457 = vmatprep.subr.mxu0 0.0
        %458 = vmatpush1.msra.mxu0 %v433
        %459 = vmatprep.subr.mxu0 0.0
        %460 = vmatpush1.msra.mxu0 %v434
        %461 = vmatprep.subr.mxu0 0.0
        %462 = vmatpush1.msra.mxu0 %v435
        %463 = vmatprep.subr.mxu0 0.0
        %464 = vmatpush1.msra.mxu0 %v436
        %465 = vmatprep.subr.mxu0 0.0
        %466 = vmatpush1.msra.mxu0 %v437
        %467 = vmatprep.subr.mxu0 0.0
        %468 = vmatpush1.msra.mxu0 %v438
        %469 = vmatprep.subr.mxu0 0.0
        %470 = vmatpush1.msra.mxu0 %v439
        %471 = vmatprep.subr.mxu0 0.0
        %472 = vmatpush1.msra.mxu0 %v440
        %473 = vmatprep.subr.mxu0 0.0
        %474 = vmatpush1.msra.mxu0 0.0
        %475 = vmatprep.subr.mxu0 0.0
        %476 = vmatpush1.msra.mxu0 0.0
        %477 = vmatprep.subr.mxu0 0.0
        %478 = vmatpush1.msra.mxu0 0.0
        %479 = vmatprep.subr.mxu0 0.0
        %480 = vmatpush1.msra.mxu0 0.0
        %481 = vmatprep.subr.mxu0 0.0
        %482 = vmatpush1.msra.mxu0 0.0
        %483 = vmatprep.subr.mxu0 0.0
        %484 = vmatpush1.msra.mxu0 0.0
        %485 = vmatprep.subr.mxu0 0.0
        %486 = vmatpush1.msra.mxu0 0.0
        %487 = vmatprep.subr.mxu0 0.0
        %488 = vmatpush1.msra.mxu0 0.0
        %489 = vmatprep.subr.mxu0 0.0
        %490 = vmatpush1.msra.mxu0 0.0
        %491 = vmatprep.subr.mxu0 0.0
        %492 = vmatpush1.msra.mxu0 0.0
        %493 = vmatprep.subr.mxu0 0.0
        %494 = vmatpush1.msra.mxu0 0.0
        %495 = vmatprep.subr.mxu0 0.0
        %496 = vmatpush1.msra.mxu0 0.0
        %497 = vmatprep.subr.mxu0 0.0
        %498 = vmatpush1.msra.mxu0 0.0
        %499 = vmatprep.subr.mxu0 0.0
        %500 = vmatpush1.msra.mxu0 0.0
        %501 = vmatprep.subr.mxu0 0.0
        %502 = vmatpush1.msra.mxu0 0.0
        %503 = vmatprep.subr.mxu0 0.0
        %504 = vmatpush1.msra.mxu0 0.0
        %505 = vmatprep.mubr.f32.mxu0 0.0
        %506 = vmatmul.mubr.f32.gmra.mrb[0].mxu0 %v358
        %v507 = vpop.f32.mrb[0].mxu0
        %v508 = vadd.f32 0.0, %v507
        %v509 = vpop.f32.mrb[0].mxu0
        %510 = vdwg.mxu0
        %vm511 = vcmp.gt.f32.partialorder %v313, 1.0
        %v512 = vmul.f32 %v313, 0.95
        %v513 = vadd.f32 %v512, %v508
        %v514 = vsel %vm511, %v508, %v513
        %vm515 = vcmp.gt.f32.partialorder %v514, 1.0
        %v516 = vsel %vm515, 1, 0
        %v517 = vcvt.s32.f32 %v516
        %v519 = vcombine.high %v517, %v517
        %v521 = vunpack.c.l.s4 1966171168
        %v522 = vunpack.c.0.s8 %v521
        %v523 = vlaneseq
        %v524 = vshrl.u32 %v523, 7
        %v525 = vsub.s32 %v522, %v524
        %v526 = vrot.slane %v517, %v525
        %v528 = vunpack.c.l.s4 1966171168
        %v529 = vunpack.c.0.s8 %v528
        %v530 = vlaneseq
        %v531 = vshrl.u32 %v530, 7
        %v532 = vsub.s32 %v529, %v531
        %v533 = vrot.slane %v519, %v532
        %v534 = vcombine.high %v526, %v526
        %v535 = vcombine.high %v533, %v533
        %v537 = vunpack.c.l.s4 1966171168
        %v538 = vunpack.c.0.s8 %v537
        %v539 = vlaneseq
        %v540 = vshrl.u32 %v539, 7
        %v541 = vsub.s32 %v538, %v540
        %v542 = vrot.slane %v526, %v541
        %v544 = vunpack.c.l.s4 1966171168
        %v545 = vunpack.c.0.s8 %v544
        %v546 = vlaneseq
        %v547 = vshrl.u32 %v546, 7
        %v548 = vsub.s32 %v545, %v547
        %v549 = vrot.slane %v533, %v548
        %v551 = vunpack.c.l.s4 1966171168
        %v552 = vunpack.c.0.s8 %v551
        %v553 = vlaneseq
        %v554 = vshrl.u32 %v553, 7
        %v555 = vsub.s32 %v552, %v554
        %v556 = vrot.slane %v534, %v555
        %v558 = vunpack.c.l.s4 1966171168
        %v559 = vunpack.c.0.s8 %v558
        %v560 = vlaneseq
        %v561 = vshrl.u32 %v560, 7
        %v562 = vsub.s32 %v559, %v561
        %v563 = vrot.slane %v535, %v562
        %v564 = vcombine.high %v542, %v542
        %v565 = vcombine.high %v549, %v549
        %v566 = vcombine.high %v556, %v556
        %v567 = vcombine.high %v563, %v563
        %576 = vst [vmem:[%s293] sm:$0x1] %v542
        %577 = vst [vmem:[%s293 + $0x8] sm:$0x1] %v556
        %578 = vst [vmem:[%s293 + $0x10] sm:$0x1] %v564
        %579 = vst [vmem:[%s293 + $0x18] sm:$0x1] %v566
        %580 = vst [vmem:[%s293 + $0x20] sm:$0x1] %v549
        %581 = vst [vmem:[%s293 + $0x28] sm:$0x1] %v563
        %582 = vst [vmem:[%s293 + $0x30] sm:$0x1] %v565
        %583 = vst [vmem:[%s293 + $0x38] sm:$0x1] %v567
        %584 = vst [vmem:[%s302] sm:$0xff] %v514
        %v585 = vld [vmem:[%s260 + $0x1] sm:$0x1]
        %v586 = vld [vmem:[%s260 + $0x9] sm:$0x1]
        %v587 = vld [vmem:[%s260 + $0x11] sm:$0x1]
        %v588 = vld [vmem:[%s260 + $0x19] sm:$0x1]
        %v589 = vld [vmem:[%s260 + $0x21] sm:$0x1]
        %v590 = vld [vmem:[%s260 + $0x29] sm:$0x1]
        %v591 = vld [vmem:[%s260 + $0x31] sm:$0x1]
        %v592 = vld [vmem:[%s260 + $0x39] sm:$0x1]
        %v593 = vmul.f32 %v355, 0.95
        %v602 = vrot.slane %v586, 7
        %v603 = vsel %vm333, %v602, %v585
        %v604 = vrot.slane %v587, 6
        %v605 = vsel %vm336, %v604, %v603
        %v606 = vrot.slane %v588, 5
        %v607 = vsel %vm339, %v606, %v605
        %v608 = vrot.slane %v589, 4
        %v609 = vsel %vm342, %v608, %v607
        %v610 = vrot.slane %v590, 3
        %v611 = vsel %vm345, %v610, %v609
        %v612 = vrot.slane %v591, 2
        %v613 = vsel %vm348, %v612, %v611
        %v614 = vrot.slane %v592, 1
        %v615 = vsel %vm351, %v614, %v613
        %v617 = vadd.f32 %v593, %v615
        %v618 = vsel %vm356, %v615, %v617
        %vm619 = vcmp.gt.f32.partialorder %v618, 1.0
        %v620 = vsel %vm619, 1, 0
        %v621 = vcvt.s32.f32 %v620
        %v623 = vcombine.high %v621, %v621
        %v625 = vunpack.c.l.s4 1966171168
        %v626 = vunpack.c.0.s8 %v625
        %v627 = vlaneseq
        %v628 = vshrl.u32 %v627, 7
        %v629 = vsub.s32 %v626, %v628
        %v630 = vrot.slane %v621, %v629
        %v632 = vunpack.c.l.s4 1966171168
        %v633 = vunpack.c.0.s8 %v632
        %v634 = vlaneseq
        %v635 = vshrl.u32 %v634, 7
        %v636 = vsub.s32 %v633, %v635
        %v637 = vrot.slane %v623, %v636
        %v638 = vcombine.high %v630, %v630
        %v639 = vcombine.high %v637, %v637
        %v641 = vunpack.c.l.s4 1966171168
        %v642 = vunpack.c.0.s8 %v641
        %v643 = vlaneseq
        %v644 = vshrl.u32 %v643, 7
        %v645 = vsub.s32 %v642, %v644
        %v646 = vrot.slane %v630, %v645
        %v648 = vunpack.c.l.s4 1966171168
        %v649 = vunpack.c.0.s8 %v648
        %v650 = vlaneseq
        %v651 = vshrl.u32 %v650, 7
        %v652 = vsub.s32 %v649, %v651
        %v653 = vrot.slane %v637, %v652
        %v655 = vunpack.c.l.s4 1966171168
        %v656 = vunpack.c.0.s8 %v655
        %v657 = vlaneseq
        %v658 = vshrl.u32 %v657, 7
        %v659 = vsub.s32 %v656, %v658
        %v660 = vrot.slane %v638, %v659
        %v662 = vunpack.c.l.s4 1966171168
        %v663 = vunpack.c.0.s8 %v662
        %v664 = vlaneseq
        %v665 = vshrl.u32 %v664, 7
        %v666 = vsub.s32 %v663, %v665
        %v667 = vrot.slane %v639, %v666
        %v668 = vcombine.high %v646, %v646
        %v669 = vcombine.high %v653, %v653
        %v670 = vcombine.high %v660, %v660
        %v671 = vcombine.high %v667, %v667
        %680 = vst [vmem:[%s287 + $0x1] sm:$0x1] %v646
        %681 = vst [vmem:[%s287 + $0x9] sm:$0x1] %v660
        %682 = vst [vmem:[%s287 + $0x11] sm:$0x1] %v668
        %683 = vst [vmem:[%s287 + $0x19] sm:$0x1] %v670
        %684 = vst [vmem:[%s287 + $0x21] sm:$0x1] %v653
        %685 = vst [vmem:[%s287 + $0x29] sm:$0x1] %v667
        %686 = vst [vmem:[%s287 + $0x31] sm:$0x1] %v669
        %687 = vst [vmem:[%s287 + $0x39] sm:$0x1] %v671
        %v688 = vld [vmem:[%s1] sm:$0xff]
        %v689 = vld [vmem:[%s1 + $0x8] sm:$0xff]
        %v690 = vld [vmem:[%s1 + $0x10] sm:$0xff]
        %v691 = vld [vmem:[%s1 + $0x18] sm:$0xff]
        %v692 = vld [vmem:[%s1 + $0x20] sm:$0xff]
        %v693 = vld [vmem:[%s1 + $0x28] sm:$0xff]
        %v694 = vld [vmem:[%s1 + $0x30] sm:$0xff]
        %v695 = vld [vmem:[%s1 + $0x38] sm:$0xff]
        %v696 = vld [vmem:[%s1 + $0x40] sm:$0xff]
        %v697 = vld [vmem:[%s1 + $0x48] sm:$0xff]
        %v698 = vld [vmem:[%s1 + $0x50] sm:$0xff]
        %v699 = vld [vmem:[%s1 + $0x58] sm:$0xff]
        %v700 = vld [vmem:[%s1 + $0x60] sm:$0xff]
        %v701 = vld [vmem:[%s1 + $0x68] sm:$0xff]
        %v702 = vld [vmem:[%s1 + $0x70] sm:$0xff]
        %v703 = vld [vmem:[%s1 + $0x78] sm:$0xff]
        %704 = vmatprep.subr.mxu0 0.0
        %705 = vmatpush1.msra.mxu0 %v688
        %706 = vmatprep.subr.mxu0 0.0
        %707 = vmatpush1.msra.mxu0 %v689
        %708 = vmatprep.subr.mxu0 0.0
        %709 = vmatpush1.msra.mxu0 %v690
        %710 = vmatprep.subr.mxu0 0.0
        %711 = vmatpush1.msra.mxu0 %v691
        %712 = vmatprep.subr.mxu0 0.0
        %713 = vmatpush1.msra.mxu0 %v692
        %714 = vmatprep.subr.mxu0 0.0
        %715 = vmatpush1.msra.mxu0 %v693
        %716 = vmatprep.subr.mxu0 0.0
        %717 = vmatpush1.msra.mxu0 %v694
        %718 = vmatprep.subr.mxu0 0.0
        %719 = vmatpush1.msra.mxu0 %v695
        %720 = vmatprep.subr.mxu0 0.0
        %721 = vmatpush1.msra.mxu0 %v696
        %722 = vmatprep.subr.mxu0 0.0
        %723 = vmatpush1.msra.mxu0 %v697
        %724 = vmatprep.subr.mxu0 0.0
        %725 = vmatpush1.msra.mxu0 %v698
        %726 = vmatprep.subr.mxu0 0.0
        %727 = vmatpush1.msra.mxu0 %v699
        %728 = vmatprep.subr.mxu0 0.0
        %729 = vmatpush1.msra.mxu0 %v700
        %730 = vmatprep.subr.mxu0 0.0
        %731 = vmatpush1.msra.mxu0 %v701
        %732 = vmatprep.subr.mxu0 0.0
        %733 = vmatpush1.msra.mxu0 %v702
        %734 = vmatprep.subr.mxu0 0.0
        %735 = vmatpush1.msra.mxu0 %v703
        %736 = vmatprep.subr.mxu0 0.0
        %737 = vmatpush1.msra.mxu0 0.0
        %738 = vmatprep.subr.mxu0 0.0
        %739 = vmatpush1.msra.mxu0 0.0
        %740 = vmatprep.subr.mxu0 0.0
        %741 = vmatpush1.msra.mxu0 0.0
        %742 = vmatprep.subr.mxu0 0.0
        %743 = vmatpush1.msra.mxu0 0.0
        %744 = vmatprep.subr.mxu0 0.0
        %745 = vmatpush1.msra.mxu0 0.0
        %746 = vmatprep.subr.mxu0 0.0
        %747 = vmatpush1.msra.mxu0 0.0
        %748 = vmatprep.subr.mxu0 0.0
        %749 = vmatpush1.msra.mxu0 0.0
        %750 = vmatprep.subr.mxu0 0.0
        %751 = vmatpush1.msra.mxu0 0.0
        %752 = vmatprep.subr.mxu0 0.0
        %753 = vmatpush1.msra.mxu0 0.0
        %754 = vmatprep.subr.mxu0 0.0
        %755 = vmatpush1.msra.mxu0 0.0
        %756 = vmatprep.subr.mxu0 0.0
        %757 = vmatpush1.msra.mxu0 0.0
        %758 = vmatprep.subr.mxu0 0.0
        %759 = vmatpush1.msra.mxu0 0.0
        %760 = vmatprep.subr.mxu0 0.0
        %761 = vmatpush1.msra.mxu0 0.0
        %762 = vmatprep.subr.mxu0 0.0
        %763 = vmatpush1.msra.mxu0 0.0
        %764 = vmatprep.subr.mxu0 0.0
        %765 = vmatpush1.msra.mxu0 0.0
        %766 = vmatprep.subr.mxu0 0.0
        %767 = vmatpush1.msra.mxu0 0.0
        %768 = vmatprep.mubr.f32.mxu0 0.0
        %769 = vmatmul.mubr.f32.gmra.mrb[0].mxu0 %v621
        %v770 = vpop.f32.mrb[0].mxu0
        %v771 = vadd.f32 0.0, %v770
        %v772 = vpop.f32.mrb[0].mxu0
        %773 = vdwg.mxu0
        %v774 = vmul.f32 %v514, 0.95
        %v775 = vadd.f32 %v774, %v771
        %v776 = vsel %vm515, %v771, %v775
        %vm777 = vcmp.gt.f32.partialorder %v776, 1.0
        %v778 = vsel %vm777, 1, 0
        %v779 = vcvt.s32.f32 %v778
        %v781 = vcombine.high %v779, %v779
        %v783 = vunpack.c.l.s4 1966171168
        %v784 = vunpack.c.0.s8 %v783
        %v785 = vlaneseq
        %v786 = vshrl.u32 %v785, 7
        %v787 = vsub.s32 %v784, %v786
        %v788 = vrot.slane %v779, %v787
        %v790 = vunpack.c.l.s4 1966171168
        %v791 = vunpack.c.0.s8 %v790
        %v792 = vlaneseq
        %v793 = vshrl.u32 %v792, 7
        %v794 = vsub.s32 %v791, %v793
        %v795 = vrot.slane %v781, %v794
        %v796 = vcombine.high %v788, %v788
        %v797 = vcombine.high %v795, %v795
        %v799 = vunpack.c.l.s4 1966171168
        %v800 = vunpack.c.0.s8 %v799
        %v801 = vlaneseq
        %v802 = vshrl.u32 %v801, 7
        %v803 = vsub.s32 %v800, %v802
        %v804 = vrot.slane %v788, %v803
        %v806 = vunpack.c.l.s4 1966171168
        %v807 = vunpack.c.0.s8 %v806
        %v808 = vlaneseq
        %v809 = vshrl.u32 %v808, 7
        %v810 = vsub.s32 %v807, %v809
        %v811 = vrot.slane %v795, %v810
        %v813 = vunpack.c.l.s4 1966171168
        %v814 = vunpack.c.0.s8 %v813
        %v815 = vlaneseq
        %v816 = vshrl.u32 %v815, 7
        %v817 = vsub.s32 %v814, %v816
        %v818 = vrot.slane %v796, %v817
        %v820 = vunpack.c.l.s4 1966171168
        %v821 = vunpack.c.0.s8 %v820
        %v822 = vlaneseq
        %v823 = vshrl.u32 %v822, 7
        %v824 = vsub.s32 %v821, %v823
        %v825 = vrot.slane %v797, %v824
        %v826 = vcombine.high %v804, %v804
        %v827 = vcombine.high %v811, %v811
        %v828 = vcombine.high %v818, %v818
        %v829 = vcombine.high %v825, %v825
        %838 = vst [vmem:[%s293 + $0x1] sm:$0x1] %v804
        %839 = vst [vmem:[%s293 + $0x9] sm:$0x1] %v818
        %840 = vst [vmem:[%s293 + $0x11] sm:$0x1] %v826
        %841 = vst [vmem:[%s293 + $0x19] sm:$0x1] %v828
        %842 = vst [vmem:[%s293 + $0x21] sm:$0x1] %v811
        %843 = vst [vmem:[%s293 + $0x29] sm:$0x1] %v825
        %844 = vst [vmem:[%s293 + $0x31] sm:$0x1] %v827
        %845 = vst [vmem:[%s293 + $0x39] sm:$0x1] %v829
        %s846 = scalar_lea.vmem %s302, 8
        %847 = vst [vmem:[%s846] sm:$0xff] %v776
        %v848 = vld [vmem:[%s260 + $0x2] sm:$0x1]
        %v849 = vld [vmem:[%s260 + $0xa] sm:$0x1]
        %v850 = vld [vmem:[%s260 + $0x12] sm:$0x1]
        %v851 = vld [vmem:[%s260 + $0x1a] sm:$0x1]
        %v852 = vld [vmem:[%s260 + $0x22] sm:$0x1]
        %v853 = vld [vmem:[%s260 + $0x2a] sm:$0x1]
        %v854 = vld [vmem:[%s260 + $0x32] sm:$0x1]
        %v855 = vld [vmem:[%s260 + $0x3a] sm:$0x1]
        %v856 = vmul.f32 %v618, 0.95
        %v865 = vrot.slane %v849, 7
        %v866 = vsel %vm333, %v865, %v848
        %v867 = vrot.slane %v850, 6
        %v868 = vsel %vm336, %v867, %v866
        %v869 = vrot.slane %v851, 5
        %v870 = vsel %vm339, %v869, %v868
        %v871 = vrot.slane %v852, 4
        %v872 = vsel %vm342, %v871, %v870
        %v873 = vrot.slane %v853, 3
        %v874 = vsel %vm345, %v873, %v872
        %v875 = vrot.slane %v854, 2
        %v876 = vsel %vm348, %v875, %v874
        %v877 = vrot.slane %v855, 1
        %v878 = vsel %vm351, %v877, %v876
        %v880 = vadd.f32 %v856, %v878
        %v881 = vsel %vm619, %v878, %v880
        %vm882 = vcmp.gt.f32.partialorder %v881, 1.0
        %v883 = vsel %vm882, 1, 0
        %v884 = vcvt.s32.f32 %v883
        %v886 = vcombine.high %v884, %v884
        %v888 = vunpack.c.l.s4 1966171168
        %v889 = vunpack.c.0.s8 %v888
        %v890 = vlaneseq
        %v891 = vshrl.u32 %v890, 7
        %v892 = vsub.s32 %v889, %v891
        %v893 = vrot.slane %v884, %v892
        %v895 = vunpack.c.l.s4 1966171168
        %v896 = vunpack.c.0.s8 %v895
        %v897 = vlaneseq
        %v898 = vshrl.u32 %v897, 7
        %v899 = vsub.s32 %v896, %v898
        %v900 = vrot.slane %v886, %v899
        %v901 = vcombine.high %v893, %v893
        %v902 = vcombine.high %v900, %v900
        %v904 = vunpack.c.l.s4 1966171168
        %v905 = vunpack.c.0.s8 %v904
        %v906 = vlaneseq
        %v907 = vshrl.u32 %v906, 7
        %v908 = vsub.s32 %v905, %v907
        %v909 = vrot.slane %v893, %v908
        %v911 = vunpack.c.l.s4 1966171168
        %v912 = vunpack.c.0.s8 %v911
        %v913 = vlaneseq
        %v914 = vshrl.u32 %v913, 7
        %v915 = vsub.s32 %v912, %v914
        %v916 = vrot.slane %v900, %v915
        %v918 = vunpack.c.l.s4 1966171168
        %v919 = vunpack.c.0.s8 %v918
        %v920 = vlaneseq
        %v921 = vshrl.u32 %v920, 7
        %v922 = vsub.s32 %v919, %v921
        %v923 = vrot.slane %v901, %v922
        %v925 = vunpack.c.l.s4 1966171168
        %v926 = vunpack.c.0.s8 %v925
        %v927 = vlaneseq
        %v928 = vshrl.u32 %v927, 7
        %v929 = vsub.s32 %v926, %v928
        %v930 = vrot.slane %v902, %v929
        %v931 = vcombine.high %v909, %v909
        %v932 = vcombine.high %v916, %v916
        %v933 = vcombine.high %v923, %v923
        %v934 = vcombine.high %v930, %v930
        %943 = vst [vmem:[%s287 + $0x2] sm:$0x1] %v909
        %944 = vst [vmem:[%s287 + $0xa] sm:$0x1] %v923
        %945 = vst [vmem:[%s287 + $0x12] sm:$0x1] %v931
        %946 = vst [vmem:[%s287 + $0x1a] sm:$0x1] %v933
        %947 = vst [vmem:[%s287 + $0x22] sm:$0x1] %v916
        %948 = vst [vmem:[%s287 + $0x2a] sm:$0x1] %v930
        %949 = vst [vmem:[%s287 + $0x32] sm:$0x1] %v932
        %950 = vst [vmem:[%s287 + $0x3a] sm:$0x1] %v934
        %v951 = vld [vmem:[%s1] sm:$0xff]
        %v952 = vld [vmem:[%s1 + $0x8] sm:$0xff]
        %v953 = vld [vmem:[%s1 + $0x10] sm:$0xff]
        %v954 = vld [vmem:[%s1 + $0x18] sm:$0xff]
        %v955 = vld [vmem:[%s1 + $0x20] sm:$0xff]
        %v956 = vld [vmem:[%s1 + $0x28] sm:$0xff]
        %v957 = vld [vmem:[%s1 + $0x30] sm:$0xff]
        %v958 = vld [vmem:[%s1 + $0x38] sm:$0xff]
        %v959 = vld [vmem:[%s1 + $0x40] sm:$0xff]
        %v960 = vld [vmem:[%s1 + $0x48] sm:$0xff]
        %v961 = vld [vmem:[%s1 + $0x50] sm:$0xff]
        %v962 = vld [vmem:[%s1 + $0x58] sm:$0xff]
        %v963 = vld [vmem:[%s1 + $0x60] sm:$0xff]
        %v964 = vld [vmem:[%s1 + $0x68] sm:$0xff]
        %v965 = vld [vmem:[%s1 + $0x70] sm:$0xff]
        %v966 = vld [vmem:[%s1 + $0x78] sm:$0xff]
        %967 = vmatprep.subr.mxu0 0.0
        %968 = vmatpush1.msra.mxu0 %v951
        %969 = vmatprep.subr.mxu0 0.0
        %970 = vmatpush1.msra.mxu0 %v952
        %971 = vmatprep.subr.mxu0 0.0
        %972 = vmatpush1.msra.mxu0 %v953
        %973 = vmatprep.subr.mxu0 0.0
        %974 = vmatpush1.msra.mxu0 %v954
        %975 = vmatprep.subr.mxu0 0.0
        %976 = vmatpush1.msra.mxu0 %v955
        %977 = vmatprep.subr.mxu0 0.0
        %978 = vmatpush1.msra.mxu0 %v956
        %979 = vmatprep.subr.mxu0 0.0
        %980 = vmatpush1.msra.mxu0 %v957
        %981 = vmatprep.subr.mxu0 0.0
        %982 = vmatpush1.msra.mxu0 %v958
        %983 = vmatprep.subr.mxu0 0.0
        %984 = vmatpush1.msra.mxu0 %v959
        %985 = vmatprep.subr.mxu0 0.0
        %986 = vmatpush1.msra.mxu0 %v960
        %987 = vmatprep.subr.mxu0 0.0
        %988 = vmatpush1.msra.mxu0 %v961
        %989 = vmatprep.subr.mxu0 0.0
        %990 = vmatpush1.msra.mxu0 %v962
        %991 = vmatprep.subr.mxu0 0.0
        %992 = vmatpush1.msra.mxu0 %v963
        %993 = vmatprep.subr.mxu0 0.0
        %994 = vmatpush1.msra.mxu0 %v964
        %995 = vmatprep.subr.mxu0 0.0
        %996 = vmatpush1.msra.mxu0 %v965
        %997 = vmatprep.subr.mxu0 0.0
        %998 = vmatpush1.msra.mxu0 %v966
        %999 = vmatprep.subr.mxu0 0.0
        %1000 = vmatpush1.msra.mxu0 0.0
        %1001 = vmatprep.subr.mxu0 0.0
        %1002 = vmatpush1.msra.mxu0 0.0
        %1003 = vmatprep.subr.mxu0 0.0
        %1004 = vmatpush1.msra.mxu0 0.0
        %1005 = vmatprep.subr.mxu0 0.0
        %1006 = vmatpush1.msra.mxu0 0.0
        %1007 = vmatprep.subr.mxu0 0.0
        %1008 = vmatpush1.msra.mxu0 0.0
        %1009 = vmatprep.subr.mxu0 0.0
        %1010 = vmatpush1.msra.mxu0 0.0
        %1011 = vmatprep.subr.mxu0 0.0
        %1012 = vmatpush1.msra.mxu0 0.0
        %1013 = vmatprep.subr.mxu0 0.0
        %1014 = vmatpush1.msra.mxu0 0.0
        %1015 = vmatprep.subr.mxu0 0.0
        %1016 = vmatpush1.msra.mxu0 0.0
        %1017 = vmatprep.subr.mxu0 0.0
        %1018 = vmatpush1.msra.mxu0 0.0
        %1019 = vmatprep.subr.mxu0 0.0
        %1020 = vmatpush1.msra.mxu0 0.0
        %1021 = vmatprep.subr.mxu0 0.0
        %1022 = vmatpush1.msra.mxu0 0.0
        %1023 = vmatprep.subr.mxu0 0.0
        %1024 = vmatpush1.msra.mxu0 0.0
        %1025 = vmatprep.subr.mxu0 0.0
        %1026 = vmatpush1.msra.mxu0 0.0
        %1027 = vmatprep.subr.mxu0 0.0
        %1028 = vmatpush1.msra.mxu0 0.0
        %1029 = vmatprep.subr.mxu0 0.0
        %1030 = vmatpush1.msra.mxu0 0.0
        %1031 = vmatprep.mubr.f32.mxu0 0.0
        %1032 = vmatmul.mubr.f32.gmra.mrb[0].mxu0 %v884
        %v1033 = vpop.f32.mrb[0].mxu0
        %v1034 = vadd.f32 0.0, %v1033
        %v1035 = vpop.f32.mrb[0].mxu0
        %1036 = vdwg.mxu0
        %v1037 = vmul.f32 %v776, 0.95
        %v1038 = vadd.f32 %v1037, %v1034
        %v1039 = vsel %vm777, %v1034, %v1038
        %vm1040 = vcmp.gt.f32.partialorder %v1039, 1.0
        %v1041 = vsel %vm1040, 1, 0
        %v1042 = vcvt.s32.f32 %v1041
        %v1044 = vcombine.high %v1042, %v1042
        %v1046 = vunpack.c.l.s4 1966171168
        %v1047 = vunpack.c.0.s8 %v1046
        %v1048 = vlaneseq
        %v1049 = vshrl.u32 %v1048, 7
        %v1050 = vsub.s32 %v1047, %v1049
        %v1051 = vrot.slane %v1042, %v1050
        %v1053 = vunpack.c.l.s4 1966171168
        %v1054 = vunpack.c.0.s8 %v1053
        %v1055 = vlaneseq
        %v1056 = vshrl.u32 %v1055, 7
        %v1057 = vsub.s32 %v1054, %v1056
        %v1058 = vrot.slane %v1044, %v1057
        %v1059 = vcombine.high %v1051, %v1051
        %v1060 = vcombine.high %v1058, %v1058
        %v1062 = vunpack.c.l.s4 1966171168
        %v1063 = vunpack.c.0.s8 %v1062
        %v1064 = vlaneseq
        %v1065 = vshrl.u32 %v1064, 7
        %v1066 = vsub.s32 %v1063, %v1065
        %v1067 = vrot.slane %v1051, %v1066
        %v1069 = vunpack.c.l.s4 1966171168
        %v1070 = vunpack.c.0.s8 %v1069
        %v1071 = vlaneseq
        %v1072 = vshrl.u32 %v1071, 7
        %v1073 = vsub.s32 %v1070, %v1072
        %v1074 = vrot.slane %v1058, %v1073
        %v1076 = vunpack.c.l.s4 1966171168
        %v1077 = vunpack.c.0.s8 %v1076
        %v1078 = vlaneseq
        %v1079 = vshrl.u32 %v1078, 7
        %v1080 = vsub.s32 %v1077, %v1079
        %v1081 = vrot.slane %v1059, %v1080
        %v1083 = vunpack.c.l.s4 1966171168
        %v1084 = vunpack.c.0.s8 %v1083
        %v1085 = vlaneseq
        %v1086 = vshrl.u32 %v1085, 7
        %v1087 = vsub.s32 %v1084, %v1086
        %v1088 = vrot.slane %v1060, %v1087
        %v1089 = vcombine.high %v1067, %v1067
        %v1090 = vcombine.high %v1074, %v1074
        %v1091 = vcombine.high %v1081, %v1081
        %v1092 = vcombine.high %v1088, %v1088
        %1101 = vst [vmem:[%s293 + $0x2] sm:$0x1] %v1067
        %1102 = vst [vmem:[%s293 + $0xa] sm:$0x1] %v1081
        %1103 = vst [vmem:[%s293 + $0x12] sm:$0x1] %v1089
        %1104 = vst [vmem:[%s293 + $0x1a] sm:$0x1] %v1091
        %1105 = vst [vmem:[%s293 + $0x22] sm:$0x1] %v1074
        %1106 = vst [vmem:[%s293 + $0x2a] sm:$0x1] %v1088
        %1107 = vst [vmem:[%s293 + $0x32] sm:$0x1] %v1090
        %1108 = vst [vmem:[%s293 + $0x3a] sm:$0x1] %v1092
        %s1109 = scalar_lea.vmem %s302, 16
        %1110 = vst [vmem:[%s1109] sm:$0xff] %v1039
        %v1111 = vld [vmem:[%s260 + $0x3] sm:$0x1]
        %v1112 = vld [vmem:[%s260 + $0xb] sm:$0x1]
        %v1113 = vld [vmem:[%s260 + $0x13] sm:$0x1]
        %v1114 = vld [vmem:[%s260 + $0x1b] sm:$0x1]
        %v1115 = vld [vmem:[%s260 + $0x23] sm:$0x1]
        %v1116 = vld [vmem:[%s260 + $0x2b] sm:$0x1]
        %v1117 = vld [vmem:[%s260 + $0x33] sm:$0x1]
        %v1118 = vld [vmem:[%s260 + $0x3b] sm:$0x1]
        %v1119 = vmul.f32 %v881, 0.95
        %v1128 = vrot.slane %v1112, 7
        %v1129 = vsel %vm333, %v1128, %v1111
        %v1130 = vrot.slane %v1113, 6
        %v1131 = vsel %vm336, %v1130, %v1129
        %v1132 = vrot.slane %v1114, 5
        %v1133 = vsel %vm339, %v1132, %v1131
        %v1134 = vrot.slane %v1115, 4
        %v1135 = vsel %vm342, %v1134, %v1133
        %v1136 = vrot.slane %v1116, 3
        %v1137 = vsel %vm345, %v1136, %v1135
        %v1138 = vrot.slane %v1117, 2
        %v1139 = vsel %vm348, %v1138, %v1137
        %v1140 = vrot.slane %v1118, 1
        %v1141 = vsel %vm351, %v1140, %v1139
        %v1143 = vadd.f32 %v1119, %v1141
        %v1144 = vsel %vm882, %v1141, %v1143
        %vm1145 = vcmp.gt.f32.partialorder %v1144, 1.0
        %v1146 = vsel %vm1145, 1, 0
        %v1147 = vcvt.s32.f32 %v1146
        %v1149 = vcombine.high %v1147, %v1147
        %v1151 = vunpack.c.l.s4 1966171168
        %v1152 = vunpack.c.0.s8 %v1151
        %v1153 = vlaneseq
        %v1154 = vshrl.u32 %v1153, 7
        %v1155 = vsub.s32 %v1152, %v1154
        %v1156 = vrot.slane %v1147, %v1155
        %v1158 = vunpack.c.l.s4 1966171168
        %v1159 = vunpack.c.0.s8 %v1158
        %v1160 = vlaneseq
        %v1161 = vshrl.u32 %v1160, 7
        %v1162 = vsub.s32 %v1159, %v1161
        %v1163 = vrot.slane %v1149, %v1162
        %v1164 = vcombine.high %v1156, %v1156
        %v1165 = vcombine.high %v1163, %v1163
        %v1167 = vunpack.c.l.s4 1966171168
        %v1168 = vunpack.c.0.s8 %v1167
        %v1169 = vlaneseq
        %v1170 = vshrl.u32 %v1169, 7
        %v1171 = vsub.s32 %v1168, %v1170
        %v1172 = vrot.slane %v1156, %v1171
        %v1174 = vunpack.c.l.s4 1966171168
        %v1175 = vunpack.c.0.s8 %v1174
        %v1176 = vlaneseq
        %v1177 = vshrl.u32 %v1176, 7
        %v1178 = vsub.s32 %v1175, %v1177
        %v1179 = vrot.slane %v1163, %v1178
        %v1181 = vunpack.c.l.s4 1966171168
        %v1182 = vunpack.c.0.s8 %v1181
        %v1183 = vlaneseq
        %v1184 = vshrl.u32 %v1183, 7
        %v1185 = vsub.s32 %v1182, %v1184
        %v1186 = vrot.slane %v1164, %v1185
        %v1188 = vunpack.c.l.s4 1966171168
        %v1189 = vunpack.c.0.s8 %v1188
        %v1190 = vlaneseq
        %v1191 = vshrl.u32 %v1190, 7
        %v1192 = vsub.s32 %v1189, %v1191
        %v1193 = vrot.slane %v1165, %v1192
        %v1194 = vcombine.high %v1172, %v1172
        %v1195 = vcombine.high %v1179, %v1179
        %v1196 = vcombine.high %v1186, %v1186
        %v1197 = vcombine.high %v1193, %v1193
        %1206 = vst [vmem:[%s287 + $0x3] sm:$0x1] %v1172
        %1207 = vst [vmem:[%s287 + $0xb] sm:$0x1] %v1186
        %1208 = vst [vmem:[%s287 + $0x13] sm:$0x1] %v1194
        %1209 = vst [vmem:[%s287 + $0x1b] sm:$0x1] %v1196
        %1210 = vst [vmem:[%s287 + $0x23] sm:$0x1] %v1179
        %1211 = vst [vmem:[%s287 + $0x2b] sm:$0x1] %v1193
        %1212 = vst [vmem:[%s287 + $0x33] sm:$0x1] %v1195
        %1213 = vst [vmem:[%s287 + $0x3b] sm:$0x1] %v1197
        %v1214 = vld [vmem:[%s1] sm:$0xff]
        %v1215 = vld [vmem:[%s1 + $0x8] sm:$0xff]
        %v1216 = vld [vmem:[%s1 + $0x10] sm:$0xff]
        %v1217 = vld [vmem:[%s1 + $0x18] sm:$0xff]
        %v1218 = vld [vmem:[%s1 + $0x20] sm:$0xff]
        %v1219 = vld [vmem:[%s1 + $0x28] sm:$0xff]
        %v1220 = vld [vmem:[%s1 + $0x30] sm:$0xff]
        %v1221 = vld [vmem:[%s1 + $0x38] sm:$0xff]
        %v1222 = vld [vmem:[%s1 + $0x40] sm:$0xff]
        %v1223 = vld [vmem:[%s1 + $0x48] sm:$0xff]
        %v1224 = vld [vmem:[%s1 + $0x50] sm:$0xff]
        %v1225 = vld [vmem:[%s1 + $0x58] sm:$0xff]
        %v1226 = vld [vmem:[%s1 + $0x60] sm:$0xff]
        %v1227 = vld [vmem:[%s1 + $0x68] sm:$0xff]
        %v1228 = vld [vmem:[%s1 + $0x70] sm:$0xff]
        %v1229 = vld [vmem:[%s1 + $0x78] sm:$0xff]
        %1230 = vmatprep.subr.mxu0 0.0
        %1231 = vmatpush1.msra.mxu0 %v1214
        %1232 = vmatprep.subr.mxu0 0.0
        %1233 = vmatpush1.msra.mxu0 %v1215
        %1234 = vmatprep.subr.mxu0 0.0
        %1235 = vmatpush1.msra.mxu0 %v1216
        %1236 = vmatprep.subr.mxu0 0.0
        %1237 = vmatpush1.msra.mxu0 %v1217
        %1238 = vmatprep.subr.mxu0 0.0
        %1239 = vmatpush1.msra.mxu0 %v1218
        %1240 = vmatprep.subr.mxu0 0.0
        %1241 = vmatpush1.msra.mxu0 %v1219
        %1242 = vmatprep.subr.mxu0 0.0
        %1243 = vmatpush1.msra.mxu0 %v1220
        %1244 = vmatprep.subr.mxu0 0.0
        %1245 = vmatpush1.msra.mxu0 %v1221
        %1246 = vmatprep.subr.mxu0 0.0
        %1247 = vmatpush1.msra.mxu0 %v1222
        %1248 = vmatprep.subr.mxu0 0.0
        %1249 = vmatpush1.msra.mxu0 %v1223
        %1250 = vmatprep.subr.mxu0 0.0
        %1251 = vmatpush1.msra.mxu0 %v1224
        %1252 = vmatprep.subr.mxu0 0.0
        %1253 = vmatpush1.msra.mxu0 %v1225
        %1254 = vmatprep.subr.mxu0 0.0
        %1255 = vmatpush1.msra.mxu0 %v1226
        %1256 = vmatprep.subr.mxu0 0.0
        %1257 = vmatpush1.msra.mxu0 %v1227
        %1258 = vmatprep.subr.mxu0 0.0
        %1259 = vmatpush1.msra.mxu0 %v1228
        %1260 = vmatprep.subr.mxu0 0.0
        %1261 = vmatpush1.msra.mxu0 %v1229
        %1262 = vmatprep.subr.mxu0 0.0
        %1263 = vmatpush1.msra.mxu0 0.0
        %1264 = vmatprep.subr.mxu0 0.0
        %1265 = vmatpush1.msra.mxu0 0.0
        %1266 = vmatprep.subr.mxu0 0.0
        %1267 = vmatpush1.msra.mxu0 0.0
        %1268 = vmatprep.subr.mxu0 0.0
        %1269 = vmatpush1.msra.mxu0 0.0
        %1270 = vmatprep.subr.mxu0 0.0
        %1271 = vmatpush1.msra.mxu0 0.0
        %1272 = vmatprep.subr.mxu0 0.0
        %1273 = vmatpush1.msra.mxu0 0.0
        %1274 = vmatprep.subr.mxu0 0.0
        %1275 = vmatpush1.msra.mxu0 0.0
        %1276 = vmatprep.subr.mxu0 0.0
        %1277 = vmatpush1.msra.mxu0 0.0
        %1278 = vmatprep.subr.mxu0 0.0
        %1279 = vmatpush1.msra.mxu0 0.0
        %1280 = vmatprep.subr.mxu0 0.0
        %1281 = vmatpush1.msra.mxu0 0.0
        %1282 = vmatprep.subr.mxu0 0.0
        %1283 = vmatpush1.msra.mxu0 0.0
        %1284 = vmatprep.subr.mxu0 0.0
        %1285 = vmatpush1.msra.mxu0 0.0
        %1286 = vmatprep.subr.mxu0 0.0
        %1287 = vmatpush1.msra.mxu0 0.0
        %1288 = vmatprep.subr.mxu0 0.0
        %1289 = vmatpush1.msra.mxu0 0.0
        %1290 = vmatprep.subr.mxu0 0.0
        %1291 = vmatpush1.msra.mxu0 0.0
        %1292 = vmatprep.subr.mxu0 0.0
        %1293 = vmatpush1.msra.mxu0 0.0
        %1294 = vmatprep.mubr.f32.mxu0 0.0
        %1295 = vmatmul.mubr.f32.gmra.mrb[0].mxu0 %v1147
        %v1296 = vpop.f32.mrb[0].mxu0
        %v1297 = vadd.f32 0.0, %v1296
        %v1298 = vpop.f32.mrb[0].mxu0
        %1299 = vdwg.mxu0
        %v1300 = vmul.f32 %v1039, 0.95
        %v1301 = vadd.f32 %v1300, %v1297
        %v1302 = vsel %vm1040, %v1297, %v1301
        %vm1303 = vcmp.gt.f32.partialorder %v1302, 1.0
        %v1304 = vsel %vm1303, 1, 0
        %v1305 = vcvt.s32.f32 %v1304
        %v1307 = vcombine.high %v1305, %v1305
        %v1309 = vunpack.c.l.s4 1966171168
        %v1310 = vunpack.c.0.s8 %v1309
        %v1311 = vlaneseq
        %v1312 = vshrl.u32 %v1311, 7
        %v1313 = vsub.s32 %v1310, %v1312
        %v1314 = vrot.slane %v1305, %v1313
        %v1316 = vunpack.c.l.s4 1966171168
        %v1317 = vunpack.c.0.s8 %v1316
        %v1318 = vlaneseq
        %v1319 = vshrl.u32 %v1318, 7
        %v1320 = vsub.s32 %v1317, %v1319
        %v1321 = vrot.slane %v1307, %v1320
        %v1322 = vcombine.high %v1314, %v1314
        %v1323 = vcombine.high %v1321, %v1321
        %v1325 = vunpack.c.l.s4 1966171168
        %v1326 = vunpack.c.0.s8 %v1325
        %v1327 = vlaneseq
        %v1328 = vshrl.u32 %v1327, 7
        %v1329 = vsub.s32 %v1326, %v1328
        %v1330 = vrot.slane %v1314, %v1329
        %v1332 = vunpack.c.l.s4 1966171168
        %v1333 = vunpack.c.0.s8 %v1332
        %v1334 = vlaneseq
        %v1335 = vshrl.u32 %v1334, 7
        %v1336 = vsub.s32 %v1333, %v1335
        %v1337 = vrot.slane %v1321, %v1336
        %v1339 = vunpack.c.l.s4 1966171168
        %v1340 = vunpack.c.0.s8 %v1339
        %v1341 = vlaneseq
        %v1342 = vshrl.u32 %v1341, 7
        %v1343 = vsub.s32 %v1340, %v1342
        %v1344 = vrot.slane %v1322, %v1343
        %v1346 = vunpack.c.l.s4 1966171168
        %v1347 = vunpack.c.0.s8 %v1346
        %v1348 = vlaneseq
        %v1349 = vshrl.u32 %v1348, 7
        %v1350 = vsub.s32 %v1347, %v1349
        %v1351 = vrot.slane %v1323, %v1350
        %v1352 = vcombine.high %v1330, %v1330
        %v1353 = vcombine.high %v1337, %v1337
        %v1354 = vcombine.high %v1344, %v1344
        %v1355 = vcombine.high %v1351, %v1351
        %1364 = vst [vmem:[%s293 + $0x3] sm:$0x1] %v1330
        %1365 = vst [vmem:[%s293 + $0xb] sm:$0x1] %v1344
        %1366 = vst [vmem:[%s293 + $0x13] sm:$0x1] %v1352
        %1367 = vst [vmem:[%s293 + $0x1b] sm:$0x1] %v1354
        %1368 = vst [vmem:[%s293 + $0x23] sm:$0x1] %v1337
        %1369 = vst [vmem:[%s293 + $0x2b] sm:$0x1] %v1351
        %1370 = vst [vmem:[%s293 + $0x33] sm:$0x1] %v1353
        %1371 = vst [vmem:[%s293 + $0x3b] sm:$0x1] %v1355
        %s1372 = scalar_lea.vmem %s302, 24
        %1373 = vst [vmem:[%s1372] sm:$0xff] %v1302
        %v1374 = vld [vmem:[%s260 + $0x4] sm:$0x1]
        %v1375 = vld [vmem:[%s260 + $0xc] sm:$0x1]
        %v1376 = vld [vmem:[%s260 + $0x14] sm:$0x1]
        %v1377 = vld [vmem:[%s260 + $0x1c] sm:$0x1]
        %v1378 = vld [vmem:[%s260 + $0x24] sm:$0x1]
        %v1379 = vld [vmem:[%s260 + $0x2c] sm:$0x1]
        %v1380 = vld [vmem:[%s260 + $0x34] sm:$0x1]
        %v1381 = vld [vmem:[%s260 + $0x3c] sm:$0x1]
        %v1382 = vmul.f32 %v1144, 0.95
        %v1391 = vrot.slane %v1375, 7
        %v1392 = vsel %vm333, %v1391, %v1374
        %v1393 = vrot.slane %v1376, 6
        %v1394 = vsel %vm336, %v1393, %v1392
        %v1395 = vrot.slane %v1377, 5
        %v1396 = vsel %vm339, %v1395, %v1394
        %v1397 = vrot.slane %v1378, 4
        %v1398 = vsel %vm342, %v1397, %v1396
        %v1399 = vrot.slane %v1379, 3
        %v1400 = vsel %vm345, %v1399, %v1398
        %v1401 = vrot.slane %v1380, 2
        %v1402 = vsel %vm348, %v1401, %v1400
        %v1403 = vrot.slane %v1381, 1
        %v1404 = vsel %vm351, %v1403, %v1402
        %v1406 = vadd.f32 %v1382, %v1404
        %v1407 = vsel %vm1145, %v1404, %v1406
        %vm1408 = vcmp.gt.f32.partialorder %v1407, 1.0
        %v1409 = vsel %vm1408, 1, 0
        %v1410 = vcvt.s32.f32 %v1409
        %v1412 = vcombine.high %v1410, %v1410
        %v1414 = vunpack.c.l.s4 1966171168
        %v1415 = vunpack.c.0.s8 %v1414
        %v1416 = vlaneseq
        %v1417 = vshrl.u32 %v1416, 7
        %v1418 = vsub.s32 %v1415, %v1417
        %v1419 = vrot.slane %v1410, %v1418
        %v1421 = vunpack.c.l.s4 1966171168
        %v1422 = vunpack.c.0.s8 %v1421
        %v1423 = vlaneseq
        %v1424 = vshrl.u32 %v1423, 7
        %v1425 = vsub.s32 %v1422, %v1424
        %v1426 = vrot.slane %v1412, %v1425
        %v1427 = vcombine.high %v1419, %v1419
        %v1428 = vcombine.high %v1426, %v1426
        %v1430 = vunpack.c.l.s4 1966171168
        %v1431 = vunpack.c.0.s8 %v1430
        %v1432 = vlaneseq
        %v1433 = vshrl.u32 %v1432, 7
        %v1434 = vsub.s32 %v1431, %v1433
        %v1435 = vrot.slane %v1419, %v1434
        %v1437 = vunpack.c.l.s4 1966171168
        %v1438 = vunpack.c.0.s8 %v1437
        %v1439 = vlaneseq
        %v1440 = vshrl.u32 %v1439, 7
        %v1441 = vsub.s32 %v1438, %v1440
        %v1442 = vrot.slane %v1426, %v1441
        %v1444 = vunpack.c.l.s4 1966171168
        %v1445 = vunpack.c.0.s8 %v1444
        %v1446 = vlaneseq
        %v1447 = vshrl.u32 %v1446, 7
        %v1448 = vsub.s32 %v1445, %v1447
        %v1449 = vrot.slane %v1427, %v1448
        %v1451 = vunpack.c.l.s4 1966171168
        %v1452 = vunpack.c.0.s8 %v1451
        %v1453 = vlaneseq
        %v1454 = vshrl.u32 %v1453, 7
        %v1455 = vsub.s32 %v1452, %v1454
        %v1456 = vrot.slane %v1428, %v1455
        %v1457 = vcombine.high %v1435, %v1435
        %v1458 = vcombine.high %v1442, %v1442
        %v1459 = vcombine.high %v1449, %v1449
        %v1460 = vcombine.high %v1456, %v1456
        %1469 = vst [vmem:[%s287 + $0x4] sm:$0x1] %v1435
        %1470 = vst [vmem:[%s287 + $0xc] sm:$0x1] %v1449
        %1471 = vst [vmem:[%s287 + $0x14] sm:$0x1] %v1457
        %1472 = vst [vmem:[%s287 + $0x1c] sm:$0x1] %v1459
        %1473 = vst [vmem:[%s287 + $0x24] sm:$0x1] %v1442
        %1474 = vst [vmem:[%s287 + $0x2c] sm:$0x1] %v1456
        %1475 = vst [vmem:[%s287 + $0x34] sm:$0x1] %v1458
        %1476 = vst [vmem:[%s287 + $0x3c] sm:$0x1] %v1460
        %v1477 = vld [vmem:[%s1] sm:$0xff]
        %v1478 = vld [vmem:[%s1 + $0x8] sm:$0xff]
        %v1479 = vld [vmem:[%s1 + $0x10] sm:$0xff]
        %v1480 = vld [vmem:[%s1 + $0x18] sm:$0xff]
        %v1481 = vld [vmem:[%s1 + $0x20] sm:$0xff]
        %v1482 = vld [vmem:[%s1 + $0x28] sm:$0xff]
        %v1483 = vld [vmem:[%s1 + $0x30] sm:$0xff]
        %v1484 = vld [vmem:[%s1 + $0x38] sm:$0xff]
        %v1485 = vld [vmem:[%s1 + $0x40] sm:$0xff]
        %v1486 = vld [vmem:[%s1 + $0x48] sm:$0xff]
        %v1487 = vld [vmem:[%s1 + $0x50] sm:$0xff]
        %v1488 = vld [vmem:[%s1 + $0x58] sm:$0xff]
        %v1489 = vld [vmem:[%s1 + $0x60] sm:$0xff]
        %v1490 = vld [vmem:[%s1 + $0x68] sm:$0xff]
        %v1491 = vld [vmem:[%s1 + $0x70] sm:$0xff]
        %v1492 = vld [vmem:[%s1 + $0x78] sm:$0xff]
        %1493 = vmatprep.subr.mxu0 0.0
        %1494 = vmatpush1.msra.mxu0 %v1477
        %1495 = vmatprep.subr.mxu0 0.0
        %1496 = vmatpush1.msra.mxu0 %v1478
        %1497 = vmatprep.subr.mxu0 0.0
        %1498 = vmatpush1.msra.mxu0 %v1479
        %1499 = vmatprep.subr.mxu0 0.0
        %1500 = vmatpush1.msra.mxu0 %v1480
        %1501 = vmatprep.subr.mxu0 0.0
        %1502 = vmatpush1.msra.mxu0 %v1481
        %1503 = vmatprep.subr.mxu0 0.0
        %1504 = vmatpush1.msra.mxu0 %v1482
        %1505 = vmatprep.subr.mxu0 0.0
        %1506 = vmatpush1.msra.mxu0 %v1483
        %1507 = vmatprep.subr.mxu0 0.0
        %1508 = vmatpush1.msra.mxu0 %v1484
        %1509 = vmatprep.subr.mxu0 0.0
        %1510 = vmatpush1.msra.mxu0 %v1485
        %1511 = vmatprep.subr.mxu0 0.0
        %1512 = vmatpush1.msra.mxu0 %v1486
        %1513 = vmatprep.subr.mxu0 0.0
        %1514 = vmatpush1.msra.mxu0 %v1487
        %1515 = vmatprep.subr.mxu0 0.0
        %1516 = vmatpush1.msra.mxu0 %v1488
        %1517 = vmatprep.subr.mxu0 0.0
        %1518 = vmatpush1.msra.mxu0 %v1489
        %1519 = vmatprep.subr.mxu0 0.0
        %1520 = vmatpush1.msra.mxu0 %v1490
        %1521 = vmatprep.subr.mxu0 0.0
        %1522 = vmatpush1.msra.mxu0 %v1491
        %1523 = vmatprep.subr.mxu0 0.0
        %1524 = vmatpush1.msra.mxu0 %v1492
        %1525 = vmatprep.subr.mxu0 0.0
        %1526 = vmatpush1.msra.mxu0 0.0
        %1527 = vmatprep.subr.mxu0 0.0
        %1528 = vmatpush1.msra.mxu0 0.0
        %1529 = vmatprep.subr.mxu0 0.0
        %1530 = vmatpush1.msra.mxu0 0.0
        %1531 = vmatprep.subr.mxu0 0.0
        %1532 = vmatpush1.msra.mxu0 0.0
        %1533 = vmatprep.subr.mxu0 0.0
        %1534 = vmatpush1.msra.mxu0 0.0
        %1535 = vmatprep.subr.mxu0 0.0
        %1536 = vmatpush1.msra.mxu0 0.0
        %1537 = vmatprep.subr.mxu0 0.0
        %1538 = vmatpush1.msra.mxu0 0.0
        %1539 = vmatprep.subr.mxu0 0.0
        %1540 = vmatpush1.msra.mxu0 0.0
        %1541 = vmatprep.subr.mxu0 0.0
        %1542 = vmatpush1.msra.mxu0 0.0
        %1543 = vmatprep.subr.mxu0 0.0
        %1544 = vmatpush1.msra.mxu0 0.0
        %1545 = vmatprep.subr.mxu0 0.0
        %1546 = vmatpush1.msra.mxu0 0.0
        %1547 = vmatprep.subr.mxu0 0.0
        %1548 = vmatpush1.msra.mxu0 0.0
        %1549 = vmatprep.subr.mxu0 0.0
        %1550 = vmatpush1.msra.mxu0 0.0
        %1551 = vmatprep.subr.mxu0 0.0
        %1552 = vmatpush1.msra.mxu0 0.0
        %1553 = vmatprep.subr.mxu0 0.0
        %1554 = vmatpush1.msra.mxu0 0.0
        %1555 = vmatprep.subr.mxu0 0.0
        %1556 = vmatpush1.msra.mxu0 0.0
        %1557 = vmatprep.mubr.f32.mxu0 0.0
        %1558 = vmatmul.mubr.f32.gmra.mrb[0].mxu0 %v1410
        %v1559 = vpop.f32.mrb[0].mxu0
        %v1560 = vadd.f32 0.0, %v1559
        %v1561 = vpop.f32.mrb[0].mxu0
        %1562 = vdwg.mxu0
        %v1563 = vmul.f32 %v1302, 0.95
        %v1564 = vadd.f32 %v1563, %v1560
        %v1565 = vsel %vm1303, %v1560, %v1564
        %vm1566 = vcmp.gt.f32.partialorder %v1565, 1.0
        %v1567 = vsel %vm1566, 1, 0
        %v1568 = vcvt.s32.f32 %v1567
        %v1570 = vcombine.high %v1568, %v1568
        %v1572 = vunpack.c.l.s4 1966171168
        %v1573 = vunpack.c.0.s8 %v1572
        %v1574 = vlaneseq
        %v1575 = vshrl.u32 %v1574, 7
        %v1576 = vsub.s32 %v1573, %v1575
        %v1577 = vrot.slane %v1568, %v1576
        %v1579 = vunpack.c.l.s4 1966171168
        %v1580 = vunpack.c.0.s8 %v1579
        %v1581 = vlaneseq
        %v1582 = vshrl.u32 %v1581, 7
        %v1583 = vsub.s32 %v1580, %v1582
        %v1584 = vrot.slane %v1570, %v1583
        %v1585 = vcombine.high %v1577, %v1577
        %v1586 = vcombine.high %v1584, %v1584
        %v1588 = vunpack.c.l.s4 1966171168
        %v1589 = vunpack.c.0.s8 %v1588
        %v1590 = vlaneseq
        %v1591 = vshrl.u32 %v1590, 7
        %v1592 = vsub.s32 %v1589, %v1591
        %v1593 = vrot.slane %v1577, %v1592
        %v1595 = vunpack.c.l.s4 1966171168
        %v1596 = vunpack.c.0.s8 %v1595
        %v1597 = vlaneseq
        %v1598 = vshrl.u32 %v1597, 7
        %v1599 = vsub.s32 %v1596, %v1598
        %v1600 = vrot.slane %v1584, %v1599
        %v1602 = vunpack.c.l.s4 1966171168
        %v1603 = vunpack.c.0.s8 %v1602
        %v1604 = vlaneseq
        %v1605 = vshrl.u32 %v1604, 7
        %v1606 = vsub.s32 %v1603, %v1605
        %v1607 = vrot.slane %v1585, %v1606
        %v1609 = vunpack.c.l.s4 1966171168
        %v1610 = vunpack.c.0.s8 %v1609
        %v1611 = vlaneseq
        %v1612 = vshrl.u32 %v1611, 7
        %v1613 = vsub.s32 %v1610, %v1612
        %v1614 = vrot.slane %v1586, %v1613
        %v1615 = vcombine.high %v1593, %v1593
        %v1616 = vcombine.high %v1600, %v1600
        %v1617 = vcombine.high %v1607, %v1607
        %v1618 = vcombine.high %v1614, %v1614
        %1627 = vst [vmem:[%s293 + $0x4] sm:$0x1] %v1593
        %1628 = vst [vmem:[%s293 + $0xc] sm:$0x1] %v1607
        %1629 = vst [vmem:[%s293 + $0x14] sm:$0x1] %v1615
        %1630 = vst [vmem:[%s293 + $0x1c] sm:$0x1] %v1617
        %1631 = vst [vmem:[%s293 + $0x24] sm:$0x1] %v1600
        %1632 = vst [vmem:[%s293 + $0x2c] sm:$0x1] %v1614
        %1633 = vst [vmem:[%s293 + $0x34] sm:$0x1] %v1616
        %1634 = vst [vmem:[%s293 + $0x3c] sm:$0x1] %v1618
        %s1635 = scalar_lea.vmem %s302, 32
        %1636 = vst [vmem:[%s1635] sm:$0xff] %v1565
        %v1637 = vld [vmem:[%s260 + $0x5] sm:$0x1]
        %v1638 = vld [vmem:[%s260 + $0xd] sm:$0x1]
        %v1639 = vld [vmem:[%s260 + $0x15] sm:$0x1]
        %v1640 = vld [vmem:[%s260 + $0x1d] sm:$0x1]
        %v1641 = vld [vmem:[%s260 + $0x25] sm:$0x1]
        %v1642 = vld [vmem:[%s260 + $0x2d] sm:$0x1]
        %v1643 = vld [vmem:[%s260 + $0x35] sm:$0x1]
        %v1644 = vld [vmem:[%s260 + $0x3d] sm:$0x1]
        %v1645 = vmul.f32 %v1407, 0.95
        %v1654 = vrot.slane %v1638, 7
        %v1655 = vsel %vm333, %v1654, %v1637
        %v1656 = vrot.slane %v1639, 6
        %v1657 = vsel %vm336, %v1656, %v1655
        %v1658 = vrot.slane %v1640, 5
        %v1659 = vsel %vm339, %v1658, %v1657
        %v1660 = vrot.slane %v1641, 4
        %v1661 = vsel %vm342, %v1660, %v1659
        %v1662 = vrot.slane %v1642, 3
        %v1663 = vsel %vm345, %v1662, %v1661
        %v1664 = vrot.slane %v1643, 2
        %v1665 = vsel %vm348, %v1664, %v1663
        %v1666 = vrot.slane %v1644, 1
        %v1667 = vsel %vm351, %v1666, %v1665
        %v1669 = vadd.f32 %v1645, %v1667
        %v1670 = vsel %vm1408, %v1667, %v1669
        %vm1671 = vcmp.gt.f32.partialorder %v1670, 1.0
        %v1672 = vsel %vm1671, 1, 0
        %v1673 = vcvt.s32.f32 %v1672
        %v1675 = vcombine.high %v1673, %v1673
        %v1677 = vunpack.c.l.s4 1966171168
        %v1678 = vunpack.c.0.s8 %v1677
        %v1679 = vlaneseq
        %v1680 = vshrl.u32 %v1679, 7
        %v1681 = vsub.s32 %v1678, %v1680
        %v1682 = vrot.slane %v1673, %v1681
        %v1684 = vunpack.c.l.s4 1966171168
        %v1685 = vunpack.c.0.s8 %v1684
        %v1686 = vlaneseq
        %v1687 = vshrl.u32 %v1686, 7
        %v1688 = vsub.s32 %v1685, %v1687
        %v1689 = vrot.slane %v1675, %v1688
        %v1690 = vcombine.high %v1682, %v1682
        %v1691 = vcombine.high %v1689, %v1689
        %v1693 = vunpack.c.l.s4 1966171168
        %v1694 = vunpack.c.0.s8 %v1693
        %v1695 = vlaneseq
        %v1696 = vshrl.u32 %v1695, 7
        %v1697 = vsub.s32 %v1694, %v1696
        %v1698 = vrot.slane %v1682, %v1697
        %v1700 = vunpack.c.l.s4 1966171168
        %v1701 = vunpack.c.0.s8 %v1700
        %v1702 = vlaneseq
        %v1703 = vshrl.u32 %v1702, 7
        %v1704 = vsub.s32 %v1701, %v1703
        %v1705 = vrot.slane %v1689, %v1704
        %v1707 = vunpack.c.l.s4 1966171168
        %v1708 = vunpack.c.0.s8 %v1707
        %v1709 = vlaneseq
        %v1710 = vshrl.u32 %v1709, 7
        %v1711 = vsub.s32 %v1708, %v1710
        %v1712 = vrot.slane %v1690, %v1711
        %v1714 = vunpack.c.l.s4 1966171168
        %v1715 = vunpack.c.0.s8 %v1714
        %v1716 = vlaneseq
        %v1717 = vshrl.u32 %v1716, 7
        %v1718 = vsub.s32 %v1715, %v1717
        %v1719 = vrot.slane %v1691, %v1718
        %v1720 = vcombine.high %v1698, %v1698
        %v1721 = vcombine.high %v1705, %v1705
        %v1722 = vcombine.high %v1712, %v1712
        %v1723 = vcombine.high %v1719, %v1719
        %1732 = vst [vmem:[%s287 + $0x5] sm:$0x1] %v1698
        %1733 = vst [vmem:[%s287 + $0xd] sm:$0x1] %v1712
        %1734 = vst [vmem:[%s287 + $0x15] sm:$0x1] %v1720
        %1735 = vst [vmem:[%s287 + $0x1d] sm:$0x1] %v1722
        %1736 = vst [vmem:[%s287 + $0x25] sm:$0x1] %v1705
        %1737 = vst [vmem:[%s287 + $0x2d] sm:$0x1] %v1719
        %1738 = vst [vmem:[%s287 + $0x35] sm:$0x1] %v1721
        %1739 = vst [vmem:[%s287 + $0x3d] sm:$0x1] %v1723
        %v1740 = vld [vmem:[%s1] sm:$0xff]
        %v1741 = vld [vmem:[%s1 + $0x8] sm:$0xff]
        %v1742 = vld [vmem:[%s1 + $0x10] sm:$0xff]
        %v1743 = vld [vmem:[%s1 + $0x18] sm:$0xff]
        %v1744 = vld [vmem:[%s1 + $0x20] sm:$0xff]
        %v1745 = vld [vmem:[%s1 + $0x28] sm:$0xff]
        %v1746 = vld [vmem:[%s1 + $0x30] sm:$0xff]
        %v1747 = vld [vmem:[%s1 + $0x38] sm:$0xff]
        %v1748 = vld [vmem:[%s1 + $0x40] sm:$0xff]
        %v1749 = vld [vmem:[%s1 + $0x48] sm:$0xff]
        %v1750 = vld [vmem:[%s1 + $0x50] sm:$0xff]
        %v1751 = vld [vmem:[%s1 + $0x58] sm:$0xff]
        %v1752 = vld [vmem:[%s1 + $0x60] sm:$0xff]
        %v1753 = vld [vmem:[%s1 + $0x68] sm:$0xff]
        %v1754 = vld [vmem:[%s1 + $0x70] sm:$0xff]
        %v1755 = vld [vmem:[%s1 + $0x78] sm:$0xff]
        %1756 = vmatprep.subr.mxu0 0.0
        %1757 = vmatpush1.msra.mxu0 %v1740
        %1758 = vmatprep.subr.mxu0 0.0
        %1759 = vmatpush1.msra.mxu0 %v1741
        %1760 = vmatprep.subr.mxu0 0.0
        %1761 = vmatpush1.msra.mxu0 %v1742
        %1762 = vmatprep.subr.mxu0 0.0
        %1763 = vmatpush1.msra.mxu0 %v1743
        %1764 = vmatprep.subr.mxu0 0.0
        %1765 = vmatpush1.msra.mxu0 %v1744
        %1766 = vmatprep.subr.mxu0 0.0
        %1767 = vmatpush1.msra.mxu0 %v1745
        %1768 = vmatprep.subr.mxu0 0.0
        %1769 = vmatpush1.msra.mxu0 %v1746
        %1770 = vmatprep.subr.mxu0 0.0
        %1771 = vmatpush1.msra.mxu0 %v1747
        %1772 = vmatprep.subr.mxu0 0.0
        %1773 = vmatpush1.msra.mxu0 %v1748
        %1774 = vmatprep.subr.mxu0 0.0
        %1775 = vmatpush1.msra.mxu0 %v1749
        %1776 = vmatprep.subr.mxu0 0.0
        %1777 = vmatpush1.msra.mxu0 %v1750
        %1778 = vmatprep.subr.mxu0 0.0
        %1779 = vmatpush1.msra.mxu0 %v1751
        %1780 = vmatprep.subr.mxu0 0.0
        %1781 = vmatpush1.msra.mxu0 %v1752
        %1782 = vmatprep.subr.mxu0 0.0
        %1783 = vmatpush1.msra.mxu0 %v1753
        %1784 = vmatprep.subr.mxu0 0.0
        %1785 = vmatpush1.msra.mxu0 %v1754
        %1786 = vmatprep.subr.mxu0 0.0
        %1787 = vmatpush1.msra.mxu0 %v1755
        %1788 = vmatprep.subr.mxu0 0.0
        %1789 = vmatpush1.msra.mxu0 0.0
        %1790 = vmatprep.subr.mxu0 0.0
        %1791 = vmatpush1.msra.mxu0 0.0
        %1792 = vmatprep.subr.mxu0 0.0
        %1793 = vmatpush1.msra.mxu0 0.0
        %1794 = vmatprep.subr.mxu0 0.0
        %1795 = vmatpush1.msra.mxu0 0.0
        %1796 = vmatprep.subr.mxu0 0.0
        %1797 = vmatpush1.msra.mxu0 0.0
        %1798 = vmatprep.subr.mxu0 0.0
        %1799 = vmatpush1.msra.mxu0 0.0
        %1800 = vmatprep.subr.mxu0 0.0
        %1801 = vmatpush1.msra.mxu0 0.0
        %1802 = vmatprep.subr.mxu0 0.0
        %1803 = vmatpush1.msra.mxu0 0.0
        %1804 = vmatprep.subr.mxu0 0.0
        %1805 = vmatpush1.msra.mxu0 0.0
        %1806 = vmatprep.subr.mxu0 0.0
        %1807 = vmatpush1.msra.mxu0 0.0
        %1808 = vmatprep.subr.mxu0 0.0
        %1809 = vmatpush1.msra.mxu0 0.0
        %1810 = vmatprep.subr.mxu0 0.0
        %1811 = vmatpush1.msra.mxu0 0.0
        %1812 = vmatprep.subr.mxu0 0.0
        %1813 = vmatpush1.msra.mxu0 0.0
        %1814 = vmatprep.subr.mxu0 0.0
        %1815 = vmatpush1.msra.mxu0 0.0
        %1816 = vmatprep.subr.mxu0 0.0
        %1817 = vmatpush1.msra.mxu0 0.0
        %1818 = vmatprep.subr.mxu0 0.0
        %1819 = vmatpush1.msra.mxu0 0.0
        %1820 = vmatprep.mubr.f32.mxu0 0.0
        %1821 = vmatmul.mubr.f32.gmra.mrb[0].mxu0 %v1673
        %v1822 = vpop.f32.mrb[0].mxu0
        %v1823 = vadd.f32 0.0, %v1822
        %v1824 = vpop.f32.mrb[0].mxu0
        %1825 = vdwg.mxu0
        %v1826 = vmul.f32 %v1565, 0.95
        %v1827 = vadd.f32 %v1826, %v1823
        %v1828 = vsel %vm1566, %v1823, %v1827
        %vm1829 = vcmp.gt.f32.partialorder %v1828, 1.0
        %v1830 = vsel %vm1829, 1, 0
        %v1831 = vcvt.s32.f32 %v1830
        %v1833 = vcombine.high %v1831, %v1831
        %v1835 = vunpack.c.l.s4 1966171168
        %v1836 = vunpack.c.0.s8 %v1835
        %v1837 = vlaneseq
        %v1838 = vshrl.u32 %v1837, 7
        %v1839 = vsub.s32 %v1836, %v1838
        %v1840 = vrot.slane %v1831, %v1839
        %v1842 = vunpack.c.l.s4 1966171168
        %v1843 = vunpack.c.0.s8 %v1842
        %v1844 = vlaneseq
        %v1845 = vshrl.u32 %v1844, 7
        %v1846 = vsub.s32 %v1843, %v1845
        %v1847 = vrot.slane %v1833, %v1846
        %v1848 = vcombine.high %v1840, %v1840
        %v1849 = vcombine.high %v1847, %v1847
        %v1851 = vunpack.c.l.s4 1966171168
        %v1852 = vunpack.c.0.s8 %v1851
        %v1853 = vlaneseq
        %v1854 = vshrl.u32 %v1853, 7
        %v1855 = vsub.s32 %v1852, %v1854
        %v1856 = vrot.slane %v1840, %v1855
        %v1858 = vunpack.c.l.s4 1966171168
        %v1859 = vunpack.c.0.s8 %v1858
        %v1860 = vlaneseq
        %v1861 = vshrl.u32 %v1860, 7
        %v1862 = vsub.s32 %v1859, %v1861
        %v1863 = vrot.slane %v1847, %v1862
        %v1865 = vunpack.c.l.s4 1966171168
        %v1866 = vunpack.c.0.s8 %v1865
        %v1867 = vlaneseq
        %v1868 = vshrl.u32 %v1867, 7
        %v1869 = vsub.s32 %v1866, %v1868
        %v1870 = vrot.slane %v1848, %v1869
        %v1872 = vunpack.c.l.s4 1966171168
        %v1873 = vunpack.c.0.s8 %v1872
        %v1874 = vlaneseq
        %v1875 = vshrl.u32 %v1874, 7
        %v1876 = vsub.s32 %v1873, %v1875
        %v1877 = vrot.slane %v1849, %v1876
        %v1878 = vcombine.high %v1856, %v1856
        %v1879 = vcombine.high %v1863, %v1863
        %v1880 = vcombine.high %v1870, %v1870
        %v1881 = vcombine.high %v1877, %v1877
        %1890 = vst [vmem:[%s293 + $0x5] sm:$0x1] %v1856
        %1891 = vst [vmem:[%s293 + $0xd] sm:$0x1] %v1870
        %1892 = vst [vmem:[%s293 + $0x15] sm:$0x1] %v1878
        %1893 = vst [vmem:[%s293 + $0x1d] sm:$0x1] %v1880
        %1894 = vst [vmem:[%s293 + $0x25] sm:$0x1] %v1863
        %1895 = vst [vmem:[%s293 + $0x2d] sm:$0x1] %v1877
        %1896 = vst [vmem:[%s293 + $0x35] sm:$0x1] %v1879
        %1897 = vst [vmem:[%s293 + $0x3d] sm:$0x1] %v1881
        %s1898 = scalar_lea.vmem %s302, 40
        %1899 = vst [vmem:[%s1898] sm:$0xff] %v1828
        %v1900 = vld [vmem:[%s260 + $0x6] sm:$0x1]
        %v1901 = vld [vmem:[%s260 + $0xe] sm:$0x1]
        %v1902 = vld [vmem:[%s260 + $0x16] sm:$0x1]
        %v1903 = vld [vmem:[%s260 + $0x1e] sm:$0x1]
        %v1904 = vld [vmem:[%s260 + $0x26] sm:$0x1]
        %v1905 = vld [vmem:[%s260 + $0x2e] sm:$0x1]
        %v1906 = vld [vmem:[%s260 + $0x36] sm:$0x1]
        %v1907 = vld [vmem:[%s260 + $0x3e] sm:$0x1]
        %v1908 = vmul.f32 %v1670, 0.95
        %v1917 = vrot.slane %v1901, 7
        %v1918 = vsel %vm333, %v1917, %v1900
        %v1919 = vrot.slane %v1902, 6
        %v1920 = vsel %vm336, %v1919, %v1918
        %v1921 = vrot.slane %v1903, 5
        %v1922 = vsel %vm339, %v1921, %v1920
        %v1923 = vrot.slane %v1904, 4
        %v1924 = vsel %vm342, %v1923, %v1922
        %v1925 = vrot.slane %v1905, 3
        %v1926 = vsel %vm345, %v1925, %v1924
        %v1927 = vrot.slane %v1906, 2
        %v1928 = vsel %vm348, %v1927, %v1926
        %v1929 = vrot.slane %v1907, 1
        %v1930 = vsel %vm351, %v1929, %v1928
        %v1932 = vadd.f32 %v1908, %v1930
        %v1933 = vsel %vm1671, %v1930, %v1932
        %vm1934 = vcmp.gt.f32.partialorder %v1933, 1.0
        %v1935 = vsel %vm1934, 1, 0
        %v1936 = vcvt.s32.f32 %v1935
        %v1938 = vcombine.high %v1936, %v1936
        %v1940 = vunpack.c.l.s4 1966171168
        %v1941 = vunpack.c.0.s8 %v1940
        %v1942 = vlaneseq
        %v1943 = vshrl.u32 %v1942, 7
        %v1944 = vsub.s32 %v1941, %v1943
        %v1945 = vrot.slane %v1936, %v1944
        %v1947 = vunpack.c.l.s4 1966171168
        %v1948 = vunpack.c.0.s8 %v1947
        %v1949 = vlaneseq
        %v1950 = vshrl.u32 %v1949, 7
        %v1951 = vsub.s32 %v1948, %v1950
        %v1952 = vrot.slane %v1938, %v1951
        %v1953 = vcombine.high %v1945, %v1945
        %v1954 = vcombine.high %v1952, %v1952
        %v1956 = vunpack.c.l.s4 1966171168
        %v1957 = vunpack.c.0.s8 %v1956
        %v1958 = vlaneseq
        %v1959 = vshrl.u32 %v1958, 7
        %v1960 = vsub.s32 %v1957, %v1959
        %v1961 = vrot.slane %v1945, %v1960
        %v1963 = vunpack.c.l.s4 1966171168
        %v1964 = vunpack.c.0.s8 %v1963
        %v1965 = vlaneseq
        %v1966 = vshrl.u32 %v1965, 7
        %v1967 = vsub.s32 %v1964, %v1966
        %v1968 = vrot.slane %v1952, %v1967
        %v1970 = vunpack.c.l.s4 1966171168
        %v1971 = vunpack.c.0.s8 %v1970
        %v1972 = vlaneseq
        %v1973 = vshrl.u32 %v1972, 7
        %v1974 = vsub.s32 %v1971, %v1973
        %v1975 = vrot.slane %v1953, %v1974
        %v1977 = vunpack.c.l.s4 1966171168
        %v1978 = vunpack.c.0.s8 %v1977
        %v1979 = vlaneseq
        %v1980 = vshrl.u32 %v1979, 7
        %v1981 = vsub.s32 %v1978, %v1980
        %v1982 = vrot.slane %v1954, %v1981
        %v1983 = vcombine.high %v1961, %v1961
        %v1984 = vcombine.high %v1968, %v1968
        %v1985 = vcombine.high %v1975, %v1975
        %v1986 = vcombine.high %v1982, %v1982
        %1995 = vst [vmem:[%s287 + $0x6] sm:$0x1] %v1961
        %1996 = vst [vmem:[%s287 + $0xe] sm:$0x1] %v1975
        %1997 = vst [vmem:[%s287 + $0x16] sm:$0x1] %v1983
        %1998 = vst [vmem:[%s287 + $0x1e] sm:$0x1] %v1985
        %1999 = vst [vmem:[%s287 + $0x26] sm:$0x1] %v1968
        %2000 = vst [vmem:[%s287 + $0x2e] sm:$0x1] %v1982
        %2001 = vst [vmem:[%s287 + $0x36] sm:$0x1] %v1984
        %2002 = vst [vmem:[%s287 + $0x3e] sm:$0x1] %v1986
        %v2003 = vld [vmem:[%s1] sm:$0xff]
        %v2004 = vld [vmem:[%s1 + $0x8] sm:$0xff]
        %v2005 = vld [vmem:[%s1 + $0x10] sm:$0xff]
        %v2006 = vld [vmem:[%s1 + $0x18] sm:$0xff]
        %v2007 = vld [vmem:[%s1 + $0x20] sm:$0xff]
        %v2008 = vld [vmem:[%s1 + $0x28] sm:$0xff]
        %v2009 = vld [vmem:[%s1 + $0x30] sm:$0xff]
        %v2010 = vld [vmem:[%s1 + $0x38] sm:$0xff]
        %v2011 = vld [vmem:[%s1 + $0x40] sm:$0xff]
        %v2012 = vld [vmem:[%s1 + $0x48] sm:$0xff]
        %v2013 = vld [vmem:[%s1 + $0x50] sm:$0xff]
        %v2014 = vld [vmem:[%s1 + $0x58] sm:$0xff]
        %v2015 = vld [vmem:[%s1 + $0x60] sm:$0xff]
        %v2016 = vld [vmem:[%s1 + $0x68] sm:$0xff]
        %v2017 = vld [vmem:[%s1 + $0x70] sm:$0xff]
        %v2018 = vld [vmem:[%s1 + $0x78] sm:$0xff]
        %2019 = vmatprep.subr.mxu0 0.0
        %2020 = vmatpush1.msra.mxu0 %v2003
        %2021 = vmatprep.subr.mxu0 0.0
        %2022 = vmatpush1.msra.mxu0 %v2004
        %2023 = vmatprep.subr.mxu0 0.0
        %2024 = vmatpush1.msra.mxu0 %v2005
        %2025 = vmatprep.subr.mxu0 0.0
        %2026 = vmatpush1.msra.mxu0 %v2006
        %2027 = vmatprep.subr.mxu0 0.0
        %2028 = vmatpush1.msra.mxu0 %v2007
        %2029 = vmatprep.subr.mxu0 0.0
        %2030 = vmatpush1.msra.mxu0 %v2008
        %2031 = vmatprep.subr.mxu0 0.0
        %2032 = vmatpush1.msra.mxu0 %v2009
        %2033 = vmatprep.subr.mxu0 0.0
        %2034 = vmatpush1.msra.mxu0 %v2010
        %2035 = vmatprep.subr.mxu0 0.0
        %2036 = vmatpush1.msra.mxu0 %v2011
        %2037 = vmatprep.subr.mxu0 0.0
        %2038 = vmatpush1.msra.mxu0 %v2012
        %2039 = vmatprep.subr.mxu0 0.0
        %2040 = vmatpush1.msra.mxu0 %v2013
        %2041 = vmatprep.subr.mxu0 0.0
        %2042 = vmatpush1.msra.mxu0 %v2014
        %2043 = vmatprep.subr.mxu0 0.0
        %2044 = vmatpush1.msra.mxu0 %v2015
        %2045 = vmatprep.subr.mxu0 0.0
        %2046 = vmatpush1.msra.mxu0 %v2016
        %2047 = vmatprep.subr.mxu0 0.0
        %2048 = vmatpush1.msra.mxu0 %v2017
        %2049 = vmatprep.subr.mxu0 0.0
        %2050 = vmatpush1.msra.mxu0 %v2018
        %2051 = vmatprep.subr.mxu0 0.0
        %2052 = vmatpush1.msra.mxu0 0.0
        %2053 = vmatprep.subr.mxu0 0.0
        %2054 = vmatpush1.msra.mxu0 0.0
        %2055 = vmatprep.subr.mxu0 0.0
        %2056 = vmatpush1.msra.mxu0 0.0
        %2057 = vmatprep.subr.mxu0 0.0
        %2058 = vmatpush1.msra.mxu0 0.0
        %2059 = vmatprep.subr.mxu0 0.0
        %2060 = vmatpush1.msra.mxu0 0.0
        %2061 = vmatprep.subr.mxu0 0.0
        %2062 = vmatpush1.msra.mxu0 0.0
        %2063 = vmatprep.subr.mxu0 0.0
        %2064 = vmatpush1.msra.mxu0 0.0
        %2065 = vmatprep.subr.mxu0 0.0
        %2066 = vmatpush1.msra.mxu0 0.0
        %2067 = vmatprep.subr.mxu0 0.0
        %2068 = vmatpush1.msra.mxu0 0.0
        %2069 = vmatprep.subr.mxu0 0.0
        %2070 = vmatpush1.msra.mxu0 0.0
        %2071 = vmatprep.subr.mxu0 0.0
        %2072 = vmatpush1.msra.mxu0 0.0
        %2073 = vmatprep.subr.mxu0 0.0
        %2074 = vmatpush1.msra.mxu0 0.0
        %2075 = vmatprep.subr.mxu0 0.0
        %2076 = vmatpush1.msra.mxu0 0.0
        %2077 = vmatprep.subr.mxu0 0.0
        %2078 = vmatpush1.msra.mxu0 0.0
        %2079 = vmatprep.subr.mxu0 0.0
        %2080 = vmatpush1.msra.mxu0 0.0
        %2081 = vmatprep.subr.mxu0 0.0
        %2082 = vmatpush1.msra.mxu0 0.0
        %2083 = vmatprep.mubr.f32.mxu0 0.0
        %2084 = vmatmul.mubr.f32.gmra.mrb[0].mxu0 %v1936
        %v2085 = vpop.f32.mrb[0].mxu0
        %v2086 = vadd.f32 0.0, %v2085
        %v2087 = vpop.f32.mrb[0].mxu0
        %2088 = vdwg.mxu0
        %v2089 = vmul.f32 %v1828, 0.95
        %v2090 = vadd.f32 %v2089, %v2086
        %v2091 = vsel %vm1829, %v2086, %v2090
        %vm2092 = vcmp.gt.f32.partialorder %v2091, 1.0
        %v2093 = vsel %vm2092, 1, 0
        %v2094 = vcvt.s32.f32 %v2093
        %v2096 = vcombine.high %v2094, %v2094
        %v2098 = vunpack.c.l.s4 1966171168
        %v2099 = vunpack.c.0.s8 %v2098
        %v2100 = vlaneseq
        %v2101 = vshrl.u32 %v2100, 7
        %v2102 = vsub.s32 %v2099, %v2101
        %v2103 = vrot.slane %v2094, %v2102
        %v2105 = vunpack.c.l.s4 1966171168
        %v2106 = vunpack.c.0.s8 %v2105
        %v2107 = vlaneseq
        %v2108 = vshrl.u32 %v2107, 7
        %v2109 = vsub.s32 %v2106, %v2108
        %v2110 = vrot.slane %v2096, %v2109
        %v2111 = vcombine.high %v2103, %v2103
        %v2112 = vcombine.high %v2110, %v2110
        %v2114 = vunpack.c.l.s4 1966171168
        %v2115 = vunpack.c.0.s8 %v2114
        %v2116 = vlaneseq
        %v2117 = vshrl.u32 %v2116, 7
        %v2118 = vsub.s32 %v2115, %v2117
        %v2119 = vrot.slane %v2103, %v2118
        %v2121 = vunpack.c.l.s4 1966171168
        %v2122 = vunpack.c.0.s8 %v2121
        %v2123 = vlaneseq
        %v2124 = vshrl.u32 %v2123, 7
        %v2125 = vsub.s32 %v2122, %v2124
        %v2126 = vrot.slane %v2110, %v2125
        %v2128 = vunpack.c.l.s4 1966171168
        %v2129 = vunpack.c.0.s8 %v2128
        %v2130 = vlaneseq
        %v2131 = vshrl.u32 %v2130, 7
        %v2132 = vsub.s32 %v2129, %v2131
        %v2133 = vrot.slane %v2111, %v2132
        %v2135 = vunpack.c.l.s4 1966171168
        %v2136 = vunpack.c.0.s8 %v2135
        %v2137 = vlaneseq
        %v2138 = vshrl.u32 %v2137, 7
        %v2139 = vsub.s32 %v2136, %v2138
        %v2140 = vrot.slane %v2112, %v2139
        %v2141 = vcombine.high %v2119, %v2119
        %v2142 = vcombine.high %v2126, %v2126
        %v2143 = vcombine.high %v2133, %v2133
        %v2144 = vcombine.high %v2140, %v2140
        %2153 = vst [vmem:[%s293 + $0x6] sm:$0x1] %v2119
        %2154 = vst [vmem:[%s293 + $0xe] sm:$0x1] %v2133
        %2155 = vst [vmem:[%s293 + $0x16] sm:$0x1] %v2141
        %2156 = vst [vmem:[%s293 + $0x1e] sm:$0x1] %v2143
        %2157 = vst [vmem:[%s293 + $0x26] sm:$0x1] %v2126
        %2158 = vst [vmem:[%s293 + $0x2e] sm:$0x1] %v2140
        %2159 = vst [vmem:[%s293 + $0x36] sm:$0x1] %v2142
        %2160 = vst [vmem:[%s293 + $0x3e] sm:$0x1] %v2144
        %s2161 = scalar_lea.vmem %s302, 48
        %2162 = vst [vmem:[%s2161] sm:$0xff] %v2091
        %v2163 = vld [vmem:[%s260 + $0x7] sm:$0x1]
        %v2164 = vld [vmem:[%s260 + $0xf] sm:$0x1]
        %v2165 = vld [vmem:[%s260 + $0x17] sm:$0x1]
        %v2166 = vld [vmem:[%s260 + $0x1f] sm:$0x1]
        %v2167 = vld [vmem:[%s260 + $0x27] sm:$0x1]
        %v2168 = vld [vmem:[%s260 + $0x2f] sm:$0x1]
        %v2169 = vld [vmem:[%s260 + $0x37] sm:$0x1]
        %v2170 = vld [vmem:[%s260 + $0x3f] sm:$0x1]
        %v2171 = vmul.f32 %v1933, 0.95
        %v2180 = vrot.slane %v2164, 7
        %v2181 = vsel %vm333, %v2180, %v2163
        %v2182 = vrot.slane %v2165, 6
        %v2183 = vsel %vm336, %v2182, %v2181
        %v2184 = vrot.slane %v2166, 5
        %v2185 = vsel %vm339, %v2184, %v2183
        %v2186 = vrot.slane %v2167, 4
        %v2187 = vsel %vm342, %v2186, %v2185
        %v2188 = vrot.slane %v2168, 3
        %v2189 = vsel %vm345, %v2188, %v2187
        %v2190 = vrot.slane %v2169, 2
        %v2191 = vsel %vm348, %v2190, %v2189
        %v2192 = vrot.slane %v2170, 1
        %v2193 = vsel %vm351, %v2192, %v2191
        %v2195 = vadd.f32 %v2171, %v2193
        %v2196 = vsel %vm1934, %v2193, %v2195
        %vm2197 = vcmp.gt.f32.partialorder %v2196, 1.0
        %v2198 = vsel %vm2197, 1, 0
        %v2199 = vcvt.s32.f32 %v2198
        %v2201 = vcombine.high %v2199, %v2199
        %v2203 = vunpack.c.l.s4 1966171168
        %v2204 = vunpack.c.0.s8 %v2203
        %v2205 = vlaneseq
        %v2206 = vshrl.u32 %v2205, 7
        %v2207 = vsub.s32 %v2204, %v2206
        %v2208 = vrot.slane %v2199, %v2207
        %v2210 = vunpack.c.l.s4 1966171168
        %v2211 = vunpack.c.0.s8 %v2210
        %v2212 = vlaneseq
        %v2213 = vshrl.u32 %v2212, 7
        %v2214 = vsub.s32 %v2211, %v2213
        %v2215 = vrot.slane %v2201, %v2214
        %v2216 = vcombine.high %v2208, %v2208
        %v2217 = vcombine.high %v2215, %v2215
        %v2219 = vunpack.c.l.s4 1966171168
        %v2220 = vunpack.c.0.s8 %v2219
        %v2221 = vlaneseq
        %v2222 = vshrl.u32 %v2221, 7
        %v2223 = vsub.s32 %v2220, %v2222
        %v2224 = vrot.slane %v2208, %v2223
        %v2226 = vunpack.c.l.s4 1966171168
        %v2227 = vunpack.c.0.s8 %v2226
        %v2228 = vlaneseq
        %v2229 = vshrl.u32 %v2228, 7
        %v2230 = vsub.s32 %v2227, %v2229
        %v2231 = vrot.slane %v2215, %v2230
        %v2233 = vunpack.c.l.s4 1966171168
        %v2234 = vunpack.c.0.s8 %v2233
        %v2235 = vlaneseq
        %v2236 = vshrl.u32 %v2235, 7
        %v2237 = vsub.s32 %v2234, %v2236
        %v2238 = vrot.slane %v2216, %v2237
        %v2240 = vunpack.c.l.s4 1966171168
        %v2241 = vunpack.c.0.s8 %v2240
        %v2242 = vlaneseq
        %v2243 = vshrl.u32 %v2242, 7
        %v2244 = vsub.s32 %v2241, %v2243
        %v2245 = vrot.slane %v2217, %v2244
        %v2246 = vcombine.high %v2224, %v2224
        %v2247 = vcombine.high %v2231, %v2231
        %v2248 = vcombine.high %v2238, %v2238
        %v2249 = vcombine.high %v2245, %v2245
        %2258 = vst [vmem:[%s287 + $0x7] sm:$0x1] %v2224
        %2259 = vst [vmem:[%s287 + $0xf] sm:$0x1] %v2238
        %2260 = vst [vmem:[%s287 + $0x17] sm:$0x1] %v2246
        %2261 = vst [vmem:[%s287 + $0x1f] sm:$0x1] %v2248
        %2262 = vst [vmem:[%s287 + $0x27] sm:$0x1] %v2231
        %2263 = vst [vmem:[%s287 + $0x2f] sm:$0x1] %v2245
        %2264 = vst [vmem:[%s287 + $0x37] sm:$0x1] %v2247
        %2265 = vst [vmem:[%s287 + $0x3f] sm:$0x1] %v2249
        %v2266 = vld [vmem:[%s1] sm:$0xff]
        %v2267 = vld [vmem:[%s1 + $0x8] sm:$0xff]
        %v2268 = vld [vmem:[%s1 + $0x10] sm:$0xff]
        %v2269 = vld [vmem:[%s1 + $0x18] sm:$0xff]
        %v2270 = vld [vmem:[%s1 + $0x20] sm:$0xff]
        %v2271 = vld [vmem:[%s1 + $0x28] sm:$0xff]
        %v2272 = vld [vmem:[%s1 + $0x30] sm:$0xff]
        %v2273 = vld [vmem:[%s1 + $0x38] sm:$0xff]
        %v2274 = vld [vmem:[%s1 + $0x40] sm:$0xff]
        %v2275 = vld [vmem:[%s1 + $0x48] sm:$0xff]
        %v2276 = vld [vmem:[%s1 + $0x50] sm:$0xff]
        %v2277 = vld [vmem:[%s1 + $0x58] sm:$0xff]
        %v2278 = vld [vmem:[%s1 + $0x60] sm:$0xff]
        %v2279 = vld [vmem:[%s1 + $0x68] sm:$0xff]
        %v2280 = vld [vmem:[%s1 + $0x70] sm:$0xff]
        %v2281 = vld [vmem:[%s1 + $0x78] sm:$0xff]
        %2282 = vmatprep.subr.mxu0 0.0
        %2283 = vmatpush1.msra.mxu0 %v2266
        %2284 = vmatprep.subr.mxu0 0.0
        %2285 = vmatpush1.msra.mxu0 %v2267
        %2286 = vmatprep.subr.mxu0 0.0
        %2287 = vmatpush1.msra.mxu0 %v2268
        %2288 = vmatprep.subr.mxu0 0.0
        %2289 = vmatpush1.msra.mxu0 %v2269
        %2290 = vmatprep.subr.mxu0 0.0
        %2291 = vmatpush1.msra.mxu0 %v2270
        %2292 = vmatprep.subr.mxu0 0.0
        %2293 = vmatpush1.msra.mxu0 %v2271
        %2294 = vmatprep.subr.mxu0 0.0
        %2295 = vmatpush1.msra.mxu0 %v2272
        %2296 = vmatprep.subr.mxu0 0.0
        %2297 = vmatpush1.msra.mxu0 %v2273
        %2298 = vmatprep.subr.mxu0 0.0
        %2299 = vmatpush1.msra.mxu0 %v2274
        %2300 = vmatprep.subr.mxu0 0.0
        %2301 = vmatpush1.msra.mxu0 %v2275
        %2302 = vmatprep.subr.mxu0 0.0
        %2303 = vmatpush1.msra.mxu0 %v2276
        %2304 = vmatprep.subr.mxu0 0.0
        %2305 = vmatpush1.msra.mxu0 %v2277
        %2306 = vmatprep.subr.mxu0 0.0
        %2307 = vmatpush1.msra.mxu0 %v2278
        %2308 = vmatprep.subr.mxu0 0.0
        %2309 = vmatpush1.msra.mxu0 %v2279
        %2310 = vmatprep.subr.mxu0 0.0
        %2311 = vmatpush1.msra.mxu0 %v2280
        %2312 = vmatprep.subr.mxu0 0.0
        %2313 = vmatpush1.msra.mxu0 %v2281
        %2314 = vmatprep.subr.mxu0 0.0
        %2315 = vmatpush1.msra.mxu0 0.0
        %2316 = vmatprep.subr.mxu0 0.0
        %2317 = vmatpush1.msra.mxu0 0.0
        %2318 = vmatprep.subr.mxu0 0.0
        %2319 = vmatpush1.msra.mxu0 0.0
        %2320 = vmatprep.subr.mxu0 0.0
        %2321 = vmatpush1.msra.mxu0 0.0
        %2322 = vmatprep.subr.mxu0 0.0
        %2323 = vmatpush1.msra.mxu0 0.0
        %2324 = vmatprep.subr.mxu0 0.0
        %2325 = vmatpush1.msra.mxu0 0.0
        %2326 = vmatprep.subr.mxu0 0.0
        %2327 = vmatpush1.msra.mxu0 0.0
        %2328 = vmatprep.subr.mxu0 0.0
        %2329 = vmatpush1.msra.mxu0 0.0
        %2330 = vmatprep.subr.mxu0 0.0
        %2331 = vmatpush1.msra.mxu0 0.0
        %2332 = vmatprep.subr.mxu0 0.0
        %2333 = vmatpush1.msra.mxu0 0.0
        %2334 = vmatprep.subr.mxu0 0.0
        %2335 = vmatpush1.msra.mxu0 0.0
        %2336 = vmatprep.subr.mxu0 0.0
        %2337 = vmatpush1.msra.mxu0 0.0
        %2338 = vmatprep.subr.mxu0 0.0
        %2339 = vmatpush1.msra.mxu0 0.0
        %2340 = vmatprep.subr.mxu0 0.0
        %2341 = vmatpush1.msra.mxu0 0.0
        %2342 = vmatprep.subr.mxu0 0.0
        %2343 = vmatpush1.msra.mxu0 0.0
        %2344 = vmatprep.subr.mxu0 0.0
        %2345 = vmatpush1.msra.mxu0 0.0
        %2346 = vmatprep.mubr.f32.mxu0 0.0
        %2347 = vmatmul.mubr.f32.gmra.mrb[0].mxu0 %v2199
        %v2348 = vpop.f32.mrb[0].mxu0
        %v2349 = vadd.f32 0.0, %v2348
        %v2350 = vpop.f32.mrb[0].mxu0
        %2351 = vdwg.mxu0
        %v2352 = vmul.f32 %v2091, 0.95
        %v2353 = vadd.f32 %v2352, %v2349
        %v2354 = vsel %vm2092, %v2349, %v2353
        %vm2355 = vcmp.gt.f32.partialorder %v2354, 1.0
        %v2356 = vsel %vm2355, 1, 0
        %v2357 = vcvt.s32.f32 %v2356
        %v2359 = vcombine.high %v2357, %v2357
        %v2361 = vunpack.c.l.s4 1966171168
        %v2362 = vunpack.c.0.s8 %v2361
        %v2363 = vlaneseq
        %v2364 = vshrl.u32 %v2363, 7
        %v2365 = vsub.s32 %v2362, %v2364
        %v2366 = vrot.slane %v2357, %v2365
        %v2368 = vunpack.c.l.s4 1966171168
        %v2369 = vunpack.c.0.s8 %v2368
        %v2370 = vlaneseq
        %v2371 = vshrl.u32 %v2370, 7
        %v2372 = vsub.s32 %v2369, %v2371
        %v2373 = vrot.slane %v2359, %v2372
        %v2374 = vcombine.high %v2366, %v2366
        %v2375 = vcombine.high %v2373, %v2373
        %v2377 = vunpack.c.l.s4 1966171168
        %v2378 = vunpack.c.0.s8 %v2377
        %v2379 = vlaneseq
        %v2380 = vshrl.u32 %v2379, 7
        %v2381 = vsub.s32 %v2378, %v2380
        %v2382 = vrot.slane %v2366, %v2381
        %v2384 = vunpack.c.l.s4 1966171168
        %v2385 = vunpack.c.0.s8 %v2384
        %v2386 = vlaneseq
        %v2387 = vshrl.u32 %v2386, 7
        %v2388 = vsub.s32 %v2385, %v2387
        %v2389 = vrot.slane %v2373, %v2388
        %v2391 = vunpack.c.l.s4 1966171168
        %v2392 = vunpack.c.0.s8 %v2391
        %v2393 = vlaneseq
        %v2394 = vshrl.u32 %v2393, 7
        %v2395 = vsub.s32 %v2392, %v2394
        %v2396 = vrot.slane %v2374, %v2395
        %v2398 = vunpack.c.l.s4 1966171168
        %v2399 = vunpack.c.0.s8 %v2398
        %v2400 = vlaneseq
        %v2401 = vshrl.u32 %v2400, 7
        %v2402 = vsub.s32 %v2399, %v2401
        %v2403 = vrot.slane %v2375, %v2402
        %v2404 = vcombine.high %v2382, %v2382
        %v2405 = vcombine.high %v2389, %v2389
        %v2406 = vcombine.high %v2396, %v2396
        %v2407 = vcombine.high %v2403, %v2403
        %2416 = vst [vmem:[%s293 + $0x7] sm:$0x1] %v2382
        %2417 = vst [vmem:[%s293 + $0xf] sm:$0x1] %v2396
        %2418 = vst [vmem:[%s293 + $0x17] sm:$0x1] %v2404
        %2419 = vst [vmem:[%s293 + $0x1f] sm:$0x1] %v2406
        %2420 = vst [vmem:[%s293 + $0x27] sm:$0x1] %v2389
        %2421 = vst [vmem:[%s293 + $0x2f] sm:$0x1] %v2403
        %2422 = vst [vmem:[%s293 + $0x37] sm:$0x1] %v2405
        %2423 = vst [vmem:[%s293 + $0x3f] sm:$0x1] %v2407
        %s2424 = scalar_lea.vmem %s302, 56
        %2425 = vst [vmem:[%s2424] sm:$0xff] %v2354
        %2426 = vst [vmem:[#allocation2] sm:$0xff] %v2196
        %2427 = vst [vmem:[#allocation3] sm:$0xff] %v2354
        %s2428 = smul.u32 8, %s21
        %p2429 = scmp.lt.s32.totalorder %s2428, 15
        %s2430 = scalar_select %p2429, %s2428, 15
        %p2431 = scmp.lt.s32.totalorder %s20, 0
        %s2432 = scalar_select %p2431, %s20, 0
        %s2433 = sadd.s32 %s2432, %s2430
        %s2434 = smul.addr %s2433, 8
        %s2435 = scalar_lea.vmem %s2, %s2434
        %s2436 = sand.u32 %s115, 1
        %s2437 = sand.u32 %s115, 1
        %s2438 = smul.addr %s2437, 64
        %s2439 = scalar_lea.vmem [#allocation5], %s2438
        %s2440 = sand.u32 %s143, 1
        %s2441 = sand.u32 %s143, 1
        %s2442 = smul.addr %s2441, 64
        %s2443 = scalar_lea.vmem [#allocation6], %s2442
        // Predicated region
        $region71: #{spiking_mlp_forward.1} parent=61 // pred_check
          %p2444 = pneg %p97
        $region72: #{spiking_mlp_forward.1} parent=61 // pred_check_branch
          %2446 = sbr.rel (%p2444) target = $region74
        $region73: #{spiking_mlp_forward.1} parent=61 // pred_region
          %s2447 = smul.u32 8, %s21
        $region74: #{spiking_mlp_forward.1} parent=61 // pred_fallthru
          _
        // Predicated region
        $region75: #{spiking_mlp_forward.1} parent=61 // pred_check
          %p2448 = pneg %p125
        $region76: #{spiking_mlp_forward.1} parent=61 // pred_check_branch
          %2450 = sbr.rel (%p2448) target = $region78
        $region77: #{spiking_mlp_forward.1} parent=61 // pred_region
          %s2451 = smul.u32 8, %s20
          %s2452 = smul.addr %s2451, 2
          %s2453 = sadd.s32 %s21, %s2452
          %s2454 = smul.addr %s2453, 8
          %s2455 = scalar_lea.vmem %s3, %s2454
          // Predicated region
          $region79: #{spiking_mlp_forward.1} parent=77 // pred_check
            _
          $region80: #{spiking_mlp_forward.1} parent=77 // pred_check_branch
            %2457 = sbr.rel (0) target = $region82
          $region81: #{spiking_mlp_forward.1} parent=77 // pred_region
            // Predicated region
            $region83: #{spiking_mlp_forward.1} parent=81 // pred_check
              _
            $region84: #{spiking_mlp_forward.1} parent=81 // pred_check_branch
              %2459 = sbr.rel (0) target = $region86
            $region85: #{spiking_mlp_forward.1} parent=81 // pred_region
              // Predicated region
              $region98: #{spiking_mlp_forward.1} parent=85 // pred_check
                _
              $region99: #{spiking_mlp_forward.1} parent=85 // pred_check_branch
                %2488 = sbr.rel (0) target = $region101
              $region100: #{spiking_mlp_forward.1} parent=85 // pred_region
                loop: start=0, step=1, limit=1
                $region102: #{spiking_mlp_forward.1} parent=100 // loop_pre_header
                  _
                $region103: #{spiking_mlp_forward.1} parent=100 // loop_header
                  %s2490 = sphi 0, %s2494
                  %p2491 = scmp.ge.s32.totalorder %s2490, 1
                  %s2495 = sphi %s2439, %s2439
                  %s2496 = sphi %s2455, %s2455
                $region104: #{spiking_mlp_forward.1} parent=100 // loop_header_branch
                  %2493 = sbr.rel (%p2491) target = $region108
                $region105: #{spiking_mlp_forward.1} parent=100 // loop_body
                  %v2497 = vld [vmem:[%s2495] sm:$0xff]
                  %2498 = vst [vmem:[%s2496] sm:$0xff] %v2497
                  %v2499 = vld [vmem:[%s2495 + $0x8] sm:$0xff]
                  %2500 = vst [vmem:[%s2496 + $0x10] sm:$0xff] %v2499
                  %v2501 = vld [vmem:[%s2495 + $0x10] sm:$0xff]
                  %2502 = vst [vmem:[%s2496 + $0x20] sm:$0xff] %v2501
                  %v2503 = vld [vmem:[%s2495 + $0x18] sm:$0xff]
                  %2504 = vst [vmem:[%s2496 + $0x30] sm:$0xff] %v2503
                  %v2505 = vld [vmem:[%s2495 + $0x20] sm:$0xff]
                  %2506 = vst [vmem:[%s2496 + $0x40] sm:$0xff] %v2505
                  %v2507 = vld [vmem:[%s2495 + $0x28] sm:$0xff]
                  %2508 = vst [vmem:[%s2496 + $0x50] sm:$0xff] %v2507
                  %v2509 = vld [vmem:[%s2495 + $0x30] sm:$0xff]
                  %2510 = vst [vmem:[%s2496 + $0x60] sm:$0xff] %v2509
                  %v2511 = vld [vmem:[%s2495 + $0x38] sm:$0xff]
                  %2512 = vst [vmem:[%s2496 + $0x70] sm:$0xff] %v2511
                $region106: #{spiking_mlp_forward.1} parent=100 // loop_footer
                  %s2494 = sadd.s32 1, %s2490
                $region107: #{spiking_mlp_forward.1} parent=100 // loop_footer_branch
                  %2489 = sbr.rel target = $region103
                $region108: #{spiking_mlp_forward.1} parent=100 // loop_exit
                  _
              $region101: #{spiking_mlp_forward.1} parent=85 // pred_fallthru
                _
              // Predicated region
              $region109: #{spiking_mlp_forward.1} parent=85 // pred_check
                _
              $region110: #{spiking_mlp_forward.1} parent=85 // pred_check_branch
                %2514 = sbr.rel target = $region112
              $region111: #{spiking_mlp_forward.1} parent=85 // pred_region
                _
              $region112: #{spiking_mlp_forward.1} parent=85 // pred_fallthru
                _
            $region86: #{spiking_mlp_forward.1} parent=81 // pred_fallthru
              _
            // Predicated region
            $region87: #{spiking_mlp_forward.1} parent=81 // pred_check
              _
            $region88: #{spiking_mlp_forward.1} parent=81 // pred_check_branch
              %2461 = sbr.rel target = $region90
            $region89: #{spiking_mlp_forward.1} parent=81 // pred_region
              loop: start=0, step=1, limit=1
              $region91: #{spiking_mlp_forward.1} parent=89 // loop_pre_header
                _
              $region92: #{spiking_mlp_forward.1} parent=89 // loop_header
                %s2464 = sphi 0, %s2468
                %p2465 = scmp.ge.s32.totalorder %s2464, 1
                %s2469 = sphi %s2439, %s2439
                %s2470 = sphi %s2455, %s2455
              $region93: #{spiking_mlp_forward.1} parent=89 // loop_header_branch
                %2467 = sbr.rel (%p2465) target = $region97
              $region94: #{spiking_mlp_forward.1} parent=89 // loop_body
                %v2471 = vld [vmem:[%s2469] sm:$0xff]
                %2472 = vst [vmem:[%s2470] sm:$0xff] %v2471
                %v2473 = vld [vmem:[%s2469 + $0x8] sm:$0xff]
                %2474 = vst [vmem:[%s2470 + $0x10] sm:$0xff] %v2473
                %v2475 = vld [vmem:[%s2469 + $0x10] sm:$0xff]
                %2476 = vst [vmem:[%s2470 + $0x20] sm:$0xff] %v2475
                %v2477 = vld [vmem:[%s2469 + $0x18] sm:$0xff]
                %2478 = vst [vmem:[%s2470 + $0x30] sm:$0xff] %v2477
                %v2479 = vld [vmem:[%s2469 + $0x20] sm:$0xff]
                %2480 = vst [vmem:[%s2470 + $0x40] sm:$0xff] %v2479
                %v2481 = vld [vmem:[%s2469 + $0x28] sm:$0xff]
                %2482 = vst [vmem:[%s2470 + $0x50] sm:$0xff] %v2481
                %v2483 = vld [vmem:[%s2469 + $0x30] sm:$0xff]
                %2484 = vst [vmem:[%s2470 + $0x60] sm:$0xff] %v2483
                %v2485 = vld [vmem:[%s2469 + $0x38] sm:$0xff]
                %2486 = vst [vmem:[%s2470 + $0x70] sm:$0xff] %v2485
              $region95: #{spiking_mlp_forward.1} parent=89 // loop_footer
                %s2468 = sadd.s32 1, %s2464
              $region96: #{spiking_mlp_forward.1} parent=89 // loop_footer_branch
                %2463 = sbr.rel target = $region92
              $region97: #{spiking_mlp_forward.1} parent=89 // loop_exit
                _
            $region90: #{spiking_mlp_forward.1} parent=81 // pred_fallthru
              _
          $region82: #{spiking_mlp_forward.1} parent=77 // pred_fallthru
            _
          %2515 = vnop
        $region78: #{spiking_mlp_forward.1} parent=61 // pred_fallthru
          _
        // Predicated region
        $region113: #{spiking_mlp_forward.1} parent=61 // pred_check
          %p2516 = pneg %p153
        $region114: #{spiking_mlp_forward.1} parent=61 // pred_check_branch
          %2518 = sbr.rel (%p2516) target = $region116
        $region115: #{spiking_mlp_forward.1} parent=61 // pred_region
          %s2519 = smul.u32 8, %s20
          %s2520 = smul.addr %s2519, 2
          %s2521 = sadd.s32 %s21, %s2520
          %s2522 = smul.addr %s2521, 8
          %s2523 = scalar_lea.vmem %s4, %s2522
          // Predicated region
          $region117: #{spiking_mlp_forward.1} parent=115 // pred_check
            _
          $region118: #{spiking_mlp_forward.1} parent=115 // pred_check_branch
            %2525 = sbr.rel (0) target = $region120
          $region119: #{spiking_mlp_forward.1} parent=115 // pred_region
            // Predicated region
            $region121: #{spiking_mlp_forward.1} parent=119 // pred_check
              _
            $region122: #{spiking_mlp_forward.1} parent=119 // pred_check_branch
              %2527 = sbr.rel (0) target = $region124
            $region123: #{spiking_mlp_forward.1} parent=119 // pred_region
              // Predicated region
              $region136: #{spiking_mlp_forward.1} parent=123 // pred_check
                _
              $region137: #{spiking_mlp_forward.1} parent=123 // pred_check_branch
                %2556 = sbr.rel (0) target = $region139
              $region138: #{spiking_mlp_forward.1} parent=123 // pred_region
                loop: start=0, step=1, limit=1
                $region140: #{spiking_mlp_forward.1} parent=138 // loop_pre_header
                  _
                $region141: #{spiking_mlp_forward.1} parent=138 // loop_header
                  %s2558 = sphi 0, %s2562
                  %p2559 = scmp.ge.s32.totalorder %s2558, 1
                  %s2563 = sphi %s2443, %s2443
                  %s2564 = sphi %s2523, %s2523
                $region142: #{spiking_mlp_forward.1} parent=138 // loop_header_branch
                  %2561 = sbr.rel (%p2559) target = $region146
                $region143: #{spiking_mlp_forward.1} parent=138 // loop_body
                  %v2565 = vld [vmem:[%s2563] sm:$0xff]
                  %2566 = vst [vmem:[%s2564] sm:$0xff] %v2565
                  %v2567 = vld [vmem:[%s2563 + $0x8] sm:$0xff]
                  %2568 = vst [vmem:[%s2564 + $0x10] sm:$0xff] %v2567
                  %v2569 = vld [vmem:[%s2563 + $0x10] sm:$0xff]
                  %2570 = vst [vmem:[%s2564 + $0x20] sm:$0xff] %v2569
                  %v2571 = vld [vmem:[%s2563 + $0x18] sm:$0xff]
                  %2572 = vst [vmem:[%s2564 + $0x30] sm:$0xff] %v2571
                  %v2573 = vld [vmem:[%s2563 + $0x20] sm:$0xff]
                  %2574 = vst [vmem:[%s2564 + $0x40] sm:$0xff] %v2573
                  %v2575 = vld [vmem:[%s2563 + $0x28] sm:$0xff]
                  %2576 = vst [vmem:[%s2564 + $0x50] sm:$0xff] %v2575
                  %v2577 = vld [vmem:[%s2563 + $0x30] sm:$0xff]
                  %2578 = vst [vmem:[%s2564 + $0x60] sm:$0xff] %v2577
                  %v2579 = vld [vmem:[%s2563 + $0x38] sm:$0xff]
                  %2580 = vst [vmem:[%s2564 + $0x70] sm:$0xff] %v2579
                $region144: #{spiking_mlp_forward.1} parent=138 // loop_footer
                  %s2562 = sadd.s32 1, %s2558
                $region145: #{spiking_mlp_forward.1} parent=138 // loop_footer_branch
                  %2557 = sbr.rel target = $region141
                $region146: #{spiking_mlp_forward.1} parent=138 // loop_exit
                  _
              $region139: #{spiking_mlp_forward.1} parent=123 // pred_fallthru
                _
              // Predicated region
              $region147: #{spiking_mlp_forward.1} parent=123 // pred_check
                _
              $region148: #{spiking_mlp_forward.1} parent=123 // pred_check_branch
                %2582 = sbr.rel target = $region150
              $region149: #{spiking_mlp_forward.1} parent=123 // pred_region
                _
              $region150: #{spiking_mlp_forward.1} parent=123 // pred_fallthru
                _
            $region124: #{spiking_mlp_forward.1} parent=119 // pred_fallthru
              _
            // Predicated region
            $region125: #{spiking_mlp_forward.1} parent=119 // pred_check
              _
            $region126: #{spiking_mlp_forward.1} parent=119 // pred_check_branch
              %2529 = sbr.rel target = $region128
            $region127: #{spiking_mlp_forward.1} parent=119 // pred_region
              loop: start=0, step=1, limit=1
              $region129: #{spiking_mlp_forward.1} parent=127 // loop_pre_header
                _
              $region130: #{spiking_mlp_forward.1} parent=127 // loop_header
                %s2532 = sphi 0, %s2536
                %p2533 = scmp.ge.s32.totalorder %s2532, 1
                %s2537 = sphi %s2443, %s2443
                %s2538 = sphi %s2523, %s2523
              $region131: #{spiking_mlp_forward.1} parent=127 // loop_header_branch
                %2535 = sbr.rel (%p2533) target = $region135
              $region132: #{spiking_mlp_forward.1} parent=127 // loop_body
                %v2539 = vld [vmem:[%s2537] sm:$0xff]
                %2540 = vst [vmem:[%s2538] sm:$0xff] %v2539
                %v2541 = vld [vmem:[%s2537 + $0x8] sm:$0xff]
                %2542 = vst [vmem:[%s2538 + $0x10] sm:$0xff] %v2541
                %v2543 = vld [vmem:[%s2537 + $0x10] sm:$0xff]
                %2544 = vst [vmem:[%s2538 + $0x20] sm:$0xff] %v2543
                %v2545 = vld [vmem:[%s2537 + $0x18] sm:$0xff]
                %2546 = vst [vmem:[%s2538 + $0x30] sm:$0xff] %v2545
                %v2547 = vld [vmem:[%s2537 + $0x20] sm:$0xff]
                %2548 = vst [vmem:[%s2538 + $0x40] sm:$0xff] %v2547
                %v2549 = vld [vmem:[%s2537 + $0x28] sm:$0xff]
                %2550 = vst [vmem:[%s2538 + $0x50] sm:$0xff] %v2549
                %v2551 = vld [vmem:[%s2537 + $0x30] sm:$0xff]
                %2552 = vst [vmem:[%s2538 + $0x60] sm:$0xff] %v2551
                %v2553 = vld [vmem:[%s2537 + $0x38] sm:$0xff]
                %2554 = vst [vmem:[%s2538 + $0x70] sm:$0xff] %v2553
              $region133: #{spiking_mlp_forward.1} parent=127 // loop_footer
                %s2536 = sadd.s32 1, %s2532
              $region134: #{spiking_mlp_forward.1} parent=127 // loop_footer_branch
                %2531 = sbr.rel target = $region130
              $region135: #{spiking_mlp_forward.1} parent=127 // loop_exit
                _
            $region128: #{spiking_mlp_forward.1} parent=119 // pred_fallthru
              _
          $region120: #{spiking_mlp_forward.1} parent=115 // pred_fallthru
            _
          %2583 = vnop
        $region116: #{spiking_mlp_forward.1} parent=61 // pred_fallthru
          _
      $region62: #{spiking_mlp_forward.1} parent=5 // pred_fallthru
        _
      %p2584 = scmp.le.s32.totalorder 2, %s11
      // Predicated region
      $region151: #{spiking_mlp_forward.1} parent=5 // pred_check
        %p2585 = pneg %p2584
      $region152: #{spiking_mlp_forward.1} parent=5 // pred_check_branch
        %2587 = sbr.rel (%p2585) target = $region154
      $region153: #{spiking_mlp_forward.1} parent=5 // pred_region
        %s2588 = ssub.s32 %s11, 2
        // Predicated region
        $region155: #{spiking_mlp_forward.1} parent=153 // pred_check
          %p2589 = pneg %p103
        $region156: #{spiking_mlp_forward.1} parent=153 // pred_check_branch
          %2591 = sbr.rel (%p2589) target = $region158
        $region157: #{spiking_mlp_forward.1} parent=153 // pred_region
          %s2592 = smul.u32 8, %s23
          %p2593 = scmp.lt.s32.totalorder %s2592, 15
          %s2594 = scalar_select %p2593, %s2592, 15
          %p2595 = scmp.lt.s32.totalorder %s22, 0
          %s2596 = scalar_select %p2595, %s22, 0
          %s2597 = sadd.s32 %s2596, %s2594
          %s2598 = smul.addr %s2597, 8
          %s2599 = scalar_lea.vmem %s2, %s2598
        $region158: #{spiking_mlp_forward.1} parent=153 // pred_fallthru
          _
        // Predicated region
        $region159: #{spiking_mlp_forward.1} parent=153 // pred_check
          %p2600 = pneg %p131
        $region160: #{spiking_mlp_forward.1} parent=153 // pred_check_branch
          %2602 = sbr.rel (%p2600) target = $region162
        $region161: #{spiking_mlp_forward.1} parent=153 // pred_region
          %s2603 = sand.u32 %s116, 1
          %s2604 = sand.u32 %s116, 1
          %s2605 = smul.addr %s2604, 64
          %s2606 = scalar_lea.vmem [#allocation5], %s2605
        $region162: #{spiking_mlp_forward.1} parent=153 // pred_fallthru
          _
        // Predicated region
        $region163: #{spiking_mlp_forward.1} parent=153 // pred_check
          %p2607 = pneg %p159
        $region164: #{spiking_mlp_forward.1} parent=153 // pred_check_branch
          %2609 = sbr.rel (%p2607) target = $region166
        $region165: #{spiking_mlp_forward.1} parent=153 // pred_region
          %s2610 = sand.u32 %s144, 1
          %s2611 = sand.u32 %s144, 1
          %s2612 = smul.addr %s2611, 64
          %s2613 = scalar_lea.vmem [#allocation6], %s2612
        $region166: #{spiking_mlp_forward.1} parent=153 // pred_fallthru
          _
      $region154: #{spiking_mlp_forward.1} parent=5 // pred_fallthru
        _
    $region6: #{spiking_mlp_forward.1} parent=1 // loop_footer
      %s15 = sadd.s32 1, %s11
    $region7: #{spiking_mlp_forward.1} parent=1 // loop_footer_branch
      %10 = sbr.rel target = $region3
    $region8: #{spiking_mlp_forward.1} parent=1 // loop_exit
      _

</llo_original>
